<compile_context>
chip_gen: v6e
topology: v6e:2x2x1
jax: 0.10.0
libtpu: 0.0.40
codegen_flags: <defaults>
</compile_context>

<pallas_src>
import functools

import jax
import jax.numpy as jnp
from jax import lax
from jax.experimental import pallas as pl
from jax.experimental.pallas import tpu as pltpu


def _round_up(x, m):
    return (x + m - 1) // m * m


# --------------------------------------------------------------------------- #
# Pallas kernel: fused DoubleConv3d for one batch element.
#
# A 3x3x3 conv output at flat padded position q is
#   sum_{kd,kh,kw} W[kd,kh,kw] @ x[:, q + (kd-1)*Hp*Wp + (kh-1)*Wp + (kw-1)]
# evaluated for all q in [0, P) at once; only interior positions are meaningful
# (halo positions are masked / discarded by the wrapper).
# --------------------------------------------------------------------------- #
def _double_conv3d_kernel(x_ref, w1_ref, b1_ref, w2_ref, b2_ref, mask_ref,
                          out_ref, mid_ref, *, Hp, Wp, E, P):
    # x_ref   : (1, Cin, L)        bf16, flat halo-padded input with E-margins
    # w1_ref  : (9, Cmid, 3*Cin)   bf16, conv1 weights * BN1 scale, grouped by (kd,kh)
    # b1_ref  : (Cmid, 1)          f32, folded BN1 shift (incl. conv bias)
    # w2_ref  : (9, Cout, 3*Cmid)  bf16
    # b2_ref  : (Cout, 1)          f32
    # mask_ref: (1, P)             f32, 1.0 at interior flat positions, 0.0 at halo
    # out_ref : (1, Cout, P)       f32, conv2 result over the padded grid (lane-dense)
    # mid_ref : (Cmid, L)          bf16 VMEM scratch, conv1 activation re-padded
    Cmid = mid_ref.shape[0]
    L = mid_ref.shape[1]
    Cout = out_ref.shape[1]
    HpWp = Hp * Wp

    # ---------------- conv1: 9 MXU matmuls, K = 3*Cin, N = P ---------------- #
    acc1 = jnp.zeros((Cmid, P), jnp.float32)
    for kd in range(3):
        for kh in range(3):
            s = E + (kd - 1) * HpWp + (kh - 1) * Wp
            rhs = jnp.concatenate(
                [x_ref[0, :, s - 1:s - 1 + P],        # kw = 0
                 x_ref[0, :, s:s + P],                # kw = 1
                 x_ref[0, :, s + 1:s + 1 + P]],       # kw = 2
                axis=0)                               # (3*Cin, P) bf16
            acc1 = acc1 + jnp.dot(w1_ref[3 * kd + kh], rhs,
                                  preferred_element_type=jnp.float32)

    # BN1 shift (scale folded into w1) + ReLU; zero the in-volume halo so it
    # acts as conv2's zero padding.
    mid = (jnp.maximum(acc1 + b1_ref[...], 0.0) * mask_ref[...]).astype(jnp.bfloat16)

    # Re-pad: zero only the two E-margins (tiny), write the interior lane-aligned
    # (E is a multiple of 128).
    mid_ref[:, :E] = jnp.zeros((Cmid, E), jnp.bfloat16)
    mid_ref[:, E + P:] = jnp.zeros((Cmid, L - E - P), jnp.bfloat16)
    mid_ref[:, E:E + P] = mid

    # ---------------- conv2: 9 MXU matmuls, K = 3*Cmid, N = P --------------- #
    acc2 = jnp.zeros((Cout, P), jnp.float32)
    for kd in range(3):
        for kh in range(3):
            s = E + (kd - 1) * HpWp + (kh - 1) * Wp
            rhs = jnp.concatenate(
                [mid_ref[:, s - 1:s - 1 + P],
                 mid_ref[:, s:s + P],
                 mid_ref[:, s + 1:s + 1 + P]],
                axis=0)                               # (3*Cmid, P) bf16
            acc2 = acc2 + jnp.dot(w2_ref[3 * kd + kh], rhs,
                                  preferred_element_type=jnp.float32)

    out_ref[0] = jnp.maximum(acc2 + b2_ref[...], 0.0).astype(out_ref.dtype)


# --------------------------------------------------------------------------- #
# JAX glue: trilinear x2 upsample (align_corners=True), F.pad, concat
# --------------------------------------------------------------------------- #
def _interp_axis_x2_align_corners(arr, axis):
    in_size = arr.shape[axis]
    out_size = 2 * in_size
    coords = jnp.arange(out_size, dtype=jnp.float32) * (in_size - 1) / (out_size - 1)
    lo = jnp.clip(jnp.floor(coords).astype(jnp.int32), 0, in_size - 1)
    hi = jnp.clip(lo + 1, 0, in_size - 1)
    frac = coords - lo.astype(jnp.float32)
    a = jnp.take(arr, lo, axis=axis)
    b = jnp.take(arr, hi, axis=axis)
    shape = [1] * arr.ndim
    shape[axis] = out_size
    frac = frac.reshape(shape)
    return a * (1.0 - frac) + b * frac


def _trilinear_upsample_x2(x, axes):
    for ax in axes:
        x = _interp_axis_x2_align_corners(x, ax)
    return x


# --------------------------------------------------------------------------- #
# Forward pass of `Up` (NCDHW in / NCDHW out, like PyTorch)
# --------------------------------------------------------------------------- #
def up_forward(params, input_ncdhw, x_ncdhw):
    # upsample + pad-to-skip + channel concat, all in NCDHW (channel is a major
    # axis, so the concat causes no lane-layout churn)
    x1 = _trilinear_upsample_x2(input_ncdhw.astype(jnp.float32), (2, 3, 4))
    skip = x_ncdhw.astype(jnp.float32)
    dD = skip.shape[2] - x1.shape[2]
    dH = skip.shape[3] - x1.shape[3]
    dW = skip.shape[4] - x1.shape[4]
    x3 = jnp.pad(x1, ((0, 0), (0, 0),
                      (dD // 2, dD - dD // 2),
                      (dH // 2, dH - dH // 2),
                      (dW // 2, dW - dW // 2)))
    cat = jnp.concatenate([skip, x3], axis=1)           # (N, Cin, D, H, W)

    N, Cin, D, H, W = cat.shape
    Dp, Hp, Wp = D + 2, H + 2, W + 2
    P = Dp * Hp * Wp
    E = _round_up(Hp * Wp + Wp + 1, 128)                # zero margin, 128-aligned
    L = E + P + E

    # flat halo-padded, E-margined, bf16 activations (channel rows, spatial lanes)
    xpad = jnp.pad(cat, ((0, 0), (0, 0), (1, 1), (1, 1), (1, 1)))
    xflat = jnp.pad(xpad.reshape(N, Cin, P),
                    ((0, 0), (0, 0), (E, E))).astype(jnp.bfloat16)

    # weights: fold BN scale, group (kd,kh) x (kw,ci) -> (9, Cout_like, 3*Cin_like)
    w1 = params['w1'].astype(jnp.float32)               # (3,3,3,Cin,Cmid)  DHWIO
    w2 = params['w2'].astype(jnp.float32)               # (3,3,3,Cmid,Cout) DHWIO
    s1 = params['s1'].astype(jnp.float32)
    b1 = params['b1'].astype(jnp.float32)
    s2 = params['s2'].astype(jnp.float32)
    b2 = params['b2'].astype(jnp.float32)
    Cmid = w1.shape[-1]
    Cout = w2.shape[-1]

    w1g = jnp.transpose(w1 * s1, (0, 1, 4, 2, 3)).reshape(9, Cmid, 3 * Cin)
    w2g = jnp.transpose(w2 * s2, (0, 1, 4, 2, 3)).reshape(9, Cout, 3 * Cmid)
    w1g = w1g.astype(jnp.bfloat16)
    w2g = w2g.astype(jnp.bfloat16)
    b1c = b1.reshape(Cmid, 1)
    b2c = b2.reshape(Cout, 1)

    # interior mask over the flattened padded grid
    dmask = (jnp.arange(Dp) >= 1) & (jnp.arange(Dp) <= D)
    hmask = (jnp.arange(Hp) >= 1) & (jnp.arange(Hp) <= H)
    wmask = (jnp.arange(Wp) >= 1) & (jnp.arange(Wp) <= W)
    mask = (dmask[:, None, None] & hmask[None, :, None] & wmask[None, None, :])
    mask = mask.reshape(1, P).astype(jnp.float32)

    kern = functools.partial(_double_conv3d_kernel, Hp=Hp, Wp=Wp, E=E, P=P)
    out_flat = pl.pallas_call(
        kern,
        out_shape=jax.ShapeDtypeStruct((N, Cout, P), jnp.float32),
        grid_spec=pltpu.PrefetchScalarGridSpec(
            num_scalar_prefetch=0,
            grid=(N,),
            in_specs=[
                pl.BlockSpec((1, Cin, L), lambda n: (n, 0, 0)),
                pl.BlockSpec((9, Cmid, 3 * Cin), lambda n: (0, 0, 0)),
                pl.BlockSpec((Cmid, 1), lambda n: (0, 0)),
                pl.BlockSpec((9, Cout, 3 * Cmid), lambda n: (0, 0, 0)),
                pl.BlockSpec((Cout, 1), lambda n: (0, 0)),
                pl.BlockSpec((1, P), lambda n: (0, 0)),
            ],
            out_specs=pl.BlockSpec((1, Cout, P), lambda n: (n, 0, 0)),
            scratch_shapes=[pltpu.VMEM((Cmid, L), jnp.bfloat16)],
        ),
        compiler_params=pltpu.CompilerParams(
            dimension_semantics=("parallel",),
            vmem_limit_bytes=48 * 1024 * 1024),
    )(xflat, w1g, b1c, w2g, b2c, mask)

    # drop the conv halo: (N, Cout, P) -> (N, Cout, D, H, W); output is NCDHW.
    out = out_flat.reshape(N, Cout, Dp, Hp, Wp)[:, :, 1:-1, 1:-1, 1:-1]
    return out


# Pure-JAX reference (same semantics) used only for a correctness check.
def up_forward_reference(params, input_ncdhw, x_ncdhw):
    inp = jnp.transpose(input_ncdhw, (0, 2, 3, 4, 1))   # -> NDHWC
    skip = jnp.transpose(x_ncdhw, (0, 2, 3, 4, 1))
    x1 = _trilinear_upsample_x2(inp, (1, 2, 3))
    dD = skip.shape[1] - x1.shape[1]
    dH = skip.shape[2] - x1.shape[2]
    dW = skip.shape[3] - x1.shape[3]
    x3 = jnp.pad(x1, ((0, 0),
                      (dD // 2, dD - dD // 2),
                      (dH // 2, dH - dH // 2),
                      (dW // 2, dW - dW // 2),
                      (0, 0)))
    y = jnp.concatenate([skip, x3], axis=-1)
    dn = ('NDHWC', 'DHWIO', 'NDHWC')
    y = lax.conv_general_dilated(y, params['w1'], (1, 1, 1), 'SAME',
                                 dimension_numbers=dn,
                                 precision=lax.Precision.HIGHEST)
    y = jnp.maximum(y * params['s1'] + params['b1'], 0.0)
    y = lax.conv_general_dilated(y, params['w2'], (1, 1, 1), 'SAME',
                                 dimension_numbers=dn,
                                 precision=lax.Precision.HIGHEST)
    y = jnp.maximum(y * params['s2'] + params['b2'], 0.0)
    return jnp.transpose(y, (0, 4, 1, 2, 3))            # -> NCDHW


if __name__ == "__main__":
    key = jax.random.PRNGKey(0)
    k = jax.random.split(key, 16)

    # Up(in_channels=8, out_channels=4); the tensor to upsample has 4 channels
    # and the skip tensor has 4 channels (concat -> 8 = in_channels).
    in_channels, out_channels = 8, 4
    N, Cu = 2, 4
    Cs = in_channels - Cu
    Din = Hin = Win = 4
    D = H = W = 2 * Din

    def bf16r(a):
        # round test data to bf16-representable values (the kernel feeds the MXU
        # in bf16) so the f32 reference comparison measures kernel correctness
        # rather than input-quantization noise.
        return a.astype(jnp.bfloat16).astype(jnp.float32)

    inp = bf16r(jax.random.normal(k[0], (N, Cu, Din, Hin, Win), jnp.float32))   # NCDHW
    skip = bf16r(jax.random.normal(k[1], (N, Cs, D, H, W), jnp.float32))        # NCDHW

    eps = 1e-5
    # conv1: in_channels -> in_channels
    w1 = bf16r(jax.random.normal(k[2], (3, 3, 3, in_channels, in_channels),
                                 jnp.float32) * 0.1)
    cb1 = jax.random.normal(k[3], (in_channels,), jnp.float32) * 0.05
    g1 = jax.random.uniform(k[4], (in_channels,), jnp.float32, 0.8, 1.2)
    be1 = jax.random.normal(k[5], (in_channels,), jnp.float32) * 0.05
    rm1 = jax.random.normal(k[6], (in_channels,), jnp.float32) * 0.05
    rv1 = jax.random.uniform(k[7], (in_channels,), jnp.float32, 0.8, 1.2)
    # conv2: in_channels -> out_channels
    w2 = bf16r(jax.random.normal(k[8], (3, 3, 3, in_channels, out_channels),
                                 jnp.float32) * 0.1)
    cb2 = jax.random.normal(k[9], (out_channels,), jnp.float32) * 0.05
    g2 = jax.random.uniform(k[10], (out_channels,), jnp.float32, 0.8, 1.2)
    be2 = jax.random.normal(k[11], (out_channels,), jnp.float32) * 0.05
    rm2 = jax.random.normal(k[12], (out_channels,), jnp.float32) * 0.05
    rv2 = jax.random.uniform(k[13], (out_channels,), jnp.float32, 0.8, 1.2)

    # Fold eval-mode BatchNorm (+ conv bias) into per-channel scale / shift.
    s1 = g1 / jnp.sqrt(rv1 + eps)
    b1 = (cb1 - rm1) * s1 + be1
    s2 = g2 / jnp.sqrt(rv2 + eps)
    b2 = (cb2 - rm2) * s2 + be2

    params = dict(w1=w1, s1=s1, b1=b1, w2=w2, s2=s2, b2=b2)

    out = up_forward(params, inp, skip)
    out = jax.block_until_ready(out)

    ref = up_forward_reference(params, inp, skip)
    assert out.shape == (N, out_channels, D, H, W), out.shape
    # bf16 MXU operands with f32 accumulation -> tolerance reflects bf16 rounding.
    assert jnp.allclose(out, ref, rtol=5e-2, atol=5e-2), \
        float(jnp.max(jnp.abs(out - ref)))

    print("KERNEL_OK")
</pallas_src>

<mosaic_0001>
module attributes {stable_mosaic.version = 11 : i64} {
  func.func @_double_conv3d_kernel(%arg0: i32, %arg1: memref<1x8x1256xbf16, #tpu.memory_space<vmem>>, %arg2: memref<9x8x24xbf16, #tpu.memory_space<vmem>>, %arg3: memref<8x1xf32, #tpu.memory_space<vmem>>, %arg4: memref<9x4x24xbf16, #tpu.memory_space<vmem>>, %arg5: memref<4x1xf32, #tpu.memory_space<vmem>>, %arg6: memref<1x1000xf32, #tpu.memory_space<vmem>>, %arg7: memref<1x4x1000xf32, #tpu.memory_space<vmem>>, %arg8: memref<8x1256xbf16, #tpu.memory_space<vmem>>) attributes {dimension_semantics = [#tpu.dimension_semantics<parallel>], iteration_bounds = array<i64: 2>, scalar_prefetch = 0 : i64, scratch_operands = 1 : i64, tpu.core_type = #tpu.core_type<tc>, window_params = [{transform_indices = @transform_0, window_bounds = array<i64: 1, 8, 1256>}, {pipeline_mode = #tpu.pipeline_mode<synchronous>, transform_indices = @transform_1, window_bounds = array<i64: 9, 8, 24>}, {pipeline_mode = #tpu.pipeline_mode<synchronous>, transform_indices = @transform_2, window_bounds = array<i64: 8, 1>}, {pipeline_mode = #tpu.pipeline_mode<synchronous>, transform_indices = @transform_3, window_bounds = array<i64: 9, 4, 24>}, {pipeline_mode = #tpu.pipeline_mode<synchronous>, transform_indices = @transform_4, window_bounds = array<i64: 4, 1>}, {pipeline_mode = #tpu.pipeline_mode<synchronous>, transform_indices = @transform_5, window_bounds = array<i64: 1, 1000>}, {transform_indices = @transform_6, window_bounds = array<i64: 1, 4, 1000>}]} {
    %cst = arith.constant 0.000000e+00 : f32
    %0 = vector.broadcast %cst : f32 to vector<8x1000xf32>
    %c0 = arith.constant 0 : index
    %c0_0 = arith.constant 0 : index
    %c17 = arith.constant 17 : index
    %1 = vector.load %arg1[%c0, %c0_0, %c17] : memref<1x8x1256xbf16, #tpu.memory_space<vmem>>, vector<1x8x1000xbf16>
    %2 = vector.shape_cast %1 : vector<1x8x1000xbf16> to vector<8x1000xbf16>
    %c0_1 = arith.constant 0 : index
    %c0_2 = arith.constant 0 : index
    %c18 = arith.constant 18 : index
    %3 = vector.load %arg1[%c0_1, %c0_2, %c18] : memref<1x8x1256xbf16, #tpu.memory_space<vmem>>, vector<1x8x1000xbf16>
    %4 = vector.shape_cast %3 : vector<1x8x1000xbf16> to vector<8x1000xbf16>
    %c0_3 = arith.constant 0 : index
    %c0_4 = arith.constant 0 : index
    %c19 = arith.constant 19 : index
    %5 = vector.load %arg1[%c0_3, %c0_4, %c19] : memref<1x8x1256xbf16, #tpu.memory_space<vmem>>, vector<1x8x1000xbf16>
    %6 = vector.shape_cast %5 : vector<1x8x1000xbf16> to vector<8x1000xbf16>
    %7 = tpu.concatenate %2, %4, %6 in 0 : vector<8x1000xbf16>, vector<8x1000xbf16>, vector<8x1000xbf16> -> vector<24x1000xbf16>
    %c0_5 = arith.constant 0 : index
    %c0_6 = arith.constant 0 : index
    %c0_7 = arith.constant 0 : index
    %8 = vector.load %arg2[%c0_5, %c0_6, %c0_7] : memref<9x8x24xbf16, #tpu.memory_space<vmem>>, vector<1x8x24xbf16>
    %9 = vector.shape_cast %8 : vector<1x8x24xbf16> to vector<8x24xbf16>
    %cst_8 = arith.constant dense<0.000000e+00> : vector<8x1000xf32>
    %10 = tpu.matmul %9, %7, %cst_8 {dimension_numbers = #tpu.dot_dimension_numbers<[1], [0], [0], [1], [0, 0, 1, 1], [], []>} : vector<8x24xbf16>, vector<24x1000xbf16>, vector<8x1000xf32> -> vector<8x1000xf32>
    %11 = arith.addf %0, %10 : vector<8x1000xf32>
    %c0_9 = arith.constant 0 : index
    %c0_10 = arith.constant 0 : index
    %c27 = arith.constant 27 : index
    %12 = vector.load %arg1[%c0_9, %c0_10, %c27] : memref<1x8x1256xbf16, #tpu.memory_space<vmem>>, vector<1x8x1000xbf16>
    %13 = vector.shape_cast %12 : vector<1x8x1000xbf16> to vector<8x1000xbf16>
    %c0_11 = arith.constant 0 : index
    %c0_12 = arith.constant 0 : index
    %c28 = arith.constant 28 : index
    %14 = vector.load %arg1[%c0_11, %c0_12, %c28] : memref<1x8x1256xbf16, #tpu.memory_space<vmem>>, vector<1x8x1000xbf16>
    %15 = vector.shape_cast %14 : vector<1x8x1000xbf16> to vector<8x1000xbf16>
    %c0_13 = arith.constant 0 : index
    %c0_14 = arith.constant 0 : index
    %c29 = arith.constant 29 : index
    %16 = vector.load %arg1[%c0_13, %c0_14, %c29] : memref<1x8x1256xbf16, #tpu.memory_space<vmem>>, vector<1x8x1000xbf16>
    %17 = vector.shape_cast %16 : vector<1x8x1000xbf16> to vector<8x1000xbf16>
    %18 = tpu.concatenate %13, %15, %17 in 0 : vector<8x1000xbf16>, vector<8x1000xbf16>, vector<8x1000xbf16> -> vector<24x1000xbf16>
    %c1 = arith.constant 1 : index
    %c0_15 = arith.constant 0 : index
    %c0_16 = arith.constant 0 : index
    %19 = vector.load %arg2[%c1, %c0_15, %c0_16] : memref<9x8x24xbf16, #tpu.memory_space<vmem>>, vector<1x8x24xbf16>
    %20 = vector.shape_cast %19 : vector<1x8x24xbf16> to vector<8x24xbf16>
    %cst_17 = arith.constant dense<0.000000e+00> : vector<8x1000xf32>
    %21 = tpu.matmul %20, %18, %cst_17 {dimension_numbers = #tpu.dot_dimension_numbers<[1], [0], [0], [1], [0, 0, 1, 1], [], []>} : vector<8x24xbf16>, vector<24x1000xbf16>, vector<8x1000xf32> -> vector<8x1000xf32>
    %22 = arith.addf %11, %21 : vector<8x1000xf32>
    %c0_18 = arith.constant 0 : index
    %c0_19 = arith.constant 0 : index
    %c37 = arith.constant 37 : index
    %23 = vector.load %arg1[%c0_18, %c0_19, %c37] : memref<1x8x1256xbf16, #tpu.memory_space<vmem>>, vector<1x8x1000xbf16>
    %24 = vector.shape_cast %23 : vector<1x8x1000xbf16> to vector<8x1000xbf16>
    %c0_20 = arith.constant 0 : index
    %c0_21 = arith.constant 0 : index
    %c38 = arith.constant 38 : index
    %25 = vector.load %arg1[%c0_20, %c0_21, %c38] : memref<1x8x1256xbf16, #tpu.memory_space<vmem>>, vector<1x8x1000xbf16>
    %26 = vector.shape_cast %25 : vector<1x8x1000xbf16> to vector<8x1000xbf16>
    %c0_22 = arith.constant 0 : index
    %c0_23 = arith.constant 0 : index
    %c39 = arith.constant 39 : index
    %27 = vector.load %arg1[%c0_22, %c0_23, %c39] : memref<1x8x1256xbf16, #tpu.memory_space<vmem>>, vector<1x8x1000xbf16>
    %28 = vector.shape_cast %27 : vector<1x8x1000xbf16> to vector<8x1000xbf16>
    %29 = tpu.concatenate %24, %26, %28 in 0 : vector<8x1000xbf16>, vector<8x1000xbf16>, vector<8x1000xbf16> -> vector<24x1000xbf16>
    %c2 = arith.constant 2 : index
    %c0_24 = arith.constant 0 : index
    %c0_25 = arith.constant 0 : index
    %30 = vector.load %arg2[%c2, %c0_24, %c0_25] : memref<9x8x24xbf16, #tpu.memory_space<vmem>>, vector<1x8x24xbf16>
    %31 = vector.shape_cast %30 : vector<1x8x24xbf16> to vector<8x24xbf16>
    %cst_26 = arith.constant dense<0.000000e+00> : vector<8x1000xf32>
    %32 = tpu.matmul %31, %29, %cst_26 {dimension_numbers = #tpu.dot_dimension_numbers<[1], [0], [0], [1], [0, 0, 1, 1], [], []>} : vector<8x24xbf16>, vector<24x1000xbf16>, vector<8x1000xf32> -> vector<8x1000xf32>
    %33 = arith.addf %22, %32 : vector<8x1000xf32>
    %c0_27 = arith.constant 0 : index
    %c0_28 = arith.constant 0 : index
    %c117 = arith.constant 117 : index
    %34 = vector.load %arg1[%c0_27, %c0_28, %c117] : memref<1x8x1256xbf16, #tpu.memory_space<vmem>>, vector<1x8x1000xbf16>
    %35 = vector.shape_cast %34 : vector<1x8x1000xbf16> to vector<8x1000xbf16>
    %c0_29 = arith.constant 0 : index
    %c0_30 = arith.constant 0 : index
    %c118 = arith.constant 118 : index
    %36 = vector.load %arg1[%c0_29, %c0_30, %c118] : memref<1x8x1256xbf16, #tpu.memory_space<vmem>>, vector<1x8x1000xbf16>
    %37 = vector.shape_cast %36 : vector<1x8x1000xbf16> to vector<8x1000xbf16>
    %c0_31 = arith.constant 0 : index
    %c0_32 = arith.constant 0 : index
    %c119 = arith.constant 119 : index
    %38 = vector.load %arg1[%c0_31, %c0_32, %c119] : memref<1x8x1256xbf16, #tpu.memory_space<vmem>>, vector<1x8x1000xbf16>
    %39 = vector.shape_cast %38 : vector<1x8x1000xbf16> to vector<8x1000xbf16>
    %40 = tpu.concatenate %35, %37, %39 in 0 : vector<8x1000xbf16>, vector<8x1000xbf16>, vector<8x1000xbf16> -> vector<24x1000xbf16>
    %c3 = arith.constant 3 : index
    %c0_33 = arith.constant 0 : index
    %c0_34 = arith.constant 0 : index
    %41 = vector.load %arg2[%c3, %c0_33, %c0_34] : memref<9x8x24xbf16, #tpu.memory_space<vmem>>, vector<1x8x24xbf16>
    %42 = vector.shape_cast %41 : vector<1x8x24xbf16> to vector<8x24xbf16>
    %cst_35 = arith.constant dense<0.000000e+00> : vector<8x1000xf32>
    %43 = tpu.matmul %42, %40, %cst_35 {dimension_numbers = #tpu.dot_dimension_numbers<[1], [0], [0], [1], [0, 0, 1, 1], [], []>} : vector<8x24xbf16>, vector<24x1000xbf16>, vector<8x1000xf32> -> vector<8x1000xf32>
    %44 = arith.addf %33, %43 : vector<8x1000xf32>
    %c0_36 = arith.constant 0 : index
    %c0_37 = arith.constant 0 : index
    %c127 = arith.constant 127 : index
    %45 = vector.load %arg1[%c0_36, %c0_37, %c127] : memref<1x8x1256xbf16, #tpu.memory_space<vmem>>, vector<1x8x1000xbf16>
    %46 = vector.shape_cast %45 : vector<1x8x1000xbf16> to vector<8x1000xbf16>
    %c0_38 = arith.constant 0 : index
    %c0_39 = arith.constant 0 : index
    %c128 = arith.constant 128 : index
    %47 = vector.load %arg1[%c0_38, %c0_39, %c128] : memref<1x8x1256xbf16, #tpu.memory_space<vmem>>, vector<1x8x1000xbf16>
    %48 = vector.shape_cast %47 : vector<1x8x1000xbf16> to vector<8x1000xbf16>
    %c0_40 = arith.constant 0 : index
    %c0_41 = arith.constant 0 : index
    %c129 = arith.constant 129 : index
    %49 = vector.load %arg1[%c0_40, %c0_41, %c129] : memref<1x8x1256xbf16, #tpu.memory_space<vmem>>, vector<1x8x1000xbf16>
    %50 = vector.shape_cast %49 : vector<1x8x1000xbf16> to vector<8x1000xbf16>
    %51 = tpu.concatenate %46, %48, %50 in 0 : vector<8x1000xbf16>, vector<8x1000xbf16>, vector<8x1000xbf16> -> vector<24x1000xbf16>
    %c4 = arith.constant 4 : index
    %c0_42 = arith.constant 0 : index
    %c0_43 = arith.constant 0 : index
    %52 = vector.load %arg2[%c4, %c0_42, %c0_43] : memref<9x8x24xbf16, #tpu.memory_space<vmem>>, vector<1x8x24xbf16>
    %53 = vector.shape_cast %52 : vector<1x8x24xbf16> to vector<8x24xbf16>
    %cst_44 = arith.constant dense<0.000000e+00> : vector<8x1000xf32>
    %54 = tpu.matmul %53, %51, %cst_44 {dimension_numbers = #tpu.dot_dimension_numbers<[1], [0], [0], [1], [0, 0, 1, 1], [], []>} : vector<8x24xbf16>, vector<24x1000xbf16>, vector<8x1000xf32> -> vector<8x1000xf32>
    %55 = arith.addf %44, %54 : vector<8x1000xf32>
    %c0_45 = arith.constant 0 : index
    %c0_46 = arith.constant 0 : index
    %c137 = arith.constant 137 : index
    %56 = vector.load %arg1[%c0_45, %c0_46, %c137] : memref<1x8x1256xbf16, #tpu.memory_space<vmem>>, vector<1x8x1000xbf16>
    %57 = vector.shape_cast %56 : vector<1x8x1000xbf16> to vector<8x1000xbf16>
    %c0_47 = arith.constant 0 : index
    %c0_48 = arith.constant 0 : index
    %c138 = arith.constant 138 : index
    %58 = vector.load %arg1[%c0_47, %c0_48, %c138] : memref<1x8x1256xbf16, #tpu.memory_space<vmem>>, vector<1x8x1000xbf16>
    %59 = vector.shape_cast %58 : vector<1x8x1000xbf16> to vector<8x1000xbf16>
    %c0_49 = arith.constant 0 : index
    %c0_50 = arith.constant 0 : index
    %c139 = arith.constant 139 : index
    %60 = vector.load %arg1[%c0_49, %c0_50, %c139] : memref<1x8x1256xbf16, #tpu.memory_space<vmem>>, vector<1x8x1000xbf16>
    %61 = vector.shape_cast %60 : vector<1x8x1000xbf16> to vector<8x1000xbf16>
    %62 = tpu.concatenate %57, %59, %61 in 0 : vector<8x1000xbf16>, vector<8x1000xbf16>, vector<8x1000xbf16> -> vector<24x1000xbf16>
    %c5 = arith.constant 5 : index
    %c0_51 = arith.constant 0 : index
    %c0_52 = arith.constant 0 : index
    %63 = vector.load %arg2[%c5, %c0_51, %c0_52] : memref<9x8x24xbf16, #tpu.memory_space<vmem>>, vector<1x8x24xbf16>
    %64 = vector.shape_cast %63 : vector<1x8x24xbf16> to vector<8x24xbf16>
    %cst_53 = arith.constant dense<0.000000e+00> : vector<8x1000xf32>
    %65 = tpu.matmul %64, %62, %cst_53 {dimension_numbers = #tpu.dot_dimension_numbers<[1], [0], [0], [1], [0, 0, 1, 1], [], []>} : vector<8x24xbf16>, vector<24x1000xbf16>, vector<8x1000xf32> -> vector<8x1000xf32>
    %66 = arith.addf %55, %65 : vector<8x1000xf32>
    %c0_54 = arith.constant 0 : index
    %c0_55 = arith.constant 0 : index
    %c217 = arith.constant 217 : index
    %67 = vector.load %arg1[%c0_54, %c0_55, %c217] : memref<1x8x1256xbf16, #tpu.memory_space<vmem>>, vector<1x8x1000xbf16>
    %68 = vector.shape_cast %67 : vector<1x8x1000xbf16> to vector<8x1000xbf16>
    %c0_56 = arith.constant 0 : index
    %c0_57 = arith.constant 0 : index
    %c218 = arith.constant 218 : index
    %69 = vector.load %arg1[%c0_56, %c0_57, %c218] : memref<1x8x1256xbf16, #tpu.memory_space<vmem>>, vector<1x8x1000xbf16>
    %70 = vector.shape_cast %69 : vector<1x8x1000xbf16> to vector<8x1000xbf16>
    %c0_58 = arith.constant 0 : index
    %c0_59 = arith.constant 0 : index
    %c219 = arith.constant 219 : index
    %71 = vector.load %arg1[%c0_58, %c0_59, %c219] : memref<1x8x1256xbf16, #tpu.memory_space<vmem>>, vector<1x8x1000xbf16>
    %72 = vector.shape_cast %71 : vector<1x8x1000xbf16> to vector<8x1000xbf16>
    %73 = tpu.concatenate %68, %70, %72 in 0 : vector<8x1000xbf16>, vector<8x1000xbf16>, vector<8x1000xbf16> -> vector<24x1000xbf16>
    %c6 = arith.constant 6 : index
    %c0_60 = arith.constant 0 : index
    %c0_61 = arith.constant 0 : index
    %74 = vector.load %arg2[%c6, %c0_60, %c0_61] : memref<9x8x24xbf16, #tpu.memory_space<vmem>>, vector<1x8x24xbf16>
    %75 = vector.shape_cast %74 : vector<1x8x24xbf16> to vector<8x24xbf16>
    %cst_62 = arith.constant dense<0.000000e+00> : vector<8x1000xf32>
    %76 = tpu.matmul %75, %73, %cst_62 {dimension_numbers = #tpu.dot_dimension_numbers<[1], [0], [0], [1], [0, 0, 1, 1], [], []>} : vector<8x24xbf16>, vector<24x1000xbf16>, vector<8x1000xf32> -> vector<8x1000xf32>
    %77 = arith.addf %66, %76 : vector<8x1000xf32>
    %c0_63 = arith.constant 0 : index
    %c0_64 = arith.constant 0 : index
    %c227 = arith.constant 227 : index
    %78 = vector.load %arg1[%c0_63, %c0_64, %c227] : memref<1x8x1256xbf16, #tpu.memory_space<vmem>>, vector<1x8x1000xbf16>
    %79 = vector.shape_cast %78 : vector<1x8x1000xbf16> to vector<8x1000xbf16>
    %c0_65 = arith.constant 0 : index
    %c0_66 = arith.constant 0 : index
    %c228 = arith.constant 228 : index
    %80 = vector.load %arg1[%c0_65, %c0_66, %c228] : memref<1x8x1256xbf16, #tpu.memory_space<vmem>>, vector<1x8x1000xbf16>
    %81 = vector.shape_cast %80 : vector<1x8x1000xbf16> to vector<8x1000xbf16>
    %c0_67 = arith.constant 0 : index
    %c0_68 = arith.constant 0 : index
    %c229 = arith.constant 229 : index
    %82 = vector.load %arg1[%c0_67, %c0_68, %c229] : memref<1x8x1256xbf16, #tpu.memory_space<vmem>>, vector<1x8x1000xbf16>
    %83 = vector.shape_cast %82 : vector<1x8x1000xbf16> to vector<8x1000xbf16>
    %84 = tpu.concatenate %79, %81, %83 in 0 : vector<8x1000xbf16>, vector<8x1000xbf16>, vector<8x1000xbf16> -> vector<24x1000xbf16>
    %c7 = arith.constant 7 : index
    %c0_69 = arith.constant 0 : index
    %c0_70 = arith.constant 0 : index
    %85 = vector.load %arg2[%c7, %c0_69, %c0_70] : memref<9x8x24xbf16, #tpu.memory_space<vmem>>, vector<1x8x24xbf16>
    %86 = vector.shape_cast %85 : vector<1x8x24xbf16> to vector<8x24xbf16>
    %cst_71 = arith.constant dense<0.000000e+00> : vector<8x1000xf32>
    %87 = tpu.matmul %86, %84, %cst_71 {dimension_numbers = #tpu.dot_dimension_numbers<[1], [0], [0], [1], [0, 0, 1, 1], [], []>} : vector<8x24xbf16>, vector<24x1000xbf16>, vector<8x1000xf32> -> vector<8x1000xf32>
    %88 = arith.addf %77, %87 : vector<8x1000xf32>
    %c0_72 = arith.constant 0 : index
    %c0_73 = arith.constant 0 : index
    %c237 = arith.constant 237 : index
    %89 = vector.load %arg1[%c0_72, %c0_73, %c237] : memref<1x8x1256xbf16, #tpu.memory_space<vmem>>, vector<1x8x1000xbf16>
    %90 = vector.shape_cast %89 : vector<1x8x1000xbf16> to vector<8x1000xbf16>
    %c0_74 = arith.constant 0 : index
    %c0_75 = arith.constant 0 : index
    %c238 = arith.constant 238 : index
    %91 = vector.load %arg1[%c0_74, %c0_75, %c238] : memref<1x8x1256xbf16, #tpu.memory_space<vmem>>, vector<1x8x1000xbf16>
    %92 = vector.shape_cast %91 : vector<1x8x1000xbf16> to vector<8x1000xbf16>
    %c0_76 = arith.constant 0 : index
    %c0_77 = arith.constant 0 : index
    %c239 = arith.constant 239 : index
    %93 = vector.load %arg1[%c0_76, %c0_77, %c239] : memref<1x8x1256xbf16, #tpu.memory_space<vmem>>, vector<1x8x1000xbf16>
    %94 = vector.shape_cast %93 : vector<1x8x1000xbf16> to vector<8x1000xbf16>
    %95 = tpu.concatenate %90, %92, %94 in 0 : vector<8x1000xbf16>, vector<8x1000xbf16>, vector<8x1000xbf16> -> vector<24x1000xbf16>
    %c8 = arith.constant 8 : index
    %c0_78 = arith.constant 0 : index
    %c0_79 = arith.constant 0 : index
    %96 = vector.load %arg2[%c8, %c0_78, %c0_79] : memref<9x8x24xbf16, #tpu.memory_space<vmem>>, vector<1x8x24xbf16>
    %97 = vector.shape_cast %96 : vector<1x8x24xbf16> to vector<8x24xbf16>
    %cst_80 = arith.constant dense<0.000000e+00> : vector<8x1000xf32>
    %98 = tpu.matmul %97, %95, %cst_80 {dimension_numbers = #tpu.dot_dimension_numbers<[1], [0], [0], [1], [0, 0, 1, 1], [], []>} : vector<8x24xbf16>, vector<24x1000xbf16>, vector<8x1000xf32> -> vector<8x1000xf32>
    %99 = arith.addf %88, %98 : vector<8x1000xf32>
    %c0_81 = arith.constant 0 : index
    %c0_82 = arith.constant 0 : index
    %100 = vector.load %arg3[%c0_81, %c0_82] : memref<8x1xf32, #tpu.memory_space<vmem>>, vector<8x1xf32>
    %101 = vector.broadcast %100 : vector<8x1xf32> to vector<8x1000xf32>
    %102 = arith.addf %99, %101 : vector<8x1000xf32>
    %cst_83 = arith.constant 0.000000e+00 : f32
    %103 = vector.broadcast %cst_83 : f32 to vector<8x1000xf32>
    %104 = arith.maximumf %102, %103 : vector<8x1000xf32>
    %c0_84 = arith.constant 0 : index
    %c0_85 = arith.constant 0 : index
    %105 = vector.load %arg6[%c0_84, %c0_85] : memref<1x1000xf32, #tpu.memory_space<vmem>>, vector<1x1000xf32>
    %106 = vector.broadcast %105 : vector<1x1000xf32> to vector<8x1000xf32>
    %107 = arith.mulf %104, %106 : vector<8x1000xf32>
    %108 = arith.truncf %107 : vector<8x1000xf32> to vector<8x1000xbf16>
    %cst_86 = arith.constant 0.000000e+00 : bf16
    %109 = vector.broadcast %cst_86 : bf16 to vector<8x128xbf16>
    %c0_87 = arith.constant 0 : index
    %c0_88 = arith.constant 0 : index
    %110 = vector.load %arg8[%c0_87, %c0_88] : memref<8x1256xbf16, #tpu.memory_space<vmem>>, vector<8x128xbf16>
    tpu.vector_store %arg8[%c0_87, %c0_88], %109 {strides = array<i32>} : memref<8x1256xbf16, #tpu.memory_space<vmem>>, vector<8x128xbf16>,
    %cst_89 = arith.constant 0.000000e+00 : bf16
    %111 = vector.broadcast %cst_89 : bf16 to vector<8x128xbf16>
    %c0_90 = arith.constant 0 : index
    %c1128 = arith.constant 1128 : index
    %112 = vector.load %arg8[%c0_90, %c1128] : memref<8x1256xbf16, #tpu.memory_space<vmem>>, vector<8x128xbf16>
    tpu.vector_store %arg8[%c0_90, %c1128], %111 {strides = array<i32>} : memref<8x1256xbf16, #tpu.memory_space<vmem>>, vector<8x128xbf16>,
    %c0_91 = arith.constant 0 : index
    %c128_92 = arith.constant 128 : index
    %113 = vector.load %arg8[%c0_91, %c128_92] : memref<8x1256xbf16, #tpu.memory_space<vmem>>, vector<8x1000xbf16>
    tpu.vector_store %arg8[%c0_91, %c128_92], %108 {strides = array<i32>} : memref<8x1256xbf16, #tpu.memory_space<vmem>>, vector<8x1000xbf16>,
    %cst_93 = arith.constant 0.000000e+00 : f32
    %114 = vector.broadcast %cst_93 : f32 to vector<4x1000xf32>
    %c0_94 = arith.constant 0 : index
    %c17_95 = arith.constant 17 : index
    %115 = vector.load %arg8[%c0_94, %c17_95] : memref<8x1256xbf16, #tpu.memory_space<vmem>>, vector<8x1000xbf16>
    %c0_96 = arith.constant 0 : index
    %c18_97 = arith.constant 18 : index
    %116 = vector.load %arg8[%c0_96, %c18_97] : memref<8x1256xbf16, #tpu.memory_space<vmem>>, vector<8x1000xbf16>
    %c0_98 = arith.constant 0 : index
    %c19_99 = arith.constant 19 : index
    %117 = vector.load %arg8[%c0_98, %c19_99] : memref<8x1256xbf16, #tpu.memory_space<vmem>>, vector<8x1000xbf16>
    %118 = tpu.concatenate %115, %116, %117 in 0 : vector<8x1000xbf16>, vector<8x1000xbf16>, vector<8x1000xbf16> -> vector<24x1000xbf16>
    %c0_100 = arith.constant 0 : index
    %c0_101 = arith.constant 0 : index
    %c0_102 = arith.constant 0 : index
    %119 = vector.load %arg4[%c0_100, %c0_101, %c0_102] : memref<9x4x24xbf16, #tpu.memory_space<vmem>>, vector<1x4x24xbf16>
    %120 = vector.shape_cast %119 : vector<1x4x24xbf16> to vector<4x24xbf16>
    %cst_103 = arith.constant dense<0.000000e+00> : vector<4x1000xf32>
    %121 = tpu.matmul %120, %118, %cst_103 {dimension_numbers = #tpu.dot_dimension_numbers<[1], [0], [0], [1], [0, 0, 1, 1], [], []>} : vector<4x24xbf16>, vector<24x1000xbf16>, vector<4x1000xf32> -> vector<4x1000xf32>
    %122 = arith.addf %114, %121 : vector<4x1000xf32>
    %c0_104 = arith.constant 0 : index
    %c27_105 = arith.constant 27 : index
    %123 = vector.load %arg8[%c0_104, %c27_105] : memref<8x1256xbf16, #tpu.memory_space<vmem>>, vector<8x1000xbf16>
    %c0_106 = arith.constant 0 : index
    %c28_107 = arith.constant 28 : index
    %124 = vector.load %arg8[%c0_106, %c28_107] : memref<8x1256xbf16, #tpu.memory_space<vmem>>, vector<8x1000xbf16>
    %c0_108 = arith.constant 0 : index
    %c29_109 = arith.constant 29 : index
    %125 = vector.load %arg8[%c0_108, %c29_109] : memref<8x1256xbf16, #tpu.memory_space<vmem>>, vector<8x1000xbf16>
    %126 = tpu.concatenate %123, %124, %125 in 0 : vector<8x1000xbf16>, vector<8x1000xbf16>, vector<8x1000xbf16> -> vector<24x1000xbf16>
    %c1_110 = arith.constant 1 : index
    %c0_111 = arith.constant 0 : index
    %c0_112 = arith.constant 0 : index
    %127 = vector.load %arg4[%c1_110, %c0_111, %c0_112] : memref<9x4x24xbf16, #tpu.memory_space<vmem>>, vector<1x4x24xbf16>
    %128 = vector.shape_cast %127 : vector<1x4x24xbf16> to vector<4x24xbf16>
    %cst_113 = arith.constant dense<0.000000e+00> : vector<4x1000xf32>
    %129 = tpu.matmul %128, %126, %cst_113 {dimension_numbers = #tpu.dot_dimension_numbers<[1], [0], [0], [1], [0, 0, 1, 1], [], []>} : vector<4x24xbf16>, vector<24x1000xbf16>, vector<4x1000xf32> -> vector<4x1000xf32>
    %130 = arith.addf %122, %129 : vector<4x1000xf32>
    %c0_114 = arith.constant 0 : index
    %c37_115 = arith.constant 37 : index
    %131 = vector.load %arg8[%c0_114, %c37_115] : memref<8x1256xbf16, #tpu.memory_space<vmem>>, vector<8x1000xbf16>
    %c0_116 = arith.constant 0 : index
    %c38_117 = arith.constant 38 : index
    %132 = vector.load %arg8[%c0_116, %c38_117] : memref<8x1256xbf16, #tpu.memory_space<vmem>>, vector<8x1000xbf16>
    %c0_118 = arith.constant 0 : index
    %c39_119 = arith.constant 39 : index
    %133 = vector.load %arg8[%c0_118, %c39_119] : memref<8x1256xbf16, #tpu.memory_space<vmem>>, vector<8x1000xbf16>
    %134 = tpu.concatenate %131, %132, %133 in 0 : vector<8x1000xbf16>, vector<8x1000xbf16>, vector<8x1000xbf16> -> vector<24x1000xbf16>
    %c2_120 = arith.constant 2 : index
    %c0_121 = arith.constant 0 : index
    %c0_122 = arith.constant 0 : index
    %135 = vector.load %arg4[%c2_120, %c0_121, %c0_122] : memref<9x4x24xbf16, #tpu.memory_space<vmem>>, vector<1x4x24xbf16>
    %136 = vector.shape_cast %135 : vector<1x4x24xbf16> to vector<4x24xbf16>
    %cst_123 = arith.constant dense<0.000000e+00> : vector<4x1000xf32>
    %137 = tpu.matmul %136, %134, %cst_123 {dimension_numbers = #tpu.dot_dimension_numbers<[1], [0], [0], [1], [0, 0, 1, 1], [], []>} : vector<4x24xbf16>, vector<24x1000xbf16>, vector<4x1000xf32> -> vector<4x1000xf32>
    %138 = arith.addf %130, %137 : vector<4x1000xf32>
    %c0_124 = arith.constant 0 : index
    %c117_125 = arith.constant 117 : index
    %139 = vector.load %arg8[%c0_124, %c117_125] : memref<8x1256xbf16, #tpu.memory_space<vmem>>, vector<8x1000xbf16>
    %c0_126 = arith.constant 0 : index
    %c118_127 = arith.constant 118 : index
    %140 = vector.load %arg8[%c0_126, %c118_127] : memref<8x1256xbf16, #tpu.memory_space<vmem>>, vector<8x1000xbf16>
    %c0_128 = arith.constant 0 : index
    %c119_129 = arith.constant 119 : index
    %141 = vector.load %arg8[%c0_128, %c119_129] : memref<8x1256xbf16, #tpu.memory_space<vmem>>, vector<8x1000xbf16>
    %142 = tpu.concatenate %139, %140, %141 in 0 : vector<8x1000xbf16>, vector<8x1000xbf16>, vector<8x1000xbf16> -> vector<24x1000xbf16>
    %c3_130 = arith.constant 3 : index
    %c0_131 = arith.constant 0 : index
    %c0_132 = arith.constant 0 : index
    %143 = vector.load %arg4[%c3_130, %c0_131, %c0_132] : memref<9x4x24xbf16, #tpu.memory_space<vmem>>, vector<1x4x24xbf16>
    %144 = vector.shape_cast %143 : vector<1x4x24xbf16> to vector<4x24xbf16>
    %cst_133 = arith.constant dense<0.000000e+00> : vector<4x1000xf32>
    %145 = tpu.matmul %144, %142, %cst_133 {dimension_numbers = #tpu.dot_dimension_numbers<[1], [0], [0], [1], [0, 0, 1, 1], [], []>} : vector<4x24xbf16>, vector<24x1000xbf16>, vector<4x1000xf32> -> vector<4x1000xf32>
    %146 = arith.addf %138, %145 : vector<4x1000xf32>
    %c0_134 = arith.constant 0 : index
    %c127_135 = arith.constant 127 : index
    %147 = vector.load %arg8[%c0_134, %c127_135] : memref<8x1256xbf16, #tpu.memory_space<vmem>>, vector<8x1000xbf16>
    %c0_136 = arith.constant 0 : index
    %c128_137 = arith.constant 128 : index
    %148 = vector.load %arg8[%c0_136, %c128_137] : memref<8x1256xbf16, #tpu.memory_space<vmem>>, vector<8x1000xbf16>
    %c0_138 = arith.constant 0 : index
    %c129_139 = arith.constant 129 : index
    %149 = vector.load %arg8[%c0_138, %c129_139] : memref<8x1256xbf16, #tpu.memory_space<vmem>>, vector<8x1000xbf16>
    %150 = tpu.concatenate %147, %148, %149 in 0 : vector<8x1000xbf16>, vector<8x1000xbf16>, vector<8x1000xbf16> -> vector<24x1000xbf16>
    %c4_140 = arith.constant 4 : index
    %c0_141 = arith.constant 0 : index
    %c0_142 = arith.constant 0 : index
    %151 = vector.load %arg4[%c4_140, %c0_141, %c0_142] : memref<9x4x24xbf16, #tpu.memory_space<vmem>>, vector<1x4x24xbf16>
    %152 = vector.shape_cast %151 : vector<1x4x24xbf16> to vector<4x24xbf16>
    %cst_143 = arith.constant dense<0.000000e+00> : vector<4x1000xf32>
    %153 = tpu.matmul %152, %150, %cst_143 {dimension_numbers = #tpu.dot_dimension_numbers<[1], [0], [0], [1], [0, 0, 1, 1], [], []>} : vector<4x24xbf16>, vector<24x1000xbf16>, vector<4x1000xf32> -> vector<4x1000xf32>
    %154 = arith.addf %146, %153 : vector<4x1000xf32>
    %c0_144 = arith.constant 0 : index
    %c137_145 = arith.constant 137 : index
    %155 = vector.load %arg8[%c0_144, %c137_145] : memref<8x1256xbf16, #tpu.memory_space<vmem>>, vector<8x1000xbf16>
    %c0_146 = arith.constant 0 : index
    %c138_147 = arith.constant 138 : index
    %156 = vector.load %arg8[%c0_146, %c138_147] : memref<8x1256xbf16, #tpu.memory_space<vmem>>, vector<8x1000xbf16>
    %c0_148 = arith.constant 0 : index
    %c139_149 = arith.constant 139 : index
    %157 = vector.load %arg8[%c0_148, %c139_149] : memref<8x1256xbf16, #tpu.memory_space<vmem>>, vector<8x1000xbf16>
    %158 = tpu.concatenate %155, %156, %157 in 0 : vector<8x1000xbf16>, vector<8x1000xbf16>, vector<8x1000xbf16> -> vector<24x1000xbf16>
    %c5_150 = arith.constant 5 : index
    %c0_151 = arith.constant 0 : index
    %c0_152 = arith.constant 0 : index
    %159 = vector.load %arg4[%c5_150, %c0_151, %c0_152] : memref<9x4x24xbf16, #tpu.memory_space<vmem>>, vector<1x4x24xbf16>
    %160 = vector.shape_cast %159 : vector<1x4x24xbf16> to vector<4x24xbf16>
    %cst_153 = arith.constant dense<0.000000e+00> : vector<4x1000xf32>
    %161 = tpu.matmul %160, %158, %cst_153 {dimension_numbers = #tpu.dot_dimension_numbers<[1], [0], [0], [1], [0, 0, 1, 1], [], []>} : vector<4x24xbf16>, vector<24x1000xbf16>, vector<4x1000xf32> -> vector<4x1000xf32>
    %162 = arith.addf %154, %161 : vector<4x1000xf32>
    %c0_154 = arith.constant 0 : index
    %c217_155 = arith.constant 217 : index
    %163 = vector.load %arg8[%c0_154, %c217_155] : memref<8x1256xbf16, #tpu.memory_space<vmem>>, vector<8x1000xbf16>
    %c0_156 = arith.constant 0 : index
    %c218_157 = arith.constant 218 : index
    %164 = vector.load %arg8[%c0_156, %c218_157] : memref<8x1256xbf16, #tpu.memory_space<vmem>>, vector<8x1000xbf16>
    %c0_158 = arith.constant 0 : index
    %c219_159 = arith.constant 219 : index
    %165 = vector.load %arg8[%c0_158, %c219_159] : memref<8x1256xbf16, #tpu.memory_space<vmem>>, vector<8x1000xbf16>
    %166 = tpu.concatenate %163, %164, %165 in 0 : vector<8x1000xbf16>, vector<8x1000xbf16>, vector<8x1000xbf16> -> vector<24x1000xbf16>
    %c6_160 = arith.constant 6 : index
    %c0_161 = arith.constant 0 : index
    %c0_162 = arith.constant 0 : index
    %167 = vector.load %arg4[%c6_160, %c0_161, %c0_162] : memref<9x4x24xbf16, #tpu.memory_space<vmem>>, vector<1x4x24xbf16>
    %168 = vector.shape_cast %167 : vector<1x4x24xbf16> to vector<4x24xbf16>
    %cst_163 = arith.constant dense<0.000000e+00> : vector<4x1000xf32>
    %169 = tpu.matmul %168, %166, %cst_163 {dimension_numbers = #tpu.dot_dimension_numbers<[1], [0], [0], [1], [0, 0, 1, 1], [], []>} : vector<4x24xbf16>, vector<24x1000xbf16>, vector<4x1000xf32> -> vector<4x1000xf32>
    %170 = arith.addf %162, %169 : vector<4x1000xf32>
    %c0_164 = arith.constant 0 : index
    %c227_165 = arith.constant 227 : index
    %171 = vector.load %arg8[%c0_164, %c227_165] : memref<8x1256xbf16, #tpu.memory_space<vmem>>, vector<8x1000xbf16>
    %c0_166 = arith.constant 0 : index
    %c228_167 = arith.constant 228 : index
    %172 = vector.load %arg8[%c0_166, %c228_167] : memref<8x1256xbf16, #tpu.memory_space<vmem>>, vector<8x1000xbf16>
    %c0_168 = arith.constant 0 : index
    %c229_169 = arith.constant 229 : index
    %173 = vector.load %arg8[%c0_168, %c229_169] : memref<8x1256xbf16, #tpu.memory_space<vmem>>, vector<8x1000xbf16>
    %174 = tpu.concatenate %171, %172, %173 in 0 : vector<8x1000xbf16>, vector<8x1000xbf16>, vector<8x1000xbf16> -> vector<24x1000xbf16>
    %c7_170 = arith.constant 7 : index
    %c0_171 = arith.constant 0 : index
    %c0_172 = arith.constant 0 : index
    %175 = vector.load %arg4[%c7_170, %c0_171, %c0_172] : memref<9x4x24xbf16, #tpu.memory_space<vmem>>, vector<1x4x24xbf16>
    %176 = vector.shape_cast %175 : vector<1x4x24xbf16> to vector<4x24xbf16>
    %cst_173 = arith.constant dense<0.000000e+00> : vector<4x1000xf32>
    %177 = tpu.matmul %176, %174, %cst_173 {dimension_numbers = #tpu.dot_dimension_numbers<[1], [0], [0], [1], [0, 0, 1, 1], [], []>} : vector<4x24xbf16>, vector<24x1000xbf16>, vector<4x1000xf32> -> vector<4x1000xf32>
    %178 = arith.addf %170, %177 : vector<4x1000xf32>
    %c0_174 = arith.constant 0 : index
    %c237_175 = arith.constant 237 : index
    %179 = vector.load %arg8[%c0_174, %c237_175] : memref<8x1256xbf16, #tpu.memory_space<vmem>>, vector<8x1000xbf16>
    %c0_176 = arith.constant 0 : index
    %c238_177 = arith.constant 238 : index
    %180 = vector.load %arg8[%c0_176, %c238_177] : memref<8x1256xbf16, #tpu.memory_space<vmem>>, vector<8x1000xbf16>
    %c0_178 = arith.constant 0 : index
    %c239_179 = arith.constant 239 : index
    %181 = vector.load %arg8[%c0_178, %c239_179] : memref<8x1256xbf16, #tpu.memory_space<vmem>>, vector<8x1000xbf16>
    %182 = tpu.concatenate %179, %180, %181 in 0 : vector<8x1000xbf16>, vector<8x1000xbf16>, vector<8x1000xbf16> -> vector<24x1000xbf16>
    %c8_180 = arith.constant 8 : index
    %c0_181 = arith.constant 0 : index
    %c0_182 = arith.constant 0 : index
    %183 = vector.load %arg4[%c8_180, %c0_181, %c0_182] : memref<9x4x24xbf16, #tpu.memory_space<vmem>>, vector<1x4x24xbf16>
    %184 = vector.shape_cast %183 : vector<1x4x24xbf16> to vector<4x24xbf16>
    %cst_183 = arith.constant dense<0.000000e+00> : vector<4x1000xf32>
    %185 = tpu.matmul %184, %182, %cst_183 {dimension_numbers = #tpu.dot_dimension_numbers<[1], [0], [0], [1], [0, 0, 1, 1], [], []>} : vector<4x24xbf16>, vector<24x1000xbf16>, vector<4x1000xf32> -> vector<4x1000xf32>
    %186 = arith.addf %178, %185 : vector<4x1000xf32>
    %c0_184 = arith.constant 0 : index
    %c0_185 = arith.constant 0 : index
    %187 = vector.load %arg5[%c0_184, %c0_185] : memref<4x1xf32, #tpu.memory_space<vmem>>, vector<4x1xf32>
    %188 = vector.broadcast %187 : vector<4x1xf32> to vector<4x1000xf32>
    %189 = arith.addf %186, %188 : vector<4x1000xf32>
    %cst_186 = arith.constant 0.000000e+00 : f32
    %190 = vector.broadcast %cst_186 : f32 to vector<4x1000xf32>
    %191 = arith.maximumf %189, %190 : vector<4x1000xf32>
    %c0_187 = arith.constant 0 : index
    %c0_188 = arith.constant 0 : index
    %c0_189 = arith.constant 0 : index
    %192 = vector.load %arg7[%c0_187, %c0_188, %c0_189] : memref<1x4x1000xf32, #tpu.memory_space<vmem>>, vector<1x4x1000xf32>
    %193 = vector.shape_cast %192 : vector<1x4x1000xf32> to vector<4x1000xf32>
    %194 = vector.shape_cast %191 : vector<4x1000xf32> to vector<1x4x1000xf32>
    tpu.vector_store %arg7[%c0_187, %c0_188, %c0_189], %194 {strides = array<i32>} : memref<1x4x1000xf32, #tpu.memory_space<vmem>>, vector<1x4x1000xf32>,
    return
  }
  func.func @transform_0(%arg0: i32) -> (i32, i32, i32) {
    %c0_i32 = arith.constant 0 : i32
    %c0_i32_0 = arith.constant 0 : i32
    %c0_i32_1 = arith.constant 0 : i32
    return %arg0, %c0_i32, %c0_i32_0 : i32, i32, i32
  }
  func.func @transform_1(%arg0: i32) -> (i32, i32, i32) {
    %c0_i32 = arith.constant 0 : i32
    %c0_i32_0 = arith.constant 0 : i32
    %c0_i32_1 = arith.constant 0 : i32
    %c0_i32_2 = arith.constant 0 : i32
    return %c0_i32, %c0_i32_0, %c0_i32_1 : i32, i32, i32
  }
  func.func @transform_2(%arg0: i32) -> (i32, i32) {
    %c0_i32 = arith.constant 0 : i32
    %c0_i32_0 = arith.constant 0 : i32
    %c0_i32_1 = arith.constant 0 : i32
    return %c0_i32, %c0_i32_0 : i32, i32
  }
  func.func @transform_3(%arg0: i32) -> (i32, i32, i32) {
    %c0_i32 = arith.constant 0 : i32
    %c0_i32_0 = arith.constant 0 : i32
    %c0_i32_1 = arith.constant 0 : i32
    %c0_i32_2 = arith.constant 0 : i32
    return %c0_i32, %c0_i32_0, %c0_i32_1 : i32, i32, i32
  }
  func.func @transform_4(%arg0: i32) -> (i32, i32) {
    %c0_i32 = arith.constant 0 : i32
    %c0_i32_0 = arith.constant 0 : i32
    %c0_i32_1 = arith.constant 0 : i32
    return %c0_i32, %c0_i32_0 : i32, i32
  }
  func.func @transform_5(%arg0: i32) -> (i32, i32) {
    %c0_i32 = arith.constant 0 : i32
    %c0_i32_0 = arith.constant 0 : i32
    %c0_i32_1 = arith.constant 0 : i32
    return %c0_i32, %c0_i32_0 : i32, i32
  }
  func.func @transform_6(%arg0: i32) -> (i32, i32, i32) {
    %c0_i32 = arith.constant 0 : i32
    %c0_i32_0 = arith.constant 0 : i32
    %c0_i32_1 = arith.constant 0 : i32
    return %arg0, %c0_i32, %c0_i32_0 : i32, i32, i32
  }
}

</mosaic_0001>

<llo_original>
// kernel: tpu_custom_call.1
$region0: #{tpu_custom_call.1}
  #allocation0 [shape = 'u32[]', space=smem, size = 0x4, offset = 0x4, fixed_abs, tag = 'smem constant byte address 0x4 - core index']
  #allocation1 [shape = 'u32[144,128]{1,0:T(1,128)}', space=vmem, size = 0x12000, scoped, tag = 'internal scratch']
  #allocation2 [shape = 'bf16[8,1256]{1,0:T(8,128)(2,1)}', space=vmem, size = 0x5000, scoped, tag = 'scratch operand']
  %s0 = inlined_call_operand.hbm [shape: bf16[2,8,1256], index: 0, kind: input, shape index: {}]
  %s1 = inlined_call_operand.hbm [shape: bf16[9,8,24], index: 1, kind: input, shape index: {}]
  %s2 = inlined_call_operand.vmem [shape: f32[8,1], index: 2, kind: input, shape index: {}]
  %s3 = inlined_call_operand.vmem [shape: bf16[9,4,24], index: 3, kind: input, shape index: {}]
  %s4 = inlined_call_operand.vmem [shape: f32[4,1], index: 4, kind: input, shape index: {}]
  %s5 = inlined_call_operand.hbm [shape: f32[1,1000], index: 5, kind: input, shape index: {}]
  %s6 = inlined_call_operand.hbm [shape: f32[2,4,1000], index: 6, kind: output, shape index: {}]
  %s7 = sld [smem:[#allocation0]]
  $region69: #{tpu_custom_call.1} parent=0
    _
  %s9 = ssub.s32 1, %s7
  %s10 = scalar_select 0, %s9, %s7
  $region1: #{tpu_custom_call.1} parent=0
    #allocation3 [shape = 'u8[40960]{0}', space=vmem, size = 0xa000, scoped, tag = 'input window, operand 0']
    #allocation4 [shape = 's32[2]{0}', space=sflag, size = 0x8, scoped, tag = 'scoped memory for tpu_custom_call.1']
    #allocation5 [shape = 's32[2]{0}', space=sflag, size = 0x8, scoped, tag = 'scoped memory for tpu_custom_call.1']
    #allocation6 [shape = 'u8[18432]{0}', space=vmem, size = 0x4800, scoped, tag = 'input window, operand 1, single buffered']
    #allocation7 [shape = 's32[1]{0}', space=sflag, size = 0x4, scoped, tag = 'scoped memory for tpu_custom_call.1']
    #allocation8 [shape = 'u8[4096]{0}', space=vmem, size = 0x1000, scoped, tag = 'input window, operand 5, single buffered']
    #allocation9 [shape = 'u8[32768]{0}', space=vmem, size = 0x8000, scoped, tag = 'output window, operand 0']
    %11 = vsyncpa [#allocation4], 0
    %s12 = scalar_lea.sflag [#allocation4], 1
    %13 = vsyncpa %s12, 0
    %14 = vsyncpa [#allocation7], 0
    %15 = vsyncpa [#allocation5], 0
    %s16 = scalar_lea.sflag [#allocation5], 1
    %17 = vsyncpa %s16, 0
    loop: start=0, step=1, limit=4
    $region2: #{tpu_custom_call.1} parent=1 // loop_pre_header
      _
    $region3: #{tpu_custom_call.1} parent=1 // loop_header
      %s19 = sphi 0, %s23
      %p20 = scmp.ge.s32.totalorder %s19, 4
      %s29 = sphi 0, %s31
      %s32 = sphi 0, %s29
      %s33 = sphi 0, %s32
      %s49 = sphi 0, %s33
      %s53 = sphi 0, %s53
      %s55 = sphi 0, %s53
      %s56 = sphi 0, %s55
      %s70 = sphi 0, %s56
      %s74 = sphi 0, %s74
      %s76 = sphi 0, %s74
      %s77 = sphi 0, %s76
      %s91 = sphi 0, %s77
      %s95 = sphi 0, %s95
      %s97 = sphi 0, %s95
      %s98 = sphi 0, %s97
      %s112 = sphi 0, %s98
      %s116 = sphi 0, %s116
      %s118 = sphi 0, %s116
      %s119 = sphi 0, %s118
      %s133 = sphi 0, %s119
      %s137 = sphi 0, %s137
      %s139 = sphi 0, %s137
      %s140 = sphi 0, %s139
      %s154 = sphi 0, %s140
      %s160 = sphi 0, %s162
      %s163 = sphi 0, %s160
      %s164 = sphi 0, %s163
      %s180 = sphi 0, %s164
    $region4: #{tpu_custom_call.1} parent=1 // loop_header_branch
      %22 = sbr.rel (%p20) target = $region8
    $region5: #{tpu_custom_call.1} parent=1 // loop_body
      %s24 = ssub.s32 %s19, 1
      %s25 = ssub.s32 %s19, 2
      %s26 = sadd.s32 %s19, 1
      %s27 = ssub.s32 %s19, %s26
      %p28 = scmp.eq.s32.totalorder %s27, 0
      %s30 = sadd.s32 %s29, 1
      %s31 = scalar_select %p28, %s29, %s30
      %p34 = pneg %p28
      %p35 = scmp.eq.s32.totalorder %s19, 1
      %p36 = por %p34, %p35
      %p37 = scmp.ne.s32.totalorder %s29, %s32
      %p38 = scmp.eq.s32.totalorder %s19, 0
      %p39 = por %p37, %p38
      %p40 = scmp.ne.s32.totalorder %s29, %s32
      %p41 = scmp.eq.s32.totalorder %s24, 1
      %p42 = por %p40, %p41
      %p43 = scmp.ne.s32.totalorder %s32, %s33
      %p44 = scmp.eq.s32.totalorder %s24, 0
      %p45 = por %p43, %p44
      %p46 = scmp.ne.s32.totalorder %s32, %s33
      %p47 = scmp.eq.s32.totalorder %s25, 1
      %p48 = por %p46, %p47
      %p50 = scmp.ne.s32.totalorder %s33, %s49
      %p51 = scmp.eq.s32.totalorder %s25, 0
      %p52 = por %p50, %p51
      %s54 = sadd.s32 %s53, 1
      %p57 = scmp.eq.s32.totalorder %s19, 1
      %p58 = scmp.ne.s32.totalorder %s53, %s55
      %p59 = scmp.eq.s32.totalorder %s19, 0
      %p60 = por %p58, %p59
      %p61 = scmp.ne.s32.totalorder %s53, %s55
      %p62 = scmp.eq.s32.totalorder %s24, 1
      %p63 = por %p61, %p62
      %p64 = scmp.ne.s32.totalorder %s55, %s56
      %p65 = scmp.eq.s32.totalorder %s24, 0
      %p66 = por %p64, %p65
      %p67 = scmp.ne.s32.totalorder %s55, %s56
      %p68 = scmp.eq.s32.totalorder %s25, 1
      %p69 = por %p67, %p68
      %p71 = scmp.ne.s32.totalorder %s56, %s70
      %p72 = scmp.eq.s32.totalorder %s25, 0
      %p73 = por %p71, %p72
      %s75 = sadd.s32 %s74, 1
      %p78 = scmp.eq.s32.totalorder %s19, 1
      %p79 = scmp.ne.s32.totalorder %s74, %s76
      %p80 = scmp.eq.s32.totalorder %s19, 0
      %p81 = por %p79, %p80
      %p82 = scmp.ne.s32.totalorder %s74, %s76
      %p83 = scmp.eq.s32.totalorder %s24, 1
      %p84 = por %p82, %p83
      %p85 = scmp.ne.s32.totalorder %s76, %s77
      %p86 = scmp.eq.s32.totalorder %s24, 0
      %p87 = por %p85, %p86
      %p88 = scmp.ne.s32.totalorder %s76, %s77
      %p89 = scmp.eq.s32.totalorder %s25, 1
      %p90 = por %p88, %p89
      %p92 = scmp.ne.s32.totalorder %s77, %s91
      %p93 = scmp.eq.s32.totalorder %s25, 0
      %p94 = por %p92, %p93
      %s96 = sadd.s32 %s95, 1
      %p99 = scmp.eq.s32.totalorder %s19, 1
      %p100 = scmp.ne.s32.totalorder %s95, %s97
      %p101 = scmp.eq.s32.totalorder %s19, 0
      %p102 = por %p100, %p101
      %p103 = scmp.ne.s32.totalorder %s95, %s97
      %p104 = scmp.eq.s32.totalorder %s24, 1
      %p105 = por %p103, %p104
      %p106 = scmp.ne.s32.totalorder %s97, %s98
      %p107 = scmp.eq.s32.totalorder %s24, 0
      %p108 = por %p106, %p107
      %p109 = scmp.ne.s32.totalorder %s97, %s98
      %p110 = scmp.eq.s32.totalorder %s25, 1
      %p111 = por %p109, %p110
      %p113 = scmp.ne.s32.totalorder %s98, %s112
      %p114 = scmp.eq.s32.totalorder %s25, 0
      %p115 = por %p113, %p114
      %s117 = sadd.s32 %s116, 1
      %p120 = scmp.eq.s32.totalorder %s19, 1
      %p121 = scmp.ne.s32.totalorder %s116, %s118
      %p122 = scmp.eq.s32.totalorder %s19, 0
      %p123 = por %p121, %p122
      %p124 = scmp.ne.s32.totalorder %s116, %s118
      %p125 = scmp.eq.s32.totalorder %s24, 1
      %p126 = por %p124, %p125
      %p127 = scmp.ne.s32.totalorder %s118, %s119
      %p128 = scmp.eq.s32.totalorder %s24, 0
      %p129 = por %p127, %p128
      %p130 = scmp.ne.s32.totalorder %s118, %s119
      %p131 = scmp.eq.s32.totalorder %s25, 1
      %p132 = por %p130, %p131
      %p134 = scmp.ne.s32.totalorder %s119, %s133
      %p135 = scmp.eq.s32.totalorder %s25, 0
      %p136 = por %p134, %p135
      %s138 = sadd.s32 %s137, 1
      %p141 = scmp.eq.s32.totalorder %s19, 1
      %p142 = scmp.ne.s32.totalorder %s137, %s139
      %p143 = scmp.eq.s32.totalorder %s19, 0
      %p144 = por %p142, %p143
      %p145 = scmp.ne.s32.totalorder %s137, %s139
      %p146 = scmp.eq.s32.totalorder %s24, 1
      %p147 = por %p145, %p146
      %p148 = scmp.ne.s32.totalorder %s139, %s140
      %p149 = scmp.eq.s32.totalorder %s24, 0
      %p150 = por %p148, %p149
      %p151 = scmp.ne.s32.totalorder %s139, %s140
      %p152 = scmp.eq.s32.totalorder %s25, 1
      %p153 = por %p151, %p152
      %p155 = scmp.ne.s32.totalorder %s140, %s154
      %p156 = scmp.eq.s32.totalorder %s25, 0
      %p157 = por %p155, %p156
      %s158 = ssub.s32 %s19, %s26
      %p159 = scmp.eq.s32.totalorder %s158, 0
      %s161 = sadd.s32 %s160, 1
      %s162 = scalar_select %p159, %s160, %s161
      %p165 = pneg %p159
      %p166 = scmp.eq.s32.totalorder %s19, 1
      %p167 = por %p165, %p166
      %p168 = scmp.ne.s32.totalorder %s160, %s163
      %p169 = scmp.eq.s32.totalorder %s19, 0
      %p170 = por %p168, %p169
      %p171 = scmp.ne.s32.totalorder %s160, %s163
      %p172 = scmp.eq.s32.totalorder %s24, 1
      %p173 = por %p171, %p172
      %p174 = scmp.ne.s32.totalorder %s163, %s164
      %p175 = scmp.eq.s32.totalorder %s24, 0
      %p176 = por %p174, %p175
      %p177 = scmp.ne.s32.totalorder %s163, %s164
      %p178 = scmp.eq.s32.totalorder %s25, 1
      %p179 = por %p177, %p178
      %p181 = scmp.ne.s32.totalorder %s164, %s180
      %p182 = scmp.eq.s32.totalorder %s25, 0
      %p183 = por %p181, %p182
      %p184 = scmp.le.s32.totalorder 1, %s19
      %p185 = scmp.lt.s32.totalorder %s19, 3
      %p186 = pnand %p184, %p185
      %p187 = pneg %p186
      // Predicated region
      $region9: #{tpu_custom_call.1} parent=5 // pred_check
        _
      $region10: #{tpu_custom_call.1} parent=5 // pred_check_branch
        %189 = sbr.rel (%p186) target = $region12
      $region11: #{tpu_custom_call.1} parent=5 // pred_region
        %s190 = ssub.s32 %s19, 1
        // Predicated region
        $region13: #{tpu_custom_call.1} parent=11 // pred_check
          %p191 = pneg %p66
        $region14: #{tpu_custom_call.1} parent=11 // pred_check_branch
          %193 = sbr.rel (%p191) target = $region16
        $region15: #{tpu_custom_call.1} parent=11 // pred_region
          %s195 = ssub.s32 576, 576
          %196 = vsyncadd [#allocation7], %s195
          %s197 = sshll.u32 [#allocation6], 4
          %s198 = int_to_ptr.vmem [resolvable:$true] %s197
          %203 = dma.hbm_to_vmem [thread:$0]  %s1, 576, %s198, [#allocation7], 64, 64, 4
        $region16: #{tpu_custom_call.1} parent=11 // pred_fallthru
          _
        // Predicated region
        $region17: #{tpu_custom_call.1} parent=11 // pred_check
          %p204 = pneg %p87
        $region18: #{tpu_custom_call.1} parent=11 // pred_check_branch
          %206 = sbr.rel (%p204) target = $region20
        $region19: #{tpu_custom_call.1} parent=11 // pred_region
          _
        $region20: #{tpu_custom_call.1} parent=11 // pred_fallthru
          _
        // Predicated region
        $region21: #{tpu_custom_call.1} parent=11 // pred_check
          %p207 = pneg %p108
        $region22: #{tpu_custom_call.1} parent=11 // pred_check_branch
          %209 = sbr.rel (%p207) target = $region24
        $region23: #{tpu_custom_call.1} parent=11 // pred_region
          _
        $region24: #{tpu_custom_call.1} parent=11 // pred_fallthru
          _
        // Predicated region
        $region25: #{tpu_custom_call.1} parent=11 // pred_check
          %p210 = pneg %p129
        $region26: #{tpu_custom_call.1} parent=11 // pred_check_branch
          %212 = sbr.rel (%p210) target = $region28
        $region27: #{tpu_custom_call.1} parent=11 // pred_region
          _
        $region28: #{tpu_custom_call.1} parent=11 // pred_fallthru
          _
        // Predicated region
        $region29: #{tpu_custom_call.1} parent=11 // pred_check
          %p213 = pneg %p150
        $region30: #{tpu_custom_call.1} parent=11 // pred_check_branch
          %215 = sbr.rel (%p213) target = $region32
        $region31: #{tpu_custom_call.1} parent=11 // pred_region
          %s217 = ssub.s32 128, 128
          %218 = vsyncadd [#allocation7], %s217
          %s220 = sshll.u32 [#allocation8], 4
          %s221 = int_to_ptr.vmem [resolvable:$true] %s220
          %223 = dma.hbm_to_vmem [thread:$0]  %s5, 128, %s221, [#allocation7]
        $region32: #{tpu_custom_call.1} parent=11 // pred_fallthru
          _
      $region12: #{tpu_custom_call.1} parent=5 // pred_fallthru
        _
      %p224 = scmp.lt.s32.totalorder %s19, 2
      // Predicated region
      $region33: #{tpu_custom_call.1} parent=5 // pred_check
        %p225 = pneg %p224
      $region34: #{tpu_custom_call.1} parent=5 // pred_check_branch
        %227 = sbr.rel (%p225) target = $region36
      $region35: #{tpu_custom_call.1} parent=5 // pred_region
        // Predicated region
        $region37: #{tpu_custom_call.1} parent=35 // pred_check
          %p228 = pneg %p39
        $region38: #{tpu_custom_call.1} parent=35 // pred_check_branch
          %230 = sbr.rel (%p228) target = $region40
        $region39: #{tpu_custom_call.1} parent=35 // pred_region
          %s231 = sand.u32 %s29, 1
          %s232 = scalar_lea.sflag [#allocation4], %s231
          %s233 = sand.u32 %s29, 1
          %s234 = smul.addr %s233, 40
          %s235 = scalar_lea.vmem [#allocation3], %s234
          %s237 = ssub.s32 640, 640
          %238 = vsyncadd %s232, %s237
          %s239 = smul.addr %s19, 10
          %s240 = smul.addr %s239, 64
          %s241 = scalar_lea.hbm %s0, %s240
          %s243 = sshll.u32 %s235, 4
          %s244 = int_to_ptr.vmem [resolvable:$true] %s243
          %246 = dma.hbm_to_vmem [thread:$0]  %s241, 640, %s244, %s232
        $region40: #{tpu_custom_call.1} parent=35 // pred_fallthru
          _
      $region36: #{tpu_custom_call.1} parent=5 // pred_fallthru
        _
      %p247 = scmp.le.s32.totalorder 1, %s19
      %p248 = scmp.lt.s32.totalorder %s19, 3
      %p249 = pnand %p247, %p248
      %p250 = pneg %p249
      // Predicated region
      $region41: #{tpu_custom_call.1} parent=5 // pred_check
        _
      $region42: #{tpu_custom_call.1} parent=5 // pred_check_branch
        %252 = sbr.rel (%p249) target = $region44
      $region43: #{tpu_custom_call.1} parent=5 // pred_region
        %s253 = ssub.s32 %s19, 1
        %s254 = sand.u32 %s32, 1
        %s255 = scalar_lea.sflag [#allocation4], %s254
        %s256 = sand.u32 %s32, 1
        %s257 = smul.addr %s256, 40
        %s258 = scalar_lea.vmem [#allocation3], %s257
        // Predicated region
        $region45: #{tpu_custom_call.1} parent=43 // pred_check
          %p259 = pneg %p45
        $region46: #{tpu_custom_call.1} parent=43 // pred_check_branch
          %261 = sbr.rel (%p259) target = $region48
        $region47: #{tpu_custom_call.1} parent=43 // pred_region
          %262 = dma.done %s255, 640
        $region48: #{tpu_custom_call.1} parent=43 // pred_fallthru
          _
        // Predicated region
        $region49: #{tpu_custom_call.1} parent=43 // pred_check
          %p263 = pneg %p66
        $region50: #{tpu_custom_call.1} parent=43 // pred_check_branch
          %265 = sbr.rel (%p263) target = $region52
        $region51: #{tpu_custom_call.1} parent=43 // pred_region
          %266 = dma.done [#allocation7], 576
        $region52: #{tpu_custom_call.1} parent=43 // pred_fallthru
          _
        // Predicated region
        $region53: #{tpu_custom_call.1} parent=43 // pred_check
          %p267 = pneg %p150
        $region54: #{tpu_custom_call.1} parent=43 // pred_check_branch
          %269 = sbr.rel (%p267) target = $region56
        $region55: #{tpu_custom_call.1} parent=43 // pred_region
          %270 = dma.done [#allocation7], 128
        $region56: #{tpu_custom_call.1} parent=43 // pred_fallthru
          _
        %s271 = sand.u32 %s32, 1
        %s272 = scalar_lea.sflag [#allocation4], %s271
        %s273 = sand.u32 %s32, 1
        %s274 = smul.addr %s273, 40
        %s275 = scalar_lea.vmem [#allocation3], %s274
        %p276 = pneg %p45
        %p277 = pneg %p42
        %p278 = pneg %p66
        %p279 = pneg %p63
        %p280 = pneg %p87
        %p281 = pneg %p84
        %p282 = pneg %p108
        %p283 = pneg %p105
        %p284 = pneg %p129
        %p285 = pneg %p126
        %p286 = pneg %p150
        %p287 = pneg %p147
        %p288 = pneg %p176
        %p289 = pneg %p173
        %s290 = sand.u32 %s163, 1
        %s291 = scalar_lea.sflag [#allocation5], %s290
        %s292 = sand.u32 %s163, 1
        %s293 = smul.addr %s292, 32
        %s294 = scalar_lea.vmem [#allocation9], %s293
        %v296 = vld [vmem:[%s258] sm:$0xff]
        %v297 = vld [vmem:[%s258 + $0x8] sm:$0xff]
        %v298 = vld [vmem:[%s258 + $0x10] sm:$0xff]
        %v299 = vld [vmem:[%s258 + $0x18] sm:$0xff]
        %v304 = vunpack.c.l.b16 %v296
        %v305 = vunpack.c.h.b16 %v296
        %v306 = vunpack.c.l.b16 %v297
        %v307 = vunpack.c.h.b16 %v297
        %v308 = vunpack.c.l.b16 %v298
        %v309 = vunpack.c.h.b16 %v298
        %v310 = vunpack.c.l.b16 %v299
        %v311 = vunpack.c.h.b16 %v299
        %v312 = vpack.c.b16 %v304, %v304
        %v313 = vpack.c.b16 %v305, %v305
        %v314 = vpack.c.b16 %v306, %v306
        %v315 = vpack.c.b16 %v307, %v307
        %v316 = vpack.c.b16 %v308, %v308
        %v317 = vpack.c.b16 %v309, %v309
        %v318 = vpack.c.b16 %v310, %v310
        %v319 = vpack.c.b16 %v311, %v311
        %320 = vrot.lane.b32.xlu0 %v312, 127
        %v321 = vpop.permute.xlu0 %320
        %322 = vrot.lane.b32.xlu0 %v313, 127
        %v323 = vpop.permute.xlu0 %322
        %324 = vrot.lane.b32.xlu0 %v314, 127
        %v325 = vpop.permute.xlu0 %324
        %326 = vrot.lane.b32.xlu0 %v315, 127
        %v327 = vpop.permute.xlu0 %326
        %328 = vrot.lane.b32.xlu0 %v316, 127
        %v329 = vpop.permute.xlu0 %328
        %330 = vrot.lane.b32.xlu0 %v317, 127
        %v331 = vpop.permute.xlu0 %330
        %332 = vrot.lane.b32.xlu0 %v318, 127
        %v333 = vpop.permute.xlu0 %332
        %334 = vrot.lane.b32.xlu0 %v319, 127
        %v335 = vpop.permute.xlu0 %334
        %vm336 = vcmask 1039360
        %v337 = vsel %vm336, %v321, %v323
        %v338 = vsel %vm336, %v323, %v325
        %v339 = vsel %vm336, %v325, %v327
        %v340 = vsel %vm336, %v327, %v329
        %v341 = vsel %vm336, %v329, %v331
        %v342 = vsel %vm336, %v331, %v333
        %v343 = vsel %vm336, %v333, %v335
        %344 = vrot.lane.b32.xlu0 %v312, 126
        %v345 = vpop.permute.xlu0 %344
        %346 = vrot.lane.b32.xlu0 %v313, 126
        %v347 = vpop.permute.xlu0 %346
        %348 = vrot.lane.b32.xlu0 %v314, 126
        %v349 = vpop.permute.xlu0 %348
        %350 = vrot.lane.b32.xlu0 %v315, 126
        %v351 = vpop.permute.xlu0 %350
        %352 = vrot.lane.b32.xlu0 %v316, 126
        %v353 = vpop.permute.xlu0 %352
        %354 = vrot.lane.b32.xlu0 %v317, 126
        %v355 = vpop.permute.xlu0 %354
        %356 = vrot.lane.b32.xlu0 %v318, 126
        %v357 = vpop.permute.xlu0 %356
        %358 = vrot.lane.b32.xlu0 %v319, 126
        %v359 = vpop.permute.xlu0 %358
        %vm360 = vcmask 1031168
        %v361 = vsel %vm360, %v345, %v347
        %v362 = vsel %vm360, %v347, %v349
        %v363 = vsel %vm360, %v349, %v351
        %v364 = vsel %vm360, %v351, %v353
        %v365 = vsel %vm360, %v353, %v355
        %v366 = vsel %vm360, %v355, %v357
        %v367 = vsel %vm360, %v357, %v359
        %vm368 = vcmask 1043456
        %v371 = vsel %vm368, %v312, %v337
        %v374 = vsel %vm368, %v313, %v338
        %v377 = vsel %vm368, %v314, %v339
        %v380 = vsel %vm368, %v315, %v340
        %v383 = vsel %vm368, %v316, %v341
        %v386 = vsel %vm368, %v317, %v342
        %v389 = vsel %vm368, %v318, %v343
        %v392 = vsel %vm368, %v319, %v335
        %v393 = vld [vmem:[#allocation6] sm:$0xf]
        %v394 = vld [vmem:[%s258 + $0x20] sm:$0xf]
        %v396 = vunpack.c.l.b16 %v394
        %v397 = vpack.c.b16 %v396, %v396
        %398 = vrot.lane.b32.xlu0 %v397, 127
        %v399 = vpop.permute.xlu0 %398
        %v400 = vsel %vm336, %v335, %v399
        %401 = vrot.lane.b32.xlu0 %v397, 126
        %v402 = vpop.permute.xlu0 %401
        %v403 = vsel %vm360, %v359, %v402
        %v405 = vsel %vm368, %v319, %v400
        %v408 = vsel %vm368, %v397, %v399
        %s409 = scalar_lea.vmem [#allocation6], 4
        %v410 = vld [vmem:[%s409] sm:$0xf]
        %420 = vrot.lane.b32.xlu0 %v371, 101
        %v421 = vpop.permute.xlu0 %420
        %422 = vrot.lane.b32.xlu0 %v374, 101
        %v423 = vpop.permute.xlu0 %422
        %424 = vrot.lane.b32.xlu0 %v377, 101
        %v425 = vpop.permute.xlu0 %424
        %426 = vrot.lane.b32.xlu0 %v380, 101
        %v427 = vpop.permute.xlu0 %426
        %428 = vrot.lane.b32.xlu0 %v383, 101
        %v429 = vpop.permute.xlu0 %428
        %430 = vrot.lane.b32.xlu0 %v386, 101
        %v431 = vpop.permute.xlu0 %430
        %432 = vrot.lane.b32.xlu0 %v389, 101
        %v433 = vpop.permute.xlu0 %432
        %434 = vrot.lane.b32.xlu0 %v405, 101
        %v435 = vpop.permute.xlu0 %434
        %436 = vrot.lane.b32.xlu0 %v408, 101
        %v437 = vpop.permute.xlu0 %436
        %438 = vrot.lane.b32.xlu0 %v361, 101
        %v439 = vpop.permute.xlu0 %438
        %440 = vrot.lane.b32.xlu0 %v362, 101
        %v441 = vpop.permute.xlu0 %440
        %442 = vrot.lane.b32.xlu0 %v363, 101
        %v443 = vpop.permute.xlu0 %442
        %444 = vrot.lane.b32.xlu0 %v364, 101
        %v445 = vpop.permute.xlu0 %444
        %446 = vrot.lane.b32.xlu0 %v365, 101
        %v447 = vpop.permute.xlu0 %446
        %448 = vrot.lane.b32.xlu0 %v366, 101
        %v449 = vpop.permute.xlu0 %448
        %450 = vrot.lane.b32.xlu0 %v367, 101
        %v451 = vpop.permute.xlu0 %450
        %452 = vrot.lane.b32.xlu0 %v403, 101
        %v453 = vpop.permute.xlu0 %452
        %454 = vrot.lane.b32.xlu0 %v402, 101
        %v455 = vpop.permute.xlu0 %454
        %vm456 = vcmask 826368
        %v457 = vsel %vm456, %v421, %v423
        %v458 = vsel %vm456, %v423, %v425
        %v459 = vsel %vm456, %v425, %v427
        %v460 = vsel %vm456, %v427, %v429
        %v461 = vsel %vm456, %v429, %v431
        %v462 = vsel %vm456, %v431, %v433
        %v463 = vsel %vm456, %v433, %v435
        %v464 = vsel %vm456, %v435, %v437
        %v465 = vsel %vm456, %v439, %v441
        %v466 = vsel %vm456, %v441, %v443
        %v467 = vsel %vm456, %v443, %v445
        %v468 = vsel %vm456, %v445, %v447
        %v469 = vsel %vm456, %v447, %v449
        %v470 = vsel %vm456, %v449, %v451
        %v471 = vsel %vm456, %v451, %v453
        %v472 = vsel %vm456, %v453, %v455
        %vm481 = vcmask 195584
        %v483 = vsel %vm481, %v410, 0
        %v486 = vsel %vm368, %v465, 0
        %v489 = vsel %vm368, %v466, 0
        %v492 = vsel %vm368, %v467, 0
        %v495 = vsel %vm368, %v468, 0
        %v498 = vsel %vm368, %v469, 0
        %v501 = vsel %vm368, %v470, 0
        %v504 = vsel %vm368, %v471, 0
        %v507 = vsel %vm368, %v472, 0
        %509 = vmatprep.subr.bf16.mxu0 0
        %510 = vmatpush1.bf16.msra.mxu0 0
        %511 = vmatprep.subr.bf16.mxu0 0
        %512 = vmatpush1.bf16.msra.mxu0 0
        %513 = vmatprep.subr.bf16.mxu0 0
        %514 = vmatpush1.bf16.msra.mxu0 0
        %515 = vmatprep.subr.bf16.mxu0 0
        %516 = vmatpush1.bf16.msra.mxu0 0
        %517 = vmatprep.subr.bf16.mxu0 0
        %518 = vmatpush1.bf16.msra.mxu0 0
        %519 = vmatprep.subr.bf16.mxu0 0
        %520 = vmatpush1.bf16.msra.mxu0 0
        %521 = vmatprep.subr.bf16.mxu0 %v489
        %522 = vmatpush1.bf16.msra.mxu0 %v486
        %523 = vmatprep.subr.bf16.mxu0 %v458
        %524 = vmatpush1.bf16.msra.mxu0 %v457
        %525 = vmatprep.subr.bf16.mxu0 0
        %526 = vmatpush2.bf16.msra.mxu0 0
        %527 = vmatprep.subr.bf16.mxu0 0
        %528 = vmatpush2.bf16.msra.mxu0 0
        %529 = vmatprep.subr.bf16.mxu0 0
        %530 = vmatpush2.bf16.msra.mxu0 0
        %531 = vmatprep.subr.bf16.mxu0 0
        %532 = vmatpush2.bf16.msra.mxu0 0
        %533 = vmatprep.subr.bf16.mxu0 0
        %534 = vmatpush2.bf16.msra.mxu0 0
        %535 = vmatprep.subr.bf16.mxu0 0
        %536 = vmatpush2.bf16.msra.mxu0 0
        %537 = vmatprep.subr.bf16.mxu0 0
        %538 = vmatpush2.bf16.msra.mxu0 0
        %539 = vmatprep.subr.bf16.mxu0 0
        %540 = vmatpush2.bf16.msra.mxu0 0
        %541 = vmatprep.mubr.bf16.mxu0 0
        %542 = vmatmul.mubr.bf16.gmra.mxu0 %v483
        %v543 = vpop.f32.mrf.mxu0
        %v544 = vadd.f32 0.0, %v543
        %v545 = vpop.f32.mrf.mxu0
        %v546 = vadd.f32 0.0, %v545
        %v547 = vpop.f32.mrf.mxu0
        %v548 = vpop.f32.mrf.mxu0
        %549 = vdwg.mxu0
        %550 = vmatprep.subr.bf16.mxu0 0
        %551 = vmatpush1.bf16.msra.mxu0 0
        %552 = vmatprep.subr.bf16.mxu0 0
        %553 = vmatpush1.bf16.msra.mxu0 0
        %554 = vmatprep.subr.bf16.mxu0 0
        %555 = vmatpush1.bf16.msra.mxu0 0
        %556 = vmatprep.subr.bf16.mxu0 0
        %557 = vmatpush1.bf16.msra.mxu0 0
        %558 = vmatprep.subr.bf16.mxu0 0
        %559 = vmatpush1.bf16.msra.mxu0 0
        %560 = vmatprep.subr.bf16.mxu0 0
        %561 = vmatpush1.bf16.msra.mxu0 0
        %562 = vmatprep.subr.bf16.mxu0 %v495
        %563 = vmatpush1.bf16.msra.mxu0 %v492
        %564 = vmatprep.subr.bf16.mxu0 %v460
        %565 = vmatpush1.bf16.msra.mxu0 %v459
        %566 = vmatprep.subr.bf16.mxu0 0
        %567 = vmatpush2.bf16.msra.mxu0 0
        %568 = vmatprep.subr.bf16.mxu0 0
        %569 = vmatpush2.bf16.msra.mxu0 0
        %570 = vmatprep.subr.bf16.mxu0 0
        %571 = vmatpush2.bf16.msra.mxu0 0
        %572 = vmatprep.subr.bf16.mxu0 0
        %573 = vmatpush2.bf16.msra.mxu0 0
        %574 = vmatprep.subr.bf16.mxu0 0
        %575 = vmatpush2.bf16.msra.mxu0 0
        %576 = vmatprep.subr.bf16.mxu0 0
        %577 = vmatpush2.bf16.msra.mxu0 0
        %578 = vmatprep.subr.bf16.mxu0 0
        %579 = vmatpush2.bf16.msra.mxu0 0
        %580 = vmatprep.subr.bf16.mxu0 0
        %581 = vmatpush2.bf16.msra.mxu0 0
        %582 = vmatprep.mubr.bf16.mxu0 0
        %583 = vmatmul.mubr.bf16.gmra.mxu0 %v483
        %v584 = vpop.f32.mrf.mxu0
        %v585 = vadd.f32 0.0, %v584
        %v586 = vpop.f32.mrf.mxu0
        %v587 = vadd.f32 0.0, %v586
        %v588 = vpop.f32.mrf.mxu0
        %v589 = vpop.f32.mrf.mxu0
        %590 = vdwg.mxu0
        %591 = vmatprep.subr.bf16.mxu0 0
        %592 = vmatpush1.bf16.msra.mxu0 0
        %593 = vmatprep.subr.bf16.mxu0 0
        %594 = vmatpush1.bf16.msra.mxu0 0
        %595 = vmatprep.subr.bf16.mxu0 0
        %596 = vmatpush1.bf16.msra.mxu0 0
        %597 = vmatprep.subr.bf16.mxu0 0
        %598 = vmatpush1.bf16.msra.mxu0 0
        %599 = vmatprep.subr.bf16.mxu0 0
        %600 = vmatpush1.bf16.msra.mxu0 0
        %601 = vmatprep.subr.bf16.mxu0 0
        %602 = vmatpush1.bf16.msra.mxu0 0
        %603 = vmatprep.subr.bf16.mxu0 %v501
        %604 = vmatpush1.bf16.msra.mxu0 %v498
        %605 = vmatprep.subr.bf16.mxu0 %v462
        %606 = vmatpush1.bf16.msra.mxu0 %v461
        %607 = vmatprep.subr.bf16.mxu0 0
        %608 = vmatpush2.bf16.msra.mxu0 0
        %609 = vmatprep.subr.bf16.mxu0 0
        %610 = vmatpush2.bf16.msra.mxu0 0
        %611 = vmatprep.subr.bf16.mxu0 0
        %612 = vmatpush2.bf16.msra.mxu0 0
        %613 = vmatprep.subr.bf16.mxu0 0
        %614 = vmatpush2.bf16.msra.mxu0 0
        %615 = vmatprep.subr.bf16.mxu0 0
        %616 = vmatpush2.bf16.msra.mxu0 0
        %617 = vmatprep.subr.bf16.mxu0 0
        %618 = vmatpush2.bf16.msra.mxu0 0
        %619 = vmatprep.subr.bf16.mxu0 0
        %620 = vmatpush2.bf16.msra.mxu0 0
        %621 = vmatprep.subr.bf16.mxu0 0
        %622 = vmatpush2.bf16.msra.mxu0 0
        %623 = vmatprep.mubr.bf16.mxu0 0
        %624 = vmatmul.mubr.bf16.gmra.mxu0 %v483
        %v625 = vpop.f32.mrf.mxu0
        %v626 = vadd.f32 0.0, %v625
        %v627 = vpop.f32.mrf.mxu0
        %v628 = vadd.f32 0.0, %v627
        %v629 = vpop.f32.mrf.mxu0
        %v630 = vpop.f32.mrf.mxu0
        %631 = vdwg.mxu0
        %632 = vmatprep.subr.bf16.mxu0 0
        %633 = vmatpush1.bf16.msra.mxu0 0
        %634 = vmatprep.subr.bf16.mxu0 0
        %635 = vmatpush1.bf16.msra.mxu0 0
        %636 = vmatprep.subr.bf16.mxu0 0
        %637 = vmatpush1.bf16.msra.mxu0 0
        %638 = vmatprep.subr.bf16.mxu0 0
        %639 = vmatpush1.bf16.msra.mxu0 0
        %640 = vmatprep.subr.bf16.mxu0 0
        %641 = vmatpush1.bf16.msra.mxu0 0
        %642 = vmatprep.subr.bf16.mxu0 0
        %643 = vmatpush1.bf16.msra.mxu0 0
        %644 = vmatprep.subr.bf16.mxu0 %v507
        %645 = vmatpush1.bf16.msra.mxu0 %v504
        %646 = vmatprep.subr.bf16.mxu0 %v464
        %647 = vmatpush1.bf16.msra.mxu0 %v463
        %648 = vmatprep.subr.bf16.mxu0 0
        %649 = vmatpush2.bf16.msra.mxu0 0
        %650 = vmatprep.subr.bf16.mxu0 0
        %651 = vmatpush2.bf16.msra.mxu0 0
        %652 = vmatprep.subr.bf16.mxu0 0
        %653 = vmatpush2.bf16.msra.mxu0 0
        %654 = vmatprep.subr.bf16.mxu0 0
        %655 = vmatpush2.bf16.msra.mxu0 0
        %656 = vmatprep.subr.bf16.mxu0 0
        %657 = vmatpush2.bf16.msra.mxu0 0
        %658 = vmatprep.subr.bf16.mxu0 0
        %659 = vmatpush2.bf16.msra.mxu0 0
        %660 = vmatprep.subr.bf16.mxu0 0
        %661 = vmatpush2.bf16.msra.mxu0 0
        %662 = vmatprep.subr.bf16.mxu0 0
        %663 = vmatpush2.bf16.msra.mxu0 0
        %664 = vmatprep.mubr.bf16.mxu0 0
        %665 = vmatmul.mubr.bf16.gmra.mxu0 %v483
        %v666 = vpop.f32.mrf.mxu0
        %v667 = vadd.f32 0.0, %v666
        %v668 = vpop.f32.mrf.mxu0
        %v669 = vadd.f32 0.0, %v668
        %v670 = vpop.f32.mrf.mxu0
        %v671 = vpop.f32.mrf.mxu0
        %672 = vdwg.mxu0
        %674 = vrot.lane.b32.xlu0 %v371, 111
        %v675 = vpop.permute.xlu0 %674
        %676 = vrot.lane.b32.xlu0 %v374, 111
        %v677 = vpop.permute.xlu0 %676
        %678 = vrot.lane.b32.xlu0 %v377, 111
        %v679 = vpop.permute.xlu0 %678
        %680 = vrot.lane.b32.xlu0 %v380, 111
        %v681 = vpop.permute.xlu0 %680
        %682 = vrot.lane.b32.xlu0 %v383, 111
        %v683 = vpop.permute.xlu0 %682
        %684 = vrot.lane.b32.xlu0 %v386, 111
        %v685 = vpop.permute.xlu0 %684
        %686 = vrot.lane.b32.xlu0 %v389, 111
        %v687 = vpop.permute.xlu0 %686
        %688 = vrot.lane.b32.xlu0 %v392, 111
        %v689 = vpop.permute.xlu0 %688
        %690 = vrot.lane.b32.xlu0 %v361, 111
        %v691 = vpop.permute.xlu0 %690
        %692 = vrot.lane.b32.xlu0 %v362, 111
        %v693 = vpop.permute.xlu0 %692
        %694 = vrot.lane.b32.xlu0 %v363, 111
        %v695 = vpop.permute.xlu0 %694
        %696 = vrot.lane.b32.xlu0 %v364, 111
        %v697 = vpop.permute.xlu0 %696
        %698 = vrot.lane.b32.xlu0 %v365, 111
        %v699 = vpop.permute.xlu0 %698
        %700 = vrot.lane.b32.xlu0 %v366, 111
        %v701 = vpop.permute.xlu0 %700
        %702 = vrot.lane.b32.xlu0 %v367, 111
        %v703 = vpop.permute.xlu0 %702
        %704 = vrot.lane.b32.xlu0 %v359, 111
        %v705 = vpop.permute.xlu0 %704
        %vm706 = vcmask 908288
        %v707 = vsel %vm706, %v675, %v677
        %v708 = vsel %vm706, %v677, %v679
        %v709 = vsel %vm706, %v679, %v681
        %v710 = vsel %vm706, %v681, %v683
        %v711 = vsel %vm706, %v683, %v685
        %v712 = vsel %vm706, %v685, %v687
        %v713 = vsel %vm706, %v687, %v689
        %v714 = vsel %vm706, %v691, %v693
        %v715 = vsel %vm706, %v693, %v695
        %v716 = vsel %vm706, %v695, %v697
        %v717 = vsel %vm706, %v697, %v699
        %v718 = vsel %vm706, %v699, %v701
        %v719 = vsel %vm706, %v701, %v703
        %v720 = vsel %vm706, %v703, %v705
        %v730 = vsel %vm481, %v393, 0
        %v733 = vsel %vm368, %v714, 0
        %v736 = vsel %vm368, %v715, 0
        %v739 = vsel %vm368, %v716, 0
        %v742 = vsel %vm368, %v717, 0
        %v745 = vsel %vm368, %v718, 0
        %v748 = vsel %vm368, %v719, 0
        %v751 = vsel %vm368, %v720, 0
        %v754 = vsel %vm368, %v705, 0
        %756 = vmatprep.subr.bf16.mxu0 0
        %757 = vmatpush1.bf16.msra.mxu0 0
        %758 = vmatprep.subr.bf16.mxu0 0
        %759 = vmatpush1.bf16.msra.mxu0 0
        %760 = vmatprep.subr.bf16.mxu0 0
        %761 = vmatpush1.bf16.msra.mxu0 0
        %762 = vmatprep.subr.bf16.mxu0 0
        %763 = vmatpush1.bf16.msra.mxu0 0
        %764 = vmatprep.subr.bf16.mxu0 0
        %765 = vmatpush1.bf16.msra.mxu0 0
        %766 = vmatprep.subr.bf16.mxu0 0
        %767 = vmatpush1.bf16.msra.mxu0 0
        %768 = vmatprep.subr.bf16.mxu0 %v736
        %769 = vmatpush1.bf16.msra.mxu0 %v733
        %770 = vmatprep.subr.bf16.mxu0 %v708
        %771 = vmatpush1.bf16.msra.mxu0 %v707
        %772 = vmatprep.subr.bf16.mxu0 0
        %773 = vmatpush2.bf16.msra.mxu0 0
        %774 = vmatprep.subr.bf16.mxu0 0
        %775 = vmatpush2.bf16.msra.mxu0 0
        %776 = vmatprep.subr.bf16.mxu0 0
        %777 = vmatpush2.bf16.msra.mxu0 0
        %778 = vmatprep.subr.bf16.mxu0 0
        %779 = vmatpush2.bf16.msra.mxu0 0
        %780 = vmatprep.subr.bf16.mxu0 0
        %781 = vmatpush2.bf16.msra.mxu0 0
        %782 = vmatprep.subr.bf16.mxu0 0
        %783 = vmatpush2.bf16.msra.mxu0 0
        %784 = vmatprep.subr.bf16.mxu0 0
        %785 = vmatpush2.bf16.msra.mxu0 0
        %786 = vmatprep.subr.bf16.mxu0 0
        %787 = vmatpush2.bf16.msra.mxu0 0
        %788 = vmatprep.mubr.bf16.mxu0 0
        %789 = vmatmul.mubr.bf16.gmra.mxu0 %v730
        %v790 = vpop.f32.mrf.mxu0
        %v791 = vadd.f32 %v544, %v790
        %v792 = vpop.f32.mrf.mxu0
        %v793 = vadd.f32 %v546, %v792
        %v794 = vpop.f32.mrf.mxu0
        %v795 = vpop.f32.mrf.mxu0
        %796 = vdwg.mxu0
        %797 = vmatprep.subr.bf16.mxu0 0
        %798 = vmatpush1.bf16.msra.mxu0 0
        %799 = vmatprep.subr.bf16.mxu0 0
        %800 = vmatpush1.bf16.msra.mxu0 0
        %801 = vmatprep.subr.bf16.mxu0 0
        %802 = vmatpush1.bf16.msra.mxu0 0
        %803 = vmatprep.subr.bf16.mxu0 0
        %804 = vmatpush1.bf16.msra.mxu0 0
        %805 = vmatprep.subr.bf16.mxu0 0
        %806 = vmatpush1.bf16.msra.mxu0 0
        %807 = vmatprep.subr.bf16.mxu0 0
        %808 = vmatpush1.bf16.msra.mxu0 0
        %809 = vmatprep.subr.bf16.mxu0 %v742
        %810 = vmatpush1.bf16.msra.mxu0 %v739
        %811 = vmatprep.subr.bf16.mxu0 %v710
        %812 = vmatpush1.bf16.msra.mxu0 %v709
        %813 = vmatprep.subr.bf16.mxu0 0
        %814 = vmatpush2.bf16.msra.mxu0 0
        %815 = vmatprep.subr.bf16.mxu0 0
        %816 = vmatpush2.bf16.msra.mxu0 0
        %817 = vmatprep.subr.bf16.mxu0 0
        %818 = vmatpush2.bf16.msra.mxu0 0
        %819 = vmatprep.subr.bf16.mxu0 0
        %820 = vmatpush2.bf16.msra.mxu0 0
        %821 = vmatprep.subr.bf16.mxu0 0
        %822 = vmatpush2.bf16.msra.mxu0 0
        %823 = vmatprep.subr.bf16.mxu0 0
        %824 = vmatpush2.bf16.msra.mxu0 0
        %825 = vmatprep.subr.bf16.mxu0 0
        %826 = vmatpush2.bf16.msra.mxu0 0
        %827 = vmatprep.subr.bf16.mxu0 0
        %828 = vmatpush2.bf16.msra.mxu0 0
        %829 = vmatprep.mubr.bf16.mxu0 0
        %830 = vmatmul.mubr.bf16.gmra.mxu0 %v730
        %v831 = vpop.f32.mrf.mxu0
        %v832 = vadd.f32 %v585, %v831
        %v833 = vpop.f32.mrf.mxu0
        %v834 = vadd.f32 %v587, %v833
        %v835 = vpop.f32.mrf.mxu0
        %v836 = vpop.f32.mrf.mxu0
        %837 = vdwg.mxu0
        %838 = vmatprep.subr.bf16.mxu0 0
        %839 = vmatpush1.bf16.msra.mxu0 0
        %840 = vmatprep.subr.bf16.mxu0 0
        %841 = vmatpush1.bf16.msra.mxu0 0
        %842 = vmatprep.subr.bf16.mxu0 0
        %843 = vmatpush1.bf16.msra.mxu0 0
        %844 = vmatprep.subr.bf16.mxu0 0
        %845 = vmatpush1.bf16.msra.mxu0 0
        %846 = vmatprep.subr.bf16.mxu0 0
        %847 = vmatpush1.bf16.msra.mxu0 0
        %848 = vmatprep.subr.bf16.mxu0 0
        %849 = vmatpush1.bf16.msra.mxu0 0
        %850 = vmatprep.subr.bf16.mxu0 %v748
        %851 = vmatpush1.bf16.msra.mxu0 %v745
        %852 = vmatprep.subr.bf16.mxu0 %v712
        %853 = vmatpush1.bf16.msra.mxu0 %v711
        %854 = vmatprep.subr.bf16.mxu0 0
        %855 = vmatpush2.bf16.msra.mxu0 0
        %856 = vmatprep.subr.bf16.mxu0 0
        %857 = vmatpush2.bf16.msra.mxu0 0
        %858 = vmatprep.subr.bf16.mxu0 0
        %859 = vmatpush2.bf16.msra.mxu0 0
        %860 = vmatprep.subr.bf16.mxu0 0
        %861 = vmatpush2.bf16.msra.mxu0 0
        %862 = vmatprep.subr.bf16.mxu0 0
        %863 = vmatpush2.bf16.msra.mxu0 0
        %864 = vmatprep.subr.bf16.mxu0 0
        %865 = vmatpush2.bf16.msra.mxu0 0
        %866 = vmatprep.subr.bf16.mxu0 0
        %867 = vmatpush2.bf16.msra.mxu0 0
        %868 = vmatprep.subr.bf16.mxu0 0
        %869 = vmatpush2.bf16.msra.mxu0 0
        %870 = vmatprep.mubr.bf16.mxu0 0
        %871 = vmatmul.mubr.bf16.gmra.mxu0 %v730
        %v872 = vpop.f32.mrf.mxu0
        %v873 = vadd.f32 %v626, %v872
        %v874 = vpop.f32.mrf.mxu0
        %v875 = vadd.f32 %v628, %v874
        %v876 = vpop.f32.mrf.mxu0
        %v877 = vpop.f32.mrf.mxu0
        %878 = vdwg.mxu0
        %879 = vmatprep.subr.bf16.mxu0 0
        %880 = vmatpush1.bf16.msra.mxu0 0
        %881 = vmatprep.subr.bf16.mxu0 0
        %882 = vmatpush1.bf16.msra.mxu0 0
        %883 = vmatprep.subr.bf16.mxu0 0
        %884 = vmatpush1.bf16.msra.mxu0 0
        %885 = vmatprep.subr.bf16.mxu0 0
        %886 = vmatpush1.bf16.msra.mxu0 0
        %887 = vmatprep.subr.bf16.mxu0 0
        %888 = vmatpush1.bf16.msra.mxu0 0
        %889 = vmatprep.subr.bf16.mxu0 0
        %890 = vmatpush1.bf16.msra.mxu0 0
        %891 = vmatprep.subr.bf16.mxu0 %v754
        %892 = vmatpush1.bf16.msra.mxu0 %v751
        %893 = vmatprep.subr.bf16.mxu0 %v689
        %894 = vmatpush1.bf16.msra.mxu0 %v713
        %895 = vmatprep.subr.bf16.mxu0 0
        %896 = vmatpush2.bf16.msra.mxu0 0
        %897 = vmatprep.subr.bf16.mxu0 0
        %898 = vmatpush2.bf16.msra.mxu0 0
        %899 = vmatprep.subr.bf16.mxu0 0
        %900 = vmatpush2.bf16.msra.mxu0 0
        %901 = vmatprep.subr.bf16.mxu0 0
        %902 = vmatpush2.bf16.msra.mxu0 0
        %903 = vmatprep.subr.bf16.mxu0 0
        %904 = vmatpush2.bf16.msra.mxu0 0
        %905 = vmatprep.subr.bf16.mxu0 0
        %906 = vmatpush2.bf16.msra.mxu0 0
        %907 = vmatprep.subr.bf16.mxu0 0
        %908 = vmatpush2.bf16.msra.mxu0 0
        %909 = vmatprep.subr.bf16.mxu0 0
        %910 = vmatpush2.bf16.msra.mxu0 0
        %911 = vmatprep.mubr.bf16.mxu0 0
        %912 = vmatmul.mubr.bf16.gmra.mxu0 %v730
        %v913 = vpop.f32.mrf.mxu0
        %v914 = vadd.f32 %v667, %v913
        %v915 = vpop.f32.mrf.mxu0
        %v916 = vadd.f32 %v669, %v915
        %v917 = vpop.f32.mrf.mxu0
        %v918 = vpop.f32.mrf.mxu0
        %919 = vdwg.mxu0
        %s920 = scalar_lea.vmem [#allocation6], 8
        %v921 = vld [vmem:[%s920] sm:$0xf]
        %922 = vrot.lane.b32.xlu0 %v371, 91
        %v923 = vpop.permute.xlu0 %922
        %924 = vrot.lane.b32.xlu0 %v374, 91
        %v925 = vpop.permute.xlu0 %924
        %926 = vrot.lane.b32.xlu0 %v377, 91
        %v927 = vpop.permute.xlu0 %926
        %928 = vrot.lane.b32.xlu0 %v380, 91
        %v929 = vpop.permute.xlu0 %928
        %930 = vrot.lane.b32.xlu0 %v383, 91
        %v931 = vpop.permute.xlu0 %930
        %932 = vrot.lane.b32.xlu0 %v386, 91
        %v933 = vpop.permute.xlu0 %932
        %934 = vrot.lane.b32.xlu0 %v389, 91
        %v935 = vpop.permute.xlu0 %934
        %936 = vrot.lane.b32.xlu0 %v405, 91
        %v937 = vpop.permute.xlu0 %936
        %938 = vrot.lane.b32.xlu0 %v408, 91
        %v939 = vpop.permute.xlu0 %938
        %940 = vrot.lane.b32.xlu0 %v361, 91
        %v941 = vpop.permute.xlu0 %940
        %942 = vrot.lane.b32.xlu0 %v362, 91
        %v943 = vpop.permute.xlu0 %942
        %944 = vrot.lane.b32.xlu0 %v363, 91
        %v945 = vpop.permute.xlu0 %944
        %946 = vrot.lane.b32.xlu0 %v364, 91
        %v947 = vpop.permute.xlu0 %946
        %948 = vrot.lane.b32.xlu0 %v365, 91
        %v949 = vpop.permute.xlu0 %948
        %950 = vrot.lane.b32.xlu0 %v366, 91
        %v951 = vpop.permute.xlu0 %950
        %952 = vrot.lane.b32.xlu0 %v367, 91
        %v953 = vpop.permute.xlu0 %952
        %954 = vrot.lane.b32.xlu0 %v403, 91
        %v955 = vpop.permute.xlu0 %954
        %956 = vrot.lane.b32.xlu0 %v402, 91
        %v957 = vpop.permute.xlu0 %956
        %vm958 = vcmask 744448
        %v959 = vsel %vm958, %v923, %v925
        %v960 = vsel %vm958, %v925, %v927
        %v961 = vsel %vm958, %v927, %v929
        %v962 = vsel %vm958, %v929, %v931
        %v963 = vsel %vm958, %v931, %v933
        %v964 = vsel %vm958, %v933, %v935
        %v965 = vsel %vm958, %v935, %v937
        %v966 = vsel %vm958, %v937, %v939
        %v967 = vsel %vm958, %v941, %v943
        %v968 = vsel %vm958, %v943, %v945
        %v969 = vsel %vm958, %v945, %v947
        %v970 = vsel %vm958, %v947, %v949
        %v971 = vsel %vm958, %v949, %v951
        %v972 = vsel %vm958, %v951, %v953
        %v973 = vsel %vm958, %v953, %v955
        %v974 = vsel %vm958, %v955, %v957
        %v984 = vsel %vm481, %v921, 0
        %v987 = vsel %vm368, %v967, 0
        %v990 = vsel %vm368, %v968, 0
        %v993 = vsel %vm368, %v969, 0
        %v996 = vsel %vm368, %v970, 0
        %v999 = vsel %vm368, %v971, 0
        %v1002 = vsel %vm368, %v972, 0
        %v1005 = vsel %vm368, %v973, 0
        %v1008 = vsel %vm368, %v974, 0
        %1010 = vmatprep.subr.bf16.mxu0 0
        %1011 = vmatpush1.bf16.msra.mxu0 0
        %1012 = vmatprep.subr.bf16.mxu0 0
        %1013 = vmatpush1.bf16.msra.mxu0 0
        %1014 = vmatprep.subr.bf16.mxu0 0
        %1015 = vmatpush1.bf16.msra.mxu0 0
        %1016 = vmatprep.subr.bf16.mxu0 0
        %1017 = vmatpush1.bf16.msra.mxu0 0
        %1018 = vmatprep.subr.bf16.mxu0 0
        %1019 = vmatpush1.bf16.msra.mxu0 0
        %1020 = vmatprep.subr.bf16.mxu0 0
        %1021 = vmatpush1.bf16.msra.mxu0 0
        %1022 = vmatprep.subr.bf16.mxu0 %v990
        %1023 = vmatpush1.bf16.msra.mxu0 %v987
        %1024 = vmatprep.subr.bf16.mxu0 %v960
        %1025 = vmatpush1.bf16.msra.mxu0 %v959
        %1026 = vmatprep.subr.bf16.mxu0 0
        %1027 = vmatpush2.bf16.msra.mxu0 0
        %1028 = vmatprep.subr.bf16.mxu0 0
        %1029 = vmatpush2.bf16.msra.mxu0 0
        %1030 = vmatprep.subr.bf16.mxu0 0
        %1031 = vmatpush2.bf16.msra.mxu0 0
        %1032 = vmatprep.subr.bf16.mxu0 0
        %1033 = vmatpush2.bf16.msra.mxu0 0
        %1034 = vmatprep.subr.bf16.mxu0 0
        %1035 = vmatpush2.bf16.msra.mxu0 0
        %1036 = vmatprep.subr.bf16.mxu0 0
        %1037 = vmatpush2.bf16.msra.mxu0 0
        %1038 = vmatprep.subr.bf16.mxu0 0
        %1039 = vmatpush2.bf16.msra.mxu0 0
        %1040 = vmatprep.subr.bf16.mxu0 0
        %1041 = vmatpush2.bf16.msra.mxu0 0
        %1042 = vmatprep.mubr.bf16.mxu0 0
        %1043 = vmatmul.mubr.bf16.gmra.mxu0 %v984
        %v1044 = vpop.f32.mrf.mxu0
        %v1045 = vadd.f32 0.0, %v1044
        %v1046 = vpop.f32.mrf.mxu0
        %v1047 = vadd.f32 0.0, %v1046
        %v1048 = vpop.f32.mrf.mxu0
        %v1049 = vpop.f32.mrf.mxu0
        %1050 = vdwg.mxu0
        %1051 = vmatprep.subr.bf16.mxu0 0
        %1052 = vmatpush1.bf16.msra.mxu0 0
        %1053 = vmatprep.subr.bf16.mxu0 0
        %1054 = vmatpush1.bf16.msra.mxu0 0
        %1055 = vmatprep.subr.bf16.mxu0 0
        %1056 = vmatpush1.bf16.msra.mxu0 0
        %1057 = vmatprep.subr.bf16.mxu0 0
        %1058 = vmatpush1.bf16.msra.mxu0 0
        %1059 = vmatprep.subr.bf16.mxu0 0
        %1060 = vmatpush1.bf16.msra.mxu0 0
        %1061 = vmatprep.subr.bf16.mxu0 0
        %1062 = vmatpush1.bf16.msra.mxu0 0
        %1063 = vmatprep.subr.bf16.mxu0 %v996
        %1064 = vmatpush1.bf16.msra.mxu0 %v993
        %1065 = vmatprep.subr.bf16.mxu0 %v962
        %1066 = vmatpush1.bf16.msra.mxu0 %v961
        %1067 = vmatprep.subr.bf16.mxu0 0
        %1068 = vmatpush2.bf16.msra.mxu0 0
        %1069 = vmatprep.subr.bf16.mxu0 0
        %1070 = vmatpush2.bf16.msra.mxu0 0
        %1071 = vmatprep.subr.bf16.mxu0 0
        %1072 = vmatpush2.bf16.msra.mxu0 0
        %1073 = vmatprep.subr.bf16.mxu0 0
        %1074 = vmatpush2.bf16.msra.mxu0 0
        %1075 = vmatprep.subr.bf16.mxu0 0
        %1076 = vmatpush2.bf16.msra.mxu0 0
        %1077 = vmatprep.subr.bf16.mxu0 0
        %1078 = vmatpush2.bf16.msra.mxu0 0
        %1079 = vmatprep.subr.bf16.mxu0 0
        %1080 = vmatpush2.bf16.msra.mxu0 0
        %1081 = vmatprep.subr.bf16.mxu0 0
        %1082 = vmatpush2.bf16.msra.mxu0 0
        %1083 = vmatprep.mubr.bf16.mxu0 0
        %1084 = vmatmul.mubr.bf16.gmra.mxu0 %v984
        %v1085 = vpop.f32.mrf.mxu0
        %v1086 = vadd.f32 0.0, %v1085
        %v1087 = vpop.f32.mrf.mxu0
        %v1088 = vadd.f32 0.0, %v1087
        %v1089 = vpop.f32.mrf.mxu0
        %v1090 = vpop.f32.mrf.mxu0
        %1091 = vdwg.mxu0
        %1092 = vmatprep.subr.bf16.mxu0 0
        %1093 = vmatpush1.bf16.msra.mxu0 0
        %1094 = vmatprep.subr.bf16.mxu0 0
        %1095 = vmatpush1.bf16.msra.mxu0 0
        %1096 = vmatprep.subr.bf16.mxu0 0
        %1097 = vmatpush1.bf16.msra.mxu0 0
        %1098 = vmatprep.subr.bf16.mxu0 0
        %1099 = vmatpush1.bf16.msra.mxu0 0
        %1100 = vmatprep.subr.bf16.mxu0 0
        %1101 = vmatpush1.bf16.msra.mxu0 0
        %1102 = vmatprep.subr.bf16.mxu0 0
        %1103 = vmatpush1.bf16.msra.mxu0 0
        %1104 = vmatprep.subr.bf16.mxu0 %v1002
        %1105 = vmatpush1.bf16.msra.mxu0 %v999
        %1106 = vmatprep.subr.bf16.mxu0 %v964
        %1107 = vmatpush1.bf16.msra.mxu0 %v963
        %1108 = vmatprep.subr.bf16.mxu0 0
        %1109 = vmatpush2.bf16.msra.mxu0 0
        %1110 = vmatprep.subr.bf16.mxu0 0
        %1111 = vmatpush2.bf16.msra.mxu0 0
        %1112 = vmatprep.subr.bf16.mxu0 0
        %1113 = vmatpush2.bf16.msra.mxu0 0
        %1114 = vmatprep.subr.bf16.mxu0 0
        %1115 = vmatpush2.bf16.msra.mxu0 0
        %1116 = vmatprep.subr.bf16.mxu0 0
        %1117 = vmatpush2.bf16.msra.mxu0 0
        %1118 = vmatprep.subr.bf16.mxu0 0
        %1119 = vmatpush2.bf16.msra.mxu0 0
        %1120 = vmatprep.subr.bf16.mxu0 0
        %1121 = vmatpush2.bf16.msra.mxu0 0
        %1122 = vmatprep.subr.bf16.mxu0 0
        %1123 = vmatpush2.bf16.msra.mxu0 0
        %1124 = vmatprep.mubr.bf16.mxu0 0
        %1125 = vmatmul.mubr.bf16.gmra.mxu0 %v984
        %v1126 = vpop.f32.mrf.mxu0
        %v1127 = vadd.f32 0.0, %v1126
        %v1128 = vpop.f32.mrf.mxu0
        %v1129 = vadd.f32 0.0, %v1128
        %v1130 = vpop.f32.mrf.mxu0
        %v1131 = vpop.f32.mrf.mxu0
        %1132 = vdwg.mxu0
        %1133 = vmatprep.subr.bf16.mxu0 0
        %1134 = vmatpush1.bf16.msra.mxu0 0
        %1135 = vmatprep.subr.bf16.mxu0 0
        %1136 = vmatpush1.bf16.msra.mxu0 0
        %1137 = vmatprep.subr.bf16.mxu0 0
        %1138 = vmatpush1.bf16.msra.mxu0 0
        %1139 = vmatprep.subr.bf16.mxu0 0
        %1140 = vmatpush1.bf16.msra.mxu0 0
        %1141 = vmatprep.subr.bf16.mxu0 0
        %1142 = vmatpush1.bf16.msra.mxu0 0
        %1143 = vmatprep.subr.bf16.mxu0 0
        %1144 = vmatpush1.bf16.msra.mxu0 0
        %1145 = vmatprep.subr.bf16.mxu0 %v1008
        %1146 = vmatpush1.bf16.msra.mxu0 %v1005
        %1147 = vmatprep.subr.bf16.mxu0 %v966
        %1148 = vmatpush1.bf16.msra.mxu0 %v965
        %1149 = vmatprep.subr.bf16.mxu0 0
        %1150 = vmatpush2.bf16.msra.mxu0 0
        %1151 = vmatprep.subr.bf16.mxu0 0
        %1152 = vmatpush2.bf16.msra.mxu0 0
        %1153 = vmatprep.subr.bf16.mxu0 0
        %1154 = vmatpush2.bf16.msra.mxu0 0
        %1155 = vmatprep.subr.bf16.mxu0 0
        %1156 = vmatpush2.bf16.msra.mxu0 0
        %1157 = vmatprep.subr.bf16.mxu0 0
        %1158 = vmatpush2.bf16.msra.mxu0 0
        %1159 = vmatprep.subr.bf16.mxu0 0
        %1160 = vmatpush2.bf16.msra.mxu0 0
        %1161 = vmatprep.subr.bf16.mxu0 0
        %1162 = vmatpush2.bf16.msra.mxu0 0
        %1163 = vmatprep.subr.bf16.mxu0 0
        %1164 = vmatpush2.bf16.msra.mxu0 0
        %1165 = vmatprep.mubr.bf16.mxu0 0
        %1166 = vmatmul.mubr.bf16.gmra.mxu0 %v984
        %v1167 = vpop.f32.mrf.mxu0
        %v1168 = vadd.f32 0.0, %v1167
        %v1169 = vpop.f32.mrf.mxu0
        %v1170 = vadd.f32 0.0, %v1169
        %v1171 = vpop.f32.mrf.mxu0
        %v1172 = vpop.f32.mrf.mxu0
        %1173 = vdwg.mxu0
        %v1174 = vadd.f32 %v791, %v1045
        %v1175 = vadd.f32 %v793, %v1047
        %v1176 = vadd.f32 %v832, %v1086
        %v1177 = vadd.f32 %v834, %v1088
        %v1178 = vadd.f32 %v873, %v1127
        %v1179 = vadd.f32 %v875, %v1129
        %v1180 = vadd.f32 %v914, %v1168
        %v1181 = vadd.f32 %v916, %v1170
        %s1182 = scalar_lea.vmem [#allocation6], 12
        %v1183 = vld [vmem:[%s1182] sm:$0xf]
        %1184 = vrot.lane.b32.xlu0 %v371, 11
        %v1185 = vpop.permute.xlu0 %1184
        %1186 = vrot.lane.b32.xlu0 %v374, 11
        %v1187 = vpop.permute.xlu0 %1186
        %1188 = vrot.lane.b32.xlu0 %v377, 11
        %v1189 = vpop.permute.xlu0 %1188
        %1190 = vrot.lane.b32.xlu0 %v380, 11
        %v1191 = vpop.permute.xlu0 %1190
        %1192 = vrot.lane.b32.xlu0 %v383, 11
        %v1193 = vpop.permute.xlu0 %1192
        %1194 = vrot.lane.b32.xlu0 %v386, 11
        %v1195 = vpop.permute.xlu0 %1194
        %1196 = vrot.lane.b32.xlu0 %v389, 11
        %v1197 = vpop.permute.xlu0 %1196
        %1198 = vrot.lane.b32.xlu0 %v405, 11
        %v1199 = vpop.permute.xlu0 %1198
        %1200 = vrot.lane.b32.xlu0 %v408, 11
        %v1201 = vpop.permute.xlu0 %1200
        %1202 = vrot.lane.b32.xlu0 %v361, 11
        %v1203 = vpop.permute.xlu0 %1202
        %1204 = vrot.lane.b32.xlu0 %v362, 11
        %v1205 = vpop.permute.xlu0 %1204
        %1206 = vrot.lane.b32.xlu0 %v363, 11
        %v1207 = vpop.permute.xlu0 %1206
        %1208 = vrot.lane.b32.xlu0 %v364, 11
        %v1209 = vpop.permute.xlu0 %1208
        %1210 = vrot.lane.b32.xlu0 %v365, 11
        %v1211 = vpop.permute.xlu0 %1210
        %1212 = vrot.lane.b32.xlu0 %v366, 11
        %v1213 = vpop.permute.xlu0 %1212
        %1214 = vrot.lane.b32.xlu0 %v367, 11
        %v1215 = vpop.permute.xlu0 %1214
        %1216 = vrot.lane.b32.xlu0 %v403, 11
        %v1217 = vpop.permute.xlu0 %1216
        %1218 = vrot.lane.b32.xlu0 %v402, 11
        %v1219 = vpop.permute.xlu0 %1218
        %vm1220 = vcmask 89088
        %v1221 = vsel %vm1220, %v1185, %v1187
        %v1222 = vsel %vm1220, %v1187, %v1189
        %v1223 = vsel %vm1220, %v1189, %v1191
        %v1224 = vsel %vm1220, %v1191, %v1193
        %v1225 = vsel %vm1220, %v1193, %v1195
        %v1226 = vsel %vm1220, %v1195, %v1197
        %v1227 = vsel %vm1220, %v1197, %v1199
        %v1228 = vsel %vm1220, %v1199, %v1201
        %v1229 = vsel %vm1220, %v1203, %v1205
        %v1230 = vsel %vm1220, %v1205, %v1207
        %v1231 = vsel %vm1220, %v1207, %v1209
        %v1232 = vsel %vm1220, %v1209, %v1211
        %v1233 = vsel %vm1220, %v1211, %v1213
        %v1234 = vsel %vm1220, %v1213, %v1215
        %v1235 = vsel %vm1220, %v1215, %v1217
        %v1236 = vsel %vm1220, %v1217, %v1219
        %v1246 = vsel %vm481, %v1183, 0
        %v1249 = vsel %vm368, %v1229, 0
        %v1252 = vsel %vm368, %v1230, 0
        %v1255 = vsel %vm368, %v1231, 0
        %v1258 = vsel %vm368, %v1232, 0
        %v1261 = vsel %vm368, %v1233, 0
        %v1264 = vsel %vm368, %v1234, 0
        %v1267 = vsel %vm368, %v1235, 0
        %v1270 = vsel %vm368, %v1236, 0
        %1272 = vmatprep.subr.bf16.mxu0 0
        %1273 = vmatpush1.bf16.msra.mxu0 0
        %1274 = vmatprep.subr.bf16.mxu0 0
        %1275 = vmatpush1.bf16.msra.mxu0 0
        %1276 = vmatprep.subr.bf16.mxu0 0
        %1277 = vmatpush1.bf16.msra.mxu0 0
        %1278 = vmatprep.subr.bf16.mxu0 0
        %1279 = vmatpush1.bf16.msra.mxu0 0
        %1280 = vmatprep.subr.bf16.mxu0 0
        %1281 = vmatpush1.bf16.msra.mxu0 0
        %1282 = vmatprep.subr.bf16.mxu0 0
        %1283 = vmatpush1.bf16.msra.mxu0 0
        %1284 = vmatprep.subr.bf16.mxu0 %v1252
        %1285 = vmatpush1.bf16.msra.mxu0 %v1249
        %1286 = vmatprep.subr.bf16.mxu0 %v1222
        %1287 = vmatpush1.bf16.msra.mxu0 %v1221
        %1288 = vmatprep.subr.bf16.mxu0 0
        %1289 = vmatpush2.bf16.msra.mxu0 0
        %1290 = vmatprep.subr.bf16.mxu0 0
        %1291 = vmatpush2.bf16.msra.mxu0 0
        %1292 = vmatprep.subr.bf16.mxu0 0
        %1293 = vmatpush2.bf16.msra.mxu0 0
        %1294 = vmatprep.subr.bf16.mxu0 0
        %1295 = vmatpush2.bf16.msra.mxu0 0
        %1296 = vmatprep.subr.bf16.mxu0 0
        %1297 = vmatpush2.bf16.msra.mxu0 0
        %1298 = vmatprep.subr.bf16.mxu0 0
        %1299 = vmatpush2.bf16.msra.mxu0 0
        %1300 = vmatprep.subr.bf16.mxu0 0
        %1301 = vmatpush2.bf16.msra.mxu0 0
        %1302 = vmatprep.subr.bf16.mxu0 0
        %1303 = vmatpush2.bf16.msra.mxu0 0
        %1304 = vmatprep.mubr.bf16.mxu0 0
        %1305 = vmatmul.mubr.bf16.gmra.mxu0 %v1246
        %v1306 = vpop.f32.mrf.mxu0
        %v1307 = vadd.f32 0.0, %v1306
        %v1308 = vpop.f32.mrf.mxu0
        %v1309 = vadd.f32 0.0, %v1308
        %v1310 = vpop.f32.mrf.mxu0
        %v1311 = vpop.f32.mrf.mxu0
        %1312 = vdwg.mxu0
        %1313 = vmatprep.subr.bf16.mxu0 0
        %1314 = vmatpush1.bf16.msra.mxu0 0
        %1315 = vmatprep.subr.bf16.mxu0 0
        %1316 = vmatpush1.bf16.msra.mxu0 0
        %1317 = vmatprep.subr.bf16.mxu0 0
        %1318 = vmatpush1.bf16.msra.mxu0 0
        %1319 = vmatprep.subr.bf16.mxu0 0
        %1320 = vmatpush1.bf16.msra.mxu0 0
        %1321 = vmatprep.subr.bf16.mxu0 0
        %1322 = vmatpush1.bf16.msra.mxu0 0
        %1323 = vmatprep.subr.bf16.mxu0 0
        %1324 = vmatpush1.bf16.msra.mxu0 0
        %1325 = vmatprep.subr.bf16.mxu0 %v1258
        %1326 = vmatpush1.bf16.msra.mxu0 %v1255
        %1327 = vmatprep.subr.bf16.mxu0 %v1224
        %1328 = vmatpush1.bf16.msra.mxu0 %v1223
        %1329 = vmatprep.subr.bf16.mxu0 0
        %1330 = vmatpush2.bf16.msra.mxu0 0
        %1331 = vmatprep.subr.bf16.mxu0 0
        %1332 = vmatpush2.bf16.msra.mxu0 0
        %1333 = vmatprep.subr.bf16.mxu0 0
        %1334 = vmatpush2.bf16.msra.mxu0 0
        %1335 = vmatprep.subr.bf16.mxu0 0
        %1336 = vmatpush2.bf16.msra.mxu0 0
        %1337 = vmatprep.subr.bf16.mxu0 0
        %1338 = vmatpush2.bf16.msra.mxu0 0
        %1339 = vmatprep.subr.bf16.mxu0 0
        %1340 = vmatpush2.bf16.msra.mxu0 0
        %1341 = vmatprep.subr.bf16.mxu0 0
        %1342 = vmatpush2.bf16.msra.mxu0 0
        %1343 = vmatprep.subr.bf16.mxu0 0
        %1344 = vmatpush2.bf16.msra.mxu0 0
        %1345 = vmatprep.mubr.bf16.mxu0 0
        %1346 = vmatmul.mubr.bf16.gmra.mxu0 %v1246
        %v1347 = vpop.f32.mrf.mxu0
        %v1348 = vadd.f32 0.0, %v1347
        %v1349 = vpop.f32.mrf.mxu0
        %v1350 = vadd.f32 0.0, %v1349
        %v1351 = vpop.f32.mrf.mxu0
        %v1352 = vpop.f32.mrf.mxu0
        %1353 = vdwg.mxu0
        %1354 = vmatprep.subr.bf16.mxu0 0
        %1355 = vmatpush1.bf16.msra.mxu0 0
        %1356 = vmatprep.subr.bf16.mxu0 0
        %1357 = vmatpush1.bf16.msra.mxu0 0
        %1358 = vmatprep.subr.bf16.mxu0 0
        %1359 = vmatpush1.bf16.msra.mxu0 0
        %1360 = vmatprep.subr.bf16.mxu0 0
        %1361 = vmatpush1.bf16.msra.mxu0 0
        %1362 = vmatprep.subr.bf16.mxu0 0
        %1363 = vmatpush1.bf16.msra.mxu0 0
        %1364 = vmatprep.subr.bf16.mxu0 0
        %1365 = vmatpush1.bf16.msra.mxu0 0
        %1366 = vmatprep.subr.bf16.mxu0 %v1264
        %1367 = vmatpush1.bf16.msra.mxu0 %v1261
        %1368 = vmatprep.subr.bf16.mxu0 %v1226
        %1369 = vmatpush1.bf16.msra.mxu0 %v1225
        %1370 = vmatprep.subr.bf16.mxu0 0
        %1371 = vmatpush2.bf16.msra.mxu0 0
        %1372 = vmatprep.subr.bf16.mxu0 0
        %1373 = vmatpush2.bf16.msra.mxu0 0
        %1374 = vmatprep.subr.bf16.mxu0 0
        %1375 = vmatpush2.bf16.msra.mxu0 0
        %1376 = vmatprep.subr.bf16.mxu0 0
        %1377 = vmatpush2.bf16.msra.mxu0 0
        %1378 = vmatprep.subr.bf16.mxu0 0
        %1379 = vmatpush2.bf16.msra.mxu0 0
        %1380 = vmatprep.subr.bf16.mxu0 0
        %1381 = vmatpush2.bf16.msra.mxu0 0
        %1382 = vmatprep.subr.bf16.mxu0 0
        %1383 = vmatpush2.bf16.msra.mxu0 0
        %1384 = vmatprep.subr.bf16.mxu0 0
        %1385 = vmatpush2.bf16.msra.mxu0 0
        %1386 = vmatprep.mubr.bf16.mxu0 0
        %1387 = vmatmul.mubr.bf16.gmra.mxu0 %v1246
        %v1388 = vpop.f32.mrf.mxu0
        %v1389 = vadd.f32 0.0, %v1388
        %v1390 = vpop.f32.mrf.mxu0
        %v1391 = vadd.f32 0.0, %v1390
        %v1392 = vpop.f32.mrf.mxu0
        %v1393 = vpop.f32.mrf.mxu0
        %1394 = vdwg.mxu0
        %1395 = vmatprep.subr.bf16.mxu0 0
        %1396 = vmatpush1.bf16.msra.mxu0 0
        %1397 = vmatprep.subr.bf16.mxu0 0
        %1398 = vmatpush1.bf16.msra.mxu0 0
        %1399 = vmatprep.subr.bf16.mxu0 0
        %1400 = vmatpush1.bf16.msra.mxu0 0
        %1401 = vmatprep.subr.bf16.mxu0 0
        %1402 = vmatpush1.bf16.msra.mxu0 0
        %1403 = vmatprep.subr.bf16.mxu0 0
        %1404 = vmatpush1.bf16.msra.mxu0 0
        %1405 = vmatprep.subr.bf16.mxu0 0
        %1406 = vmatpush1.bf16.msra.mxu0 0
        %1407 = vmatprep.subr.bf16.mxu0 %v1270
        %1408 = vmatpush1.bf16.msra.mxu0 %v1267
        %1409 = vmatprep.subr.bf16.mxu0 %v1228
        %1410 = vmatpush1.bf16.msra.mxu0 %v1227
        %1411 = vmatprep.subr.bf16.mxu0 0
        %1412 = vmatpush2.bf16.msra.mxu0 0
        %1413 = vmatprep.subr.bf16.mxu0 0
        %1414 = vmatpush2.bf16.msra.mxu0 0
        %1415 = vmatprep.subr.bf16.mxu0 0
        %1416 = vmatpush2.bf16.msra.mxu0 0
        %1417 = vmatprep.subr.bf16.mxu0 0
        %1418 = vmatpush2.bf16.msra.mxu0 0
        %1419 = vmatprep.subr.bf16.mxu0 0
        %1420 = vmatpush2.bf16.msra.mxu0 0
        %1421 = vmatprep.subr.bf16.mxu0 0
        %1422 = vmatpush2.bf16.msra.mxu0 0
        %1423 = vmatprep.subr.bf16.mxu0 0
        %1424 = vmatpush2.bf16.msra.mxu0 0
        %1425 = vmatprep.subr.bf16.mxu0 0
        %1426 = vmatpush2.bf16.msra.mxu0 0
        %1427 = vmatprep.mubr.bf16.mxu0 0
        %1428 = vmatmul.mubr.bf16.gmra.mxu0 %v1246
        %v1429 = vpop.f32.mrf.mxu0
        %v1430 = vadd.f32 0.0, %v1429
        %v1431 = vpop.f32.mrf.mxu0
        %v1432 = vadd.f32 0.0, %v1431
        %v1433 = vpop.f32.mrf.mxu0
        %v1434 = vpop.f32.mrf.mxu0
        %1435 = vdwg.mxu0
        %v1436 = vadd.f32 %v1174, %v1307
        %v1437 = vadd.f32 %v1175, %v1309
        %v1438 = vadd.f32 %v1176, %v1348
        %v1439 = vadd.f32 %v1177, %v1350
        %v1440 = vadd.f32 %v1178, %v1389
        %v1441 = vadd.f32 %v1179, %v1391
        %v1442 = vadd.f32 %v1180, %v1430
        %v1443 = vadd.f32 %v1181, %v1432
        %v1444 = vld [vmem:[%s258 + $0x4] sm:$0xff]
        %v1445 = vld [vmem:[%s258 + $0xc] sm:$0xff]
        %v1446 = vld [vmem:[%s258 + $0x14] sm:$0xff]
        %v1447 = vld [vmem:[%s258 + $0x1c] sm:$0xff]
        %v1452 = vunpack.c.l.b16 %v1444
        %v1453 = vunpack.c.h.b16 %v1444
        %v1454 = vunpack.c.l.b16 %v1445
        %v1455 = vunpack.c.h.b16 %v1445
        %v1456 = vunpack.c.l.b16 %v1446
        %v1457 = vunpack.c.h.b16 %v1446
        %v1458 = vunpack.c.l.b16 %v1447
        %v1459 = vunpack.c.h.b16 %v1447
        %v1460 = vpack.c.b16 %v1452, %v1452
        %v1461 = vpack.c.b16 %v1453, %v1453
        %v1462 = vpack.c.b16 %v1454, %v1454
        %v1463 = vpack.c.b16 %v1455, %v1455
        %v1464 = vpack.c.b16 %v1456, %v1456
        %v1465 = vpack.c.b16 %v1457, %v1457
        %v1466 = vpack.c.b16 %v1458, %v1458
        %v1467 = vpack.c.b16 %v1459, %v1459
        %1468 = vrot.lane.b32.xlu0 %v1460, 127
        %v1469 = vpop.permute.xlu0 %1468
        %1470 = vrot.lane.b32.xlu0 %v1461, 127
        %v1471 = vpop.permute.xlu0 %1470
        %1472 = vrot.lane.b32.xlu0 %v1462, 127
        %v1473 = vpop.permute.xlu0 %1472
        %1474 = vrot.lane.b32.xlu0 %v1463, 127
        %v1475 = vpop.permute.xlu0 %1474
        %1476 = vrot.lane.b32.xlu0 %v1464, 127
        %v1477 = vpop.permute.xlu0 %1476
        %1478 = vrot.lane.b32.xlu0 %v1465, 127
        %v1479 = vpop.permute.xlu0 %1478
        %1480 = vrot.lane.b32.xlu0 %v1466, 127
        %v1481 = vpop.permute.xlu0 %1480
        %1482 = vrot.lane.b32.xlu0 %v1467, 127
        %v1483 = vpop.permute.xlu0 %1482
        %v1484 = vsel %vm336, %v1469, %v1471
        %v1485 = vsel %vm336, %v1471, %v1473
        %v1486 = vsel %vm336, %v1473, %v1475
        %v1487 = vsel %vm336, %v1475, %v1477
        %v1488 = vsel %vm336, %v1477, %v1479
        %v1489 = vsel %vm336, %v1479, %v1481
        %v1490 = vsel %vm336, %v1481, %v1483
        %1491 = vrot.lane.b32.xlu0 %v1460, 126
        %v1492 = vpop.permute.xlu0 %1491
        %1493 = vrot.lane.b32.xlu0 %v1461, 126
        %v1494 = vpop.permute.xlu0 %1493
        %1495 = vrot.lane.b32.xlu0 %v1462, 126
        %v1496 = vpop.permute.xlu0 %1495
        %1497 = vrot.lane.b32.xlu0 %v1463, 126
        %v1498 = vpop.permute.xlu0 %1497
        %1499 = vrot.lane.b32.xlu0 %v1464, 126
        %v1500 = vpop.permute.xlu0 %1499
        %1501 = vrot.lane.b32.xlu0 %v1465, 126
        %v1502 = vpop.permute.xlu0 %1501
        %1503 = vrot.lane.b32.xlu0 %v1466, 126
        %v1504 = vpop.permute.xlu0 %1503
        %1505 = vrot.lane.b32.xlu0 %v1467, 126
        %v1506 = vpop.permute.xlu0 %1505
        %v1507 = vsel %vm360, %v1492, %v1494
        %v1508 = vsel %vm360, %v1494, %v1496
        %v1509 = vsel %vm360, %v1496, %v1498
        %v1510 = vsel %vm360, %v1498, %v1500
        %v1511 = vsel %vm360, %v1500, %v1502
        %v1512 = vsel %vm360, %v1502, %v1504
        %v1513 = vsel %vm360, %v1504, %v1506
        %v1515 = vsel %vm368, %v312, %v1469
        %v1517 = vsel %vm368, %v313, %v1484
        %v1519 = vsel %vm368, %v314, %v1485
        %v1521 = vsel %vm368, %v315, %v1486
        %v1523 = vsel %vm368, %v316, %v1487
        %v1525 = vsel %vm368, %v317, %v1488
        %v1527 = vsel %vm368, %v318, %v1489
        %v1529 = vsel %vm368, %v319, %v1490
        %v1531 = vsel %vm368, %v397, %v1483
        %s1532 = scalar_lea.vmem [#allocation6], 16
        %v1533 = vld [vmem:[%s1532] sm:$0xf]
        %1543 = vrot.lane.b32.xlu0 %v1515, 1
        %v1544 = vpop.permute.xlu0 %1543
        %1545 = vrot.lane.b32.xlu0 %v1517, 1
        %v1546 = vpop.permute.xlu0 %1545
        %1547 = vrot.lane.b32.xlu0 %v1519, 1
        %v1548 = vpop.permute.xlu0 %1547
        %1549 = vrot.lane.b32.xlu0 %v1521, 1
        %v1550 = vpop.permute.xlu0 %1549
        %1551 = vrot.lane.b32.xlu0 %v1523, 1
        %v1552 = vpop.permute.xlu0 %1551
        %1553 = vrot.lane.b32.xlu0 %v1525, 1
        %v1554 = vpop.permute.xlu0 %1553
        %1555 = vrot.lane.b32.xlu0 %v1527, 1
        %v1556 = vpop.permute.xlu0 %1555
        %1557 = vrot.lane.b32.xlu0 %v1529, 1
        %v1558 = vpop.permute.xlu0 %1557
        %1559 = vrot.lane.b32.xlu0 %v1531, 1
        %v1560 = vpop.permute.xlu0 %1559
        %1561 = vrot.lane.b32.xlu0 %v1492, 1
        %v1562 = vpop.permute.xlu0 %1561
        %1563 = vrot.lane.b32.xlu0 %v1507, 1
        %v1564 = vpop.permute.xlu0 %1563
        %1565 = vrot.lane.b32.xlu0 %v1508, 1
        %v1566 = vpop.permute.xlu0 %1565
        %1567 = vrot.lane.b32.xlu0 %v1509, 1
        %v1568 = vpop.permute.xlu0 %1567
        %1569 = vrot.lane.b32.xlu0 %v1510, 1
        %v1570 = vpop.permute.xlu0 %1569
        %1571 = vrot.lane.b32.xlu0 %v1511, 1
        %v1572 = vpop.permute.xlu0 %1571
        %1573 = vrot.lane.b32.xlu0 %v1512, 1
        %v1574 = vpop.permute.xlu0 %1573
        %1575 = vrot.lane.b32.xlu0 %v1513, 1
        %v1576 = vpop.permute.xlu0 %1575
        %1577 = vrot.lane.b32.xlu0 %v1506, 1
        %v1578 = vpop.permute.xlu0 %1577
        %vm1579 = vcmask 7168
        %v1580 = vsel %vm1579, %v1544, %v1546
        %v1581 = vsel %vm1579, %v1546, %v1548
        %v1582 = vsel %vm1579, %v1548, %v1550
        %v1583 = vsel %vm1579, %v1550, %v1552
        %v1584 = vsel %vm1579, %v1552, %v1554
        %v1585 = vsel %vm1579, %v1554, %v1556
        %v1586 = vsel %vm1579, %v1556, %v1558
        %v1587 = vsel %vm1579, %v1558, %v1560
        %v1588 = vsel %vm1579, %v1562, %v1564
        %v1589 = vsel %vm1579, %v1564, %v1566
        %v1590 = vsel %vm1579, %v1566, %v1568
        %v1591 = vsel %vm1579, %v1568, %v1570
        %v1592 = vsel %vm1579, %v1570, %v1572
        %v1593 = vsel %vm1579, %v1572, %v1574
        %v1594 = vsel %vm1579, %v1574, %v1576
        %v1595 = vsel %vm1579, %v1576, %v1578
        %v1605 = vsel %vm481, %v1533, 0
        %v1608 = vsel %vm368, %v1588, 0
        %v1611 = vsel %vm368, %v1589, 0
        %v1614 = vsel %vm368, %v1590, 0
        %v1617 = vsel %vm368, %v1591, 0
        %v1620 = vsel %vm368, %v1592, 0
        %v1623 = vsel %vm368, %v1593, 0
        %v1626 = vsel %vm368, %v1594, 0
        %v1629 = vsel %vm368, %v1595, 0
        %1631 = vmatprep.subr.bf16.mxu0 0
        %1632 = vmatpush1.bf16.msra.mxu0 0
        %1633 = vmatprep.subr.bf16.mxu0 0
        %1634 = vmatpush1.bf16.msra.mxu0 0
        %1635 = vmatprep.subr.bf16.mxu0 0
        %1636 = vmatpush1.bf16.msra.mxu0 0
        %1637 = vmatprep.subr.bf16.mxu0 0
        %1638 = vmatpush1.bf16.msra.mxu0 0
        %1639 = vmatprep.subr.bf16.mxu0 0
        %1640 = vmatpush1.bf16.msra.mxu0 0
        %1641 = vmatprep.subr.bf16.mxu0 0
        %1642 = vmatpush1.bf16.msra.mxu0 0
        %1643 = vmatprep.subr.bf16.mxu0 %v1611
        %1644 = vmatpush1.bf16.msra.mxu0 %v1608
        %1645 = vmatprep.subr.bf16.mxu0 %v1581
        %1646 = vmatpush1.bf16.msra.mxu0 %v1580
        %1647 = vmatprep.subr.bf16.mxu0 0
        %1648 = vmatpush2.bf16.msra.mxu0 0
        %1649 = vmatprep.subr.bf16.mxu0 0
        %1650 = vmatpush2.bf16.msra.mxu0 0
        %1651 = vmatprep.subr.bf16.mxu0 0
        %1652 = vmatpush2.bf16.msra.mxu0 0
        %1653 = vmatprep.subr.bf16.mxu0 0
        %1654 = vmatpush2.bf16.msra.mxu0 0
        %1655 = vmatprep.subr.bf16.mxu0 0
        %1656 = vmatpush2.bf16.msra.mxu0 0
        %1657 = vmatprep.subr.bf16.mxu0 0
        %1658 = vmatpush2.bf16.msra.mxu0 0
        %1659 = vmatprep.subr.bf16.mxu0 0
        %1660 = vmatpush2.bf16.msra.mxu0 0
        %1661 = vmatprep.subr.bf16.mxu0 0
        %1662 = vmatpush2.bf16.msra.mxu0 0
        %1663 = vmatprep.mubr.bf16.mxu0 0
        %1664 = vmatmul.mubr.bf16.gmra.mxu0 %v1605
        %v1665 = vpop.f32.mrf.mxu0
        %v1666 = vadd.f32 0.0, %v1665
        %v1667 = vpop.f32.mrf.mxu0
        %v1668 = vadd.f32 0.0, %v1667
        %v1669 = vpop.f32.mrf.mxu0
        %v1670 = vpop.f32.mrf.mxu0
        %1671 = vdwg.mxu0
        %1672 = vmatprep.subr.bf16.mxu0 0
        %1673 = vmatpush1.bf16.msra.mxu0 0
        %1674 = vmatprep.subr.bf16.mxu0 0
        %1675 = vmatpush1.bf16.msra.mxu0 0
        %1676 = vmatprep.subr.bf16.mxu0 0
        %1677 = vmatpush1.bf16.msra.mxu0 0
        %1678 = vmatprep.subr.bf16.mxu0 0
        %1679 = vmatpush1.bf16.msra.mxu0 0
        %1680 = vmatprep.subr.bf16.mxu0 0
        %1681 = vmatpush1.bf16.msra.mxu0 0
        %1682 = vmatprep.subr.bf16.mxu0 0
        %1683 = vmatpush1.bf16.msra.mxu0 0
        %1684 = vmatprep.subr.bf16.mxu0 %v1617
        %1685 = vmatpush1.bf16.msra.mxu0 %v1614
        %1686 = vmatprep.subr.bf16.mxu0 %v1583
        %1687 = vmatpush1.bf16.msra.mxu0 %v1582
        %1688 = vmatprep.subr.bf16.mxu0 0
        %1689 = vmatpush2.bf16.msra.mxu0 0
        %1690 = vmatprep.subr.bf16.mxu0 0
        %1691 = vmatpush2.bf16.msra.mxu0 0
        %1692 = vmatprep.subr.bf16.mxu0 0
        %1693 = vmatpush2.bf16.msra.mxu0 0
        %1694 = vmatprep.subr.bf16.mxu0 0
        %1695 = vmatpush2.bf16.msra.mxu0 0
        %1696 = vmatprep.subr.bf16.mxu0 0
        %1697 = vmatpush2.bf16.msra.mxu0 0
        %1698 = vmatprep.subr.bf16.mxu0 0
        %1699 = vmatpush2.bf16.msra.mxu0 0
        %1700 = vmatprep.subr.bf16.mxu0 0
        %1701 = vmatpush2.bf16.msra.mxu0 0
        %1702 = vmatprep.subr.bf16.mxu0 0
        %1703 = vmatpush2.bf16.msra.mxu0 0
        %1704 = vmatprep.mubr.bf16.mxu0 0
        %1705 = vmatmul.mubr.bf16.gmra.mxu0 %v1605
        %v1706 = vpop.f32.mrf.mxu0
        %v1707 = vadd.f32 0.0, %v1706
        %v1708 = vpop.f32.mrf.mxu0
        %v1709 = vadd.f32 0.0, %v1708
        %v1710 = vpop.f32.mrf.mxu0
        %v1711 = vpop.f32.mrf.mxu0
        %1712 = vdwg.mxu0
        %1713 = vmatprep.subr.bf16.mxu0 0
        %1714 = vmatpush1.bf16.msra.mxu0 0
        %1715 = vmatprep.subr.bf16.mxu0 0
        %1716 = vmatpush1.bf16.msra.mxu0 0
        %1717 = vmatprep.subr.bf16.mxu0 0
        %1718 = vmatpush1.bf16.msra.mxu0 0
        %1719 = vmatprep.subr.bf16.mxu0 0
        %1720 = vmatpush1.bf16.msra.mxu0 0
        %1721 = vmatprep.subr.bf16.mxu0 0
        %1722 = vmatpush1.bf16.msra.mxu0 0
        %1723 = vmatprep.subr.bf16.mxu0 0
        %1724 = vmatpush1.bf16.msra.mxu0 0
        %1725 = vmatprep.subr.bf16.mxu0 %v1623
        %1726 = vmatpush1.bf16.msra.mxu0 %v1620
        %1727 = vmatprep.subr.bf16.mxu0 %v1585
        %1728 = vmatpush1.bf16.msra.mxu0 %v1584
        %1729 = vmatprep.subr.bf16.mxu0 0
        %1730 = vmatpush2.bf16.msra.mxu0 0
        %1731 = vmatprep.subr.bf16.mxu0 0
        %1732 = vmatpush2.bf16.msra.mxu0 0
        %1733 = vmatprep.subr.bf16.mxu0 0
        %1734 = vmatpush2.bf16.msra.mxu0 0
        %1735 = vmatprep.subr.bf16.mxu0 0
        %1736 = vmatpush2.bf16.msra.mxu0 0
        %1737 = vmatprep.subr.bf16.mxu0 0
        %1738 = vmatpush2.bf16.msra.mxu0 0
        %1739 = vmatprep.subr.bf16.mxu0 0
        %1740 = vmatpush2.bf16.msra.mxu0 0
        %1741 = vmatprep.subr.bf16.mxu0 0
        %1742 = vmatpush2.bf16.msra.mxu0 0
        %1743 = vmatprep.subr.bf16.mxu0 0
        %1744 = vmatpush2.bf16.msra.mxu0 0
        %1745 = vmatprep.mubr.bf16.mxu0 0
        %1746 = vmatmul.mubr.bf16.gmra.mxu0 %v1605
        %v1747 = vpop.f32.mrf.mxu0
        %v1748 = vadd.f32 0.0, %v1747
        %v1749 = vpop.f32.mrf.mxu0
        %v1750 = vadd.f32 0.0, %v1749
        %v1751 = vpop.f32.mrf.mxu0
        %v1752 = vpop.f32.mrf.mxu0
        %1753 = vdwg.mxu0
        %1754 = vmatprep.subr.bf16.mxu0 0
        %1755 = vmatpush1.bf16.msra.mxu0 0
        %1756 = vmatprep.subr.bf16.mxu0 0
        %1757 = vmatpush1.bf16.msra.mxu0 0
        %1758 = vmatprep.subr.bf16.mxu0 0
        %1759 = vmatpush1.bf16.msra.mxu0 0
        %1760 = vmatprep.subr.bf16.mxu0 0
        %1761 = vmatpush1.bf16.msra.mxu0 0
        %1762 = vmatprep.subr.bf16.mxu0 0
        %1763 = vmatpush1.bf16.msra.mxu0 0
        %1764 = vmatprep.subr.bf16.mxu0 0
        %1765 = vmatpush1.bf16.msra.mxu0 0
        %1766 = vmatprep.subr.bf16.mxu0 %v1629
        %1767 = vmatpush1.bf16.msra.mxu0 %v1626
        %1768 = vmatprep.subr.bf16.mxu0 %v1587
        %1769 = vmatpush1.bf16.msra.mxu0 %v1586
        %1770 = vmatprep.subr.bf16.mxu0 0
        %1771 = vmatpush2.bf16.msra.mxu0 0
        %1772 = vmatprep.subr.bf16.mxu0 0
        %1773 = vmatpush2.bf16.msra.mxu0 0
        %1774 = vmatprep.subr.bf16.mxu0 0
        %1775 = vmatpush2.bf16.msra.mxu0 0
        %1776 = vmatprep.subr.bf16.mxu0 0
        %1777 = vmatpush2.bf16.msra.mxu0 0
        %1778 = vmatprep.subr.bf16.mxu0 0
        %1779 = vmatpush2.bf16.msra.mxu0 0
        %1780 = vmatprep.subr.bf16.mxu0 0
        %1781 = vmatpush2.bf16.msra.mxu0 0
        %1782 = vmatprep.subr.bf16.mxu0 0
        %1783 = vmatpush2.bf16.msra.mxu0 0
        %1784 = vmatprep.subr.bf16.mxu0 0
        %1785 = vmatpush2.bf16.msra.mxu0 0
        %1786 = vmatprep.mubr.bf16.mxu0 0
        %1787 = vmatmul.mubr.bf16.gmra.mxu0 %v1605
        %v1788 = vpop.f32.mrf.mxu0
        %v1789 = vadd.f32 0.0, %v1788
        %v1790 = vpop.f32.mrf.mxu0
        %v1791 = vadd.f32 0.0, %v1790
        %v1792 = vpop.f32.mrf.mxu0
        %v1793 = vpop.f32.mrf.mxu0
        %1794 = vdwg.mxu0
        %v1795 = vadd.f32 %v1436, %v1666
        %v1796 = vadd.f32 %v1437, %v1668
        %v1797 = vadd.f32 %v1438, %v1707
        %v1798 = vadd.f32 %v1439, %v1709
        %v1799 = vadd.f32 %v1440, %v1748
        %v1800 = vadd.f32 %v1441, %v1750
        %v1801 = vadd.f32 %v1442, %v1789
        %v1802 = vadd.f32 %v1443, %v1791
        %v1804 = vsel %vm368, %v1460, %v1484
        %v1806 = vsel %vm368, %v1461, %v1485
        %v1808 = vsel %vm368, %v1462, %v1486
        %v1810 = vsel %vm368, %v1463, %v1487
        %v1812 = vsel %vm368, %v1464, %v1488
        %v1814 = vsel %vm368, %v1465, %v1489
        %v1816 = vsel %vm368, %v1466, %v1490
        %v1818 = vsel %vm368, %v1467, %v1483
        %s1819 = scalar_lea.vmem [#allocation6], 20
        %v1820 = vld [vmem:[%s1819] sm:$0xf]
        %1829 = vrot.lane.b32.xlu0 %v1804, 119
        %v1830 = vpop.permute.xlu0 %1829
        %1831 = vrot.lane.b32.xlu0 %v1806, 119
        %v1832 = vpop.permute.xlu0 %1831
        %1833 = vrot.lane.b32.xlu0 %v1808, 119
        %v1834 = vpop.permute.xlu0 %1833
        %1835 = vrot.lane.b32.xlu0 %v1810, 119
        %v1836 = vpop.permute.xlu0 %1835
        %1837 = vrot.lane.b32.xlu0 %v1812, 119
        %v1838 = vpop.permute.xlu0 %1837
        %1839 = vrot.lane.b32.xlu0 %v1814, 119
        %v1840 = vpop.permute.xlu0 %1839
        %1841 = vrot.lane.b32.xlu0 %v1816, 119
        %v1842 = vpop.permute.xlu0 %1841
        %1843 = vrot.lane.b32.xlu0 %v1818, 119
        %v1844 = vpop.permute.xlu0 %1843
        %1845 = vrot.lane.b32.xlu0 %v1507, 119
        %v1846 = vpop.permute.xlu0 %1845
        %1847 = vrot.lane.b32.xlu0 %v1508, 119
        %v1848 = vpop.permute.xlu0 %1847
        %1849 = vrot.lane.b32.xlu0 %v1509, 119
        %v1850 = vpop.permute.xlu0 %1849
        %1851 = vrot.lane.b32.xlu0 %v1510, 119
        %v1852 = vpop.permute.xlu0 %1851
        %1853 = vrot.lane.b32.xlu0 %v1511, 119
        %v1854 = vpop.permute.xlu0 %1853
        %1855 = vrot.lane.b32.xlu0 %v1512, 119
        %v1856 = vpop.permute.xlu0 %1855
        %1857 = vrot.lane.b32.xlu0 %v1513, 119
        %v1858 = vpop.permute.xlu0 %1857
        %1859 = vrot.lane.b32.xlu0 %v1506, 119
        %v1860 = vpop.permute.xlu0 %1859
        %vm1861 = vcmask 973824
        %v1862 = vsel %vm1861, %v1830, %v1832
        %v1863 = vsel %vm1861, %v1832, %v1834
        %v1864 = vsel %vm1861, %v1834, %v1836
        %v1865 = vsel %vm1861, %v1836, %v1838
        %v1866 = vsel %vm1861, %v1838, %v1840
        %v1867 = vsel %vm1861, %v1840, %v1842
        %v1868 = vsel %vm1861, %v1842, %v1844
        %v1869 = vsel %vm1861, %v1846, %v1848
        %v1870 = vsel %vm1861, %v1848, %v1850
        %v1871 = vsel %vm1861, %v1850, %v1852
        %v1872 = vsel %vm1861, %v1852, %v1854
        %v1873 = vsel %vm1861, %v1854, %v1856
        %v1874 = vsel %vm1861, %v1856, %v1858
        %v1875 = vsel %vm1861, %v1858, %v1860
        %v1885 = vsel %vm481, %v1820, 0
        %v1888 = vsel %vm368, %v1869, 0
        %v1891 = vsel %vm368, %v1870, 0
        %v1894 = vsel %vm368, %v1871, 0
        %v1897 = vsel %vm368, %v1872, 0
        %v1900 = vsel %vm368, %v1873, 0
        %v1903 = vsel %vm368, %v1874, 0
        %v1906 = vsel %vm368, %v1875, 0
        %v1909 = vsel %vm368, %v1860, 0
        %1911 = vmatprep.subr.bf16.mxu0 0
        %1912 = vmatpush1.bf16.msra.mxu0 0
        %1913 = vmatprep.subr.bf16.mxu0 0
        %1914 = vmatpush1.bf16.msra.mxu0 0
        %1915 = vmatprep.subr.bf16.mxu0 0
        %1916 = vmatpush1.bf16.msra.mxu0 0
        %1917 = vmatprep.subr.bf16.mxu0 0
        %1918 = vmatpush1.bf16.msra.mxu0 0
        %1919 = vmatprep.subr.bf16.mxu0 0
        %1920 = vmatpush1.bf16.msra.mxu0 0
        %1921 = vmatprep.subr.bf16.mxu0 0
        %1922 = vmatpush1.bf16.msra.mxu0 0
        %1923 = vmatprep.subr.bf16.mxu0 %v1891
        %1924 = vmatpush1.bf16.msra.mxu0 %v1888
        %1925 = vmatprep.subr.bf16.mxu0 %v1863
        %1926 = vmatpush1.bf16.msra.mxu0 %v1862
        %1927 = vmatprep.subr.bf16.mxu0 0
        %1928 = vmatpush2.bf16.msra.mxu0 0
        %1929 = vmatprep.subr.bf16.mxu0 0
        %1930 = vmatpush2.bf16.msra.mxu0 0
        %1931 = vmatprep.subr.bf16.mxu0 0
        %1932 = vmatpush2.bf16.msra.mxu0 0
        %1933 = vmatprep.subr.bf16.mxu0 0
        %1934 = vmatpush2.bf16.msra.mxu0 0
        %1935 = vmatprep.subr.bf16.mxu0 0
        %1936 = vmatpush2.bf16.msra.mxu0 0
        %1937 = vmatprep.subr.bf16.mxu0 0
        %1938 = vmatpush2.bf16.msra.mxu0 0
        %1939 = vmatprep.subr.bf16.mxu0 0
        %1940 = vmatpush2.bf16.msra.mxu0 0
        %1941 = vmatprep.subr.bf16.mxu0 0
        %1942 = vmatpush2.bf16.msra.mxu0 0
        %1943 = vmatprep.mubr.bf16.mxu0 0
        %1944 = vmatmul.mubr.bf16.gmra.mxu0 %v1885
        %v1945 = vpop.f32.mrf.mxu0
        %v1946 = vadd.f32 0.0, %v1945
        %v1947 = vpop.f32.mrf.mxu0
        %v1948 = vadd.f32 0.0, %v1947
        %v1949 = vpop.f32.mrf.mxu0
        %v1950 = vpop.f32.mrf.mxu0
        %1951 = vdwg.mxu0
        %1952 = vmatprep.subr.bf16.mxu0 0
        %1953 = vmatpush1.bf16.msra.mxu0 0
        %1954 = vmatprep.subr.bf16.mxu0 0
        %1955 = vmatpush1.bf16.msra.mxu0 0
        %1956 = vmatprep.subr.bf16.mxu0 0
        %1957 = vmatpush1.bf16.msra.mxu0 0
        %1958 = vmatprep.subr.bf16.mxu0 0
        %1959 = vmatpush1.bf16.msra.mxu0 0
        %1960 = vmatprep.subr.bf16.mxu0 0
        %1961 = vmatpush1.bf16.msra.mxu0 0
        %1962 = vmatprep.subr.bf16.mxu0 0
        %1963 = vmatpush1.bf16.msra.mxu0 0
        %1964 = vmatprep.subr.bf16.mxu0 %v1897
        %1965 = vmatpush1.bf16.msra.mxu0 %v1894
        %1966 = vmatprep.subr.bf16.mxu0 %v1865
        %1967 = vmatpush1.bf16.msra.mxu0 %v1864
        %1968 = vmatprep.subr.bf16.mxu0 0
        %1969 = vmatpush2.bf16.msra.mxu0 0
        %1970 = vmatprep.subr.bf16.mxu0 0
        %1971 = vmatpush2.bf16.msra.mxu0 0
        %1972 = vmatprep.subr.bf16.mxu0 0
        %1973 = vmatpush2.bf16.msra.mxu0 0
        %1974 = vmatprep.subr.bf16.mxu0 0
        %1975 = vmatpush2.bf16.msra.mxu0 0
        %1976 = vmatprep.subr.bf16.mxu0 0
        %1977 = vmatpush2.bf16.msra.mxu0 0
        %1978 = vmatprep.subr.bf16.mxu0 0
        %1979 = vmatpush2.bf16.msra.mxu0 0
        %1980 = vmatprep.subr.bf16.mxu0 0
        %1981 = vmatpush2.bf16.msra.mxu0 0
        %1982 = vmatprep.subr.bf16.mxu0 0
        %1983 = vmatpush2.bf16.msra.mxu0 0
        %1984 = vmatprep.mubr.bf16.mxu0 0
        %1985 = vmatmul.mubr.bf16.gmra.mxu0 %v1885
        %v1986 = vpop.f32.mrf.mxu0
        %v1987 = vadd.f32 0.0, %v1986
        %v1988 = vpop.f32.mrf.mxu0
        %v1989 = vadd.f32 0.0, %v1988
        %v1990 = vpop.f32.mrf.mxu0
        %v1991 = vpop.f32.mrf.mxu0
        %1992 = vdwg.mxu0
        %1993 = vmatprep.subr.bf16.mxu0 0
        %1994 = vmatpush1.bf16.msra.mxu0 0
        %1995 = vmatprep.subr.bf16.mxu0 0
        %1996 = vmatpush1.bf16.msra.mxu0 0
        %1997 = vmatprep.subr.bf16.mxu0 0
        %1998 = vmatpush1.bf16.msra.mxu0 0
        %1999 = vmatprep.subr.bf16.mxu0 0
        %2000 = vmatpush1.bf16.msra.mxu0 0
        %2001 = vmatprep.subr.bf16.mxu0 0
        %2002 = vmatpush1.bf16.msra.mxu0 0
        %2003 = vmatprep.subr.bf16.mxu0 0
        %2004 = vmatpush1.bf16.msra.mxu0 0
        %2005 = vmatprep.subr.bf16.mxu0 %v1903
        %2006 = vmatpush1.bf16.msra.mxu0 %v1900
        %2007 = vmatprep.subr.bf16.mxu0 %v1867
        %2008 = vmatpush1.bf16.msra.mxu0 %v1866
        %2009 = vmatprep.subr.bf16.mxu0 0
        %2010 = vmatpush2.bf16.msra.mxu0 0
        %2011 = vmatprep.subr.bf16.mxu0 0
        %2012 = vmatpush2.bf16.msra.mxu0 0
        %2013 = vmatprep.subr.bf16.mxu0 0
        %2014 = vmatpush2.bf16.msra.mxu0 0
        %2015 = vmatprep.subr.bf16.mxu0 0
        %2016 = vmatpush2.bf16.msra.mxu0 0
        %2017 = vmatprep.subr.bf16.mxu0 0
        %2018 = vmatpush2.bf16.msra.mxu0 0
        %2019 = vmatprep.subr.bf16.mxu0 0
        %2020 = vmatpush2.bf16.msra.mxu0 0
        %2021 = vmatprep.subr.bf16.mxu0 0
        %2022 = vmatpush2.bf16.msra.mxu0 0
        %2023 = vmatprep.subr.bf16.mxu0 0
        %2024 = vmatpush2.bf16.msra.mxu0 0
        %2025 = vmatprep.mubr.bf16.mxu0 0
        %2026 = vmatmul.mubr.bf16.gmra.mxu0 %v1885
        %v2027 = vpop.f32.mrf.mxu0
        %v2028 = vadd.f32 0.0, %v2027
        %v2029 = vpop.f32.mrf.mxu0
        %v2030 = vadd.f32 0.0, %v2029
        %v2031 = vpop.f32.mrf.mxu0
        %v2032 = vpop.f32.mrf.mxu0
        %2033 = vdwg.mxu0
        %2034 = vmatprep.subr.bf16.mxu0 0
        %2035 = vmatpush1.bf16.msra.mxu0 0
        %2036 = vmatprep.subr.bf16.mxu0 0
        %2037 = vmatpush1.bf16.msra.mxu0 0
        %2038 = vmatprep.subr.bf16.mxu0 0
        %2039 = vmatpush1.bf16.msra.mxu0 0
        %2040 = vmatprep.subr.bf16.mxu0 0
        %2041 = vmatpush1.bf16.msra.mxu0 0
        %2042 = vmatprep.subr.bf16.mxu0 0
        %2043 = vmatpush1.bf16.msra.mxu0 0
        %2044 = vmatprep.subr.bf16.mxu0 0
        %2045 = vmatpush1.bf16.msra.mxu0 0
        %2046 = vmatprep.subr.bf16.mxu0 %v1909
        %2047 = vmatpush1.bf16.msra.mxu0 %v1906
        %2048 = vmatprep.subr.bf16.mxu0 %v1844
        %2049 = vmatpush1.bf16.msra.mxu0 %v1868
        %2050 = vmatprep.subr.bf16.mxu0 0
        %2051 = vmatpush2.bf16.msra.mxu0 0
        %2052 = vmatprep.subr.bf16.mxu0 0
        %2053 = vmatpush2.bf16.msra.mxu0 0
        %2054 = vmatprep.subr.bf16.mxu0 0
        %2055 = vmatpush2.bf16.msra.mxu0 0
        %2056 = vmatprep.subr.bf16.mxu0 0
        %2057 = vmatpush2.bf16.msra.mxu0 0
        %2058 = vmatprep.subr.bf16.mxu0 0
        %2059 = vmatpush2.bf16.msra.mxu0 0
        %2060 = vmatprep.subr.bf16.mxu0 0
        %2061 = vmatpush2.bf16.msra.mxu0 0
        %2062 = vmatprep.subr.bf16.mxu0 0
        %2063 = vmatpush2.bf16.msra.mxu0 0
        %2064 = vmatprep.subr.bf16.mxu0 0
        %2065 = vmatpush2.bf16.msra.mxu0 0
        %2066 = vmatprep.mubr.bf16.mxu0 0
        %2067 = vmatmul.mubr.bf16.gmra.mxu0 %v1885
        %v2068 = vpop.f32.mrf.mxu0
        %v2069 = vadd.f32 0.0, %v2068
        %v2070 = vpop.f32.mrf.mxu0
        %v2071 = vadd.f32 0.0, %v2070
        %v2072 = vpop.f32.mrf.mxu0
        %v2073 = vpop.f32.mrf.mxu0
        %2074 = vdwg.mxu0
        %v2075 = vadd.f32 %v1795, %v1946
        %v2076 = vadd.f32 %v1796, %v1948
        %v2077 = vadd.f32 %v1797, %v1987
        %v2078 = vadd.f32 %v1798, %v1989
        %v2079 = vadd.f32 %v1799, %v2028
        %v2080 = vadd.f32 %v1800, %v2030
        %v2081 = vadd.f32 %v1801, %v2069
        %v2082 = vadd.f32 %v1802, %v2071
        %v2083 = vld [vmem:[%s258 + $0x4] sm:$0xff]
        %v2084 = vld [vmem:[%s258 + $0xc] sm:$0xff]
        %v2085 = vld [vmem:[%s258 + $0x14] sm:$0xff]
        %v2086 = vld [vmem:[%s258 + $0x1c] sm:$0xff]
        %v2087 = vld [vmem:[%s258 + $0x24] sm:$0xf]
        %v2093 = vunpack.c.l.b16 %v2083
        %v2094 = vunpack.c.h.b16 %v2083
        %v2095 = vunpack.c.l.b16 %v2084
        %v2096 = vunpack.c.h.b16 %v2084
        %v2097 = vunpack.c.l.b16 %v2085
        %v2098 = vunpack.c.h.b16 %v2085
        %v2099 = vunpack.c.l.b16 %v2086
        %v2100 = vunpack.c.h.b16 %v2086
        %v2101 = vunpack.c.l.b16 %v2087
        %v2102 = vpack.c.b16 %v2093, %v2093
        %v2103 = vpack.c.b16 %v2094, %v2094
        %v2104 = vpack.c.b16 %v2095, %v2095
        %v2105 = vpack.c.b16 %v2096, %v2096
        %v2106 = vpack.c.b16 %v2097, %v2097
        %v2107 = vpack.c.b16 %v2098, %v2098
        %v2108 = vpack.c.b16 %v2099, %v2099
        %v2109 = vpack.c.b16 %v2100, %v2100
        %v2110 = vpack.c.b16 %v2101, %v2101
        %2111 = vrot.lane.b32.xlu0 %v2102, 127
        %v2112 = vpop.permute.xlu0 %2111
        %2113 = vrot.lane.b32.xlu0 %v2103, 127
        %v2114 = vpop.permute.xlu0 %2113
        %2115 = vrot.lane.b32.xlu0 %v2104, 127
        %v2116 = vpop.permute.xlu0 %2115
        %2117 = vrot.lane.b32.xlu0 %v2105, 127
        %v2118 = vpop.permute.xlu0 %2117
        %2119 = vrot.lane.b32.xlu0 %v2106, 127
        %v2120 = vpop.permute.xlu0 %2119
        %2121 = vrot.lane.b32.xlu0 %v2107, 127
        %v2122 = vpop.permute.xlu0 %2121
        %2123 = vrot.lane.b32.xlu0 %v2108, 127
        %v2124 = vpop.permute.xlu0 %2123
        %2125 = vrot.lane.b32.xlu0 %v2109, 127
        %v2126 = vpop.permute.xlu0 %2125
        %2127 = vrot.lane.b32.xlu0 %v2110, 127
        %v2128 = vpop.permute.xlu0 %2127
        %v2129 = vsel %vm336, %v2112, %v2114
        %v2130 = vsel %vm336, %v2114, %v2116
        %v2131 = vsel %vm336, %v2116, %v2118
        %v2132 = vsel %vm336, %v2118, %v2120
        %v2133 = vsel %vm336, %v2120, %v2122
        %v2134 = vsel %vm336, %v2122, %v2124
        %v2135 = vsel %vm336, %v2124, %v2126
        %v2136 = vsel %vm336, %v2126, %v2128
        %2137 = vrot.lane.b32.xlu0 %v2102, 126
        %v2138 = vpop.permute.xlu0 %2137
        %2139 = vrot.lane.b32.xlu0 %v2103, 126
        %v2140 = vpop.permute.xlu0 %2139
        %2141 = vrot.lane.b32.xlu0 %v2104, 126
        %v2142 = vpop.permute.xlu0 %2141
        %2143 = vrot.lane.b32.xlu0 %v2105, 126
        %v2144 = vpop.permute.xlu0 %2143
        %2145 = vrot.lane.b32.xlu0 %v2106, 126
        %v2146 = vpop.permute.xlu0 %2145
        %2147 = vrot.lane.b32.xlu0 %v2107, 126
        %v2148 = vpop.permute.xlu0 %2147
        %2149 = vrot.lane.b32.xlu0 %v2108, 126
        %v2150 = vpop.permute.xlu0 %2149
        %2151 = vrot.lane.b32.xlu0 %v2109, 126
        %v2152 = vpop.permute.xlu0 %2151
        %2153 = vrot.lane.b32.xlu0 %v2110, 126
        %v2154 = vpop.permute.xlu0 %2153
        %v2155 = vsel %vm360, %v2138, %v2140
        %v2156 = vsel %vm360, %v2140, %v2142
        %v2157 = vsel %vm360, %v2142, %v2144
        %v2158 = vsel %vm360, %v2144, %v2146
        %v2159 = vsel %vm360, %v2146, %v2148
        %v2160 = vsel %vm360, %v2148, %v2150
        %v2161 = vsel %vm360, %v2150, %v2152
        %v2162 = vsel %vm360, %v2152, %v2154
        %v2165 = vsel %vm368, %v2102, %v2129
        %v2168 = vsel %vm368, %v2103, %v2130
        %v2171 = vsel %vm368, %v2104, %v2131
        %v2174 = vsel %vm368, %v2105, %v2132
        %v2177 = vsel %vm368, %v2106, %v2133
        %v2180 = vsel %vm368, %v2107, %v2134
        %v2183 = vsel %vm368, %v2108, %v2135
        %v2186 = vsel %vm368, %v2109, %v2136
        %v2189 = vsel %vm368, %v2110, %v2128
        %s2190 = scalar_lea.vmem [#allocation6], 24
        %v2191 = vld [vmem:[%s2190] sm:$0xf]
        %2201 = vrot.lane.b32.xlu0 %v2165, 39
        %v2202 = vpop.permute.xlu0 %2201
        %2203 = vrot.lane.b32.xlu0 %v2168, 39
        %v2204 = vpop.permute.xlu0 %2203
        %2205 = vrot.lane.b32.xlu0 %v2171, 39
        %v2206 = vpop.permute.xlu0 %2205
        %2207 = vrot.lane.b32.xlu0 %v2174, 39
        %v2208 = vpop.permute.xlu0 %2207
        %2209 = vrot.lane.b32.xlu0 %v2177, 39
        %v2210 = vpop.permute.xlu0 %2209
        %2211 = vrot.lane.b32.xlu0 %v2180, 39
        %v2212 = vpop.permute.xlu0 %2211
        %2213 = vrot.lane.b32.xlu0 %v2183, 39
        %v2214 = vpop.permute.xlu0 %2213
        %2215 = vrot.lane.b32.xlu0 %v2186, 39
        %v2216 = vpop.permute.xlu0 %2215
        %2217 = vrot.lane.b32.xlu0 %v2189, 39
        %v2218 = vpop.permute.xlu0 %2217
        %2219 = vrot.lane.b32.xlu0 %v2155, 39
        %v2220 = vpop.permute.xlu0 %2219
        %2221 = vrot.lane.b32.xlu0 %v2156, 39
        %v2222 = vpop.permute.xlu0 %2221
        %2223 = vrot.lane.b32.xlu0 %v2157, 39
        %v2224 = vpop.permute.xlu0 %2223
        %2225 = vrot.lane.b32.xlu0 %v2158, 39
        %v2226 = vpop.permute.xlu0 %2225
        %2227 = vrot.lane.b32.xlu0 %v2159, 39
        %v2228 = vpop.permute.xlu0 %2227
        %2229 = vrot.lane.b32.xlu0 %v2160, 39
        %v2230 = vpop.permute.xlu0 %2229
        %2231 = vrot.lane.b32.xlu0 %v2161, 39
        %v2232 = vpop.permute.xlu0 %2231
        %2233 = vrot.lane.b32.xlu0 %v2162, 39
        %v2234 = vpop.permute.xlu0 %2233
        %2235 = vrot.lane.b32.xlu0 %v2154, 39
        %v2236 = vpop.permute.xlu0 %2235
        %vm2237 = vcmask 318464
        %v2238 = vsel %vm2237, %v2202, %v2204
        %v2239 = vsel %vm2237, %v2204, %v2206
        %v2240 = vsel %vm2237, %v2206, %v2208
        %v2241 = vsel %vm2237, %v2208, %v2210
        %v2242 = vsel %vm2237, %v2210, %v2212
        %v2243 = vsel %vm2237, %v2212, %v2214
        %v2244 = vsel %vm2237, %v2214, %v2216
        %v2245 = vsel %vm2237, %v2216, %v2218
        %v2246 = vsel %vm2237, %v2220, %v2222
        %v2247 = vsel %vm2237, %v2222, %v2224
        %v2248 = vsel %vm2237, %v2224, %v2226
        %v2249 = vsel %vm2237, %v2226, %v2228
        %v2250 = vsel %vm2237, %v2228, %v2230
        %v2251 = vsel %vm2237, %v2230, %v2232
        %v2252 = vsel %vm2237, %v2232, %v2234
        %v2253 = vsel %vm2237, %v2234, %v2236
        %v2263 = vsel %vm481, %v2191, 0
        %v2266 = vsel %vm368, %v2246, 0
        %v2269 = vsel %vm368, %v2247, 0
        %v2272 = vsel %vm368, %v2248, 0
        %v2275 = vsel %vm368, %v2249, 0
        %v2278 = vsel %vm368, %v2250, 0
        %v2281 = vsel %vm368, %v2251, 0
        %v2284 = vsel %vm368, %v2252, 0
        %v2287 = vsel %vm368, %v2253, 0
        %2289 = vmatprep.subr.bf16.mxu0 0
        %2290 = vmatpush1.bf16.msra.mxu0 0
        %2291 = vmatprep.subr.bf16.mxu0 0
        %2292 = vmatpush1.bf16.msra.mxu0 0
        %2293 = vmatprep.subr.bf16.mxu0 0
        %2294 = vmatpush1.bf16.msra.mxu0 0
        %2295 = vmatprep.subr.bf16.mxu0 0
        %2296 = vmatpush1.bf16.msra.mxu0 0
        %2297 = vmatprep.subr.bf16.mxu0 0
        %2298 = vmatpush1.bf16.msra.mxu0 0
        %2299 = vmatprep.subr.bf16.mxu0 0
        %2300 = vmatpush1.bf16.msra.mxu0 0
        %2301 = vmatprep.subr.bf16.mxu0 %v2269
        %2302 = vmatpush1.bf16.msra.mxu0 %v2266
        %2303 = vmatprep.subr.bf16.mxu0 %v2239
        %2304 = vmatpush1.bf16.msra.mxu0 %v2238
        %2305 = vmatprep.subr.bf16.mxu0 0
        %2306 = vmatpush2.bf16.msra.mxu0 0
        %2307 = vmatprep.subr.bf16.mxu0 0
        %2308 = vmatpush2.bf16.msra.mxu0 0
        %2309 = vmatprep.subr.bf16.mxu0 0
        %2310 = vmatpush2.bf16.msra.mxu0 0
        %2311 = vmatprep.subr.bf16.mxu0 0
        %2312 = vmatpush2.bf16.msra.mxu0 0
        %2313 = vmatprep.subr.bf16.mxu0 0
        %2314 = vmatpush2.bf16.msra.mxu0 0
        %2315 = vmatprep.subr.bf16.mxu0 0
        %2316 = vmatpush2.bf16.msra.mxu0 0
        %2317 = vmatprep.subr.bf16.mxu0 0
        %2318 = vmatpush2.bf16.msra.mxu0 0
        %2319 = vmatprep.subr.bf16.mxu0 0
        %2320 = vmatpush2.bf16.msra.mxu0 0
        %2321 = vmatprep.mubr.bf16.mxu0 0
        %2322 = vmatmul.mubr.bf16.gmra.mxu0 %v2263
        %v2323 = vpop.f32.mrf.mxu0
        %v2324 = vadd.f32 0.0, %v2323
        %v2325 = vpop.f32.mrf.mxu0
        %v2326 = vadd.f32 0.0, %v2325
        %v2327 = vpop.f32.mrf.mxu0
        %v2328 = vpop.f32.mrf.mxu0
        %2329 = vdwg.mxu0
        %2330 = vmatprep.subr.bf16.mxu0 0
        %2331 = vmatpush1.bf16.msra.mxu0 0
        %2332 = vmatprep.subr.bf16.mxu0 0
        %2333 = vmatpush1.bf16.msra.mxu0 0
        %2334 = vmatprep.subr.bf16.mxu0 0
        %2335 = vmatpush1.bf16.msra.mxu0 0
        %2336 = vmatprep.subr.bf16.mxu0 0
        %2337 = vmatpush1.bf16.msra.mxu0 0
        %2338 = vmatprep.subr.bf16.mxu0 0
        %2339 = vmatpush1.bf16.msra.mxu0 0
        %2340 = vmatprep.subr.bf16.mxu0 0
        %2341 = vmatpush1.bf16.msra.mxu0 0
        %2342 = vmatprep.subr.bf16.mxu0 %v2275
        %2343 = vmatpush1.bf16.msra.mxu0 %v2272
        %2344 = vmatprep.subr.bf16.mxu0 %v2241
        %2345 = vmatpush1.bf16.msra.mxu0 %v2240
        %2346 = vmatprep.subr.bf16.mxu0 0
        %2347 = vmatpush2.bf16.msra.mxu0 0
        %2348 = vmatprep.subr.bf16.mxu0 0
        %2349 = vmatpush2.bf16.msra.mxu0 0
        %2350 = vmatprep.subr.bf16.mxu0 0
        %2351 = vmatpush2.bf16.msra.mxu0 0
        %2352 = vmatprep.subr.bf16.mxu0 0
        %2353 = vmatpush2.bf16.msra.mxu0 0
        %2354 = vmatprep.subr.bf16.mxu0 0
        %2355 = vmatpush2.bf16.msra.mxu0 0
        %2356 = vmatprep.subr.bf16.mxu0 0
        %2357 = vmatpush2.bf16.msra.mxu0 0
        %2358 = vmatprep.subr.bf16.mxu0 0
        %2359 = vmatpush2.bf16.msra.mxu0 0
        %2360 = vmatprep.subr.bf16.mxu0 0
        %2361 = vmatpush2.bf16.msra.mxu0 0
        %2362 = vmatprep.mubr.bf16.mxu0 0
        %2363 = vmatmul.mubr.bf16.gmra.mxu0 %v2263
        %v2364 = vpop.f32.mrf.mxu0
        %v2365 = vadd.f32 0.0, %v2364
        %v2366 = vpop.f32.mrf.mxu0
        %v2367 = vadd.f32 0.0, %v2366
        %v2368 = vpop.f32.mrf.mxu0
        %v2369 = vpop.f32.mrf.mxu0
        %2370 = vdwg.mxu0
        %2371 = vmatprep.subr.bf16.mxu0 0
        %2372 = vmatpush1.bf16.msra.mxu0 0
        %2373 = vmatprep.subr.bf16.mxu0 0
        %2374 = vmatpush1.bf16.msra.mxu0 0
        %2375 = vmatprep.subr.bf16.mxu0 0
        %2376 = vmatpush1.bf16.msra.mxu0 0
        %2377 = vmatprep.subr.bf16.mxu0 0
        %2378 = vmatpush1.bf16.msra.mxu0 0
        %2379 = vmatprep.subr.bf16.mxu0 0
        %2380 = vmatpush1.bf16.msra.mxu0 0
        %2381 = vmatprep.subr.bf16.mxu0 0
        %2382 = vmatpush1.bf16.msra.mxu0 0
        %2383 = vmatprep.subr.bf16.mxu0 %v2281
        %2384 = vmatpush1.bf16.msra.mxu0 %v2278
        %2385 = vmatprep.subr.bf16.mxu0 %v2243
        %2386 = vmatpush1.bf16.msra.mxu0 %v2242
        %2387 = vmatprep.subr.bf16.mxu0 0
        %2388 = vmatpush2.bf16.msra.mxu0 0
        %2389 = vmatprep.subr.bf16.mxu0 0
        %2390 = vmatpush2.bf16.msra.mxu0 0
        %2391 = vmatprep.subr.bf16.mxu0 0
        %2392 = vmatpush2.bf16.msra.mxu0 0
        %2393 = vmatprep.subr.bf16.mxu0 0
        %2394 = vmatpush2.bf16.msra.mxu0 0
        %2395 = vmatprep.subr.bf16.mxu0 0
        %2396 = vmatpush2.bf16.msra.mxu0 0
        %2397 = vmatprep.subr.bf16.mxu0 0
        %2398 = vmatpush2.bf16.msra.mxu0 0
        %2399 = vmatprep.subr.bf16.mxu0 0
        %2400 = vmatpush2.bf16.msra.mxu0 0
        %2401 = vmatprep.subr.bf16.mxu0 0
        %2402 = vmatpush2.bf16.msra.mxu0 0
        %2403 = vmatprep.mubr.bf16.mxu0 0
        %2404 = vmatmul.mubr.bf16.gmra.mxu0 %v2263
        %v2405 = vpop.f32.mrf.mxu0
        %v2406 = vadd.f32 0.0, %v2405
        %v2407 = vpop.f32.mrf.mxu0
        %v2408 = vadd.f32 0.0, %v2407
        %v2409 = vpop.f32.mrf.mxu0
        %v2410 = vpop.f32.mrf.mxu0
        %2411 = vdwg.mxu0
        %2412 = vmatprep.subr.bf16.mxu0 0
        %2413 = vmatpush1.bf16.msra.mxu0 0
        %2414 = vmatprep.subr.bf16.mxu0 0
        %2415 = vmatpush1.bf16.msra.mxu0 0
        %2416 = vmatprep.subr.bf16.mxu0 0
        %2417 = vmatpush1.bf16.msra.mxu0 0
        %2418 = vmatprep.subr.bf16.mxu0 0
        %2419 = vmatpush1.bf16.msra.mxu0 0
        %2420 = vmatprep.subr.bf16.mxu0 0
        %2421 = vmatpush1.bf16.msra.mxu0 0
        %2422 = vmatprep.subr.bf16.mxu0 0
        %2423 = vmatpush1.bf16.msra.mxu0 0
        %2424 = vmatprep.subr.bf16.mxu0 %v2287
        %2425 = vmatpush1.bf16.msra.mxu0 %v2284
        %2426 = vmatprep.subr.bf16.mxu0 %v2245
        %2427 = vmatpush1.bf16.msra.mxu0 %v2244
        %2428 = vmatprep.subr.bf16.mxu0 0
        %2429 = vmatpush2.bf16.msra.mxu0 0
        %2430 = vmatprep.subr.bf16.mxu0 0
        %2431 = vmatpush2.bf16.msra.mxu0 0
        %2432 = vmatprep.subr.bf16.mxu0 0
        %2433 = vmatpush2.bf16.msra.mxu0 0
        %2434 = vmatprep.subr.bf16.mxu0 0
        %2435 = vmatpush2.bf16.msra.mxu0 0
        %2436 = vmatprep.subr.bf16.mxu0 0
        %2437 = vmatpush2.bf16.msra.mxu0 0
        %2438 = vmatprep.subr.bf16.mxu0 0
        %2439 = vmatpush2.bf16.msra.mxu0 0
        %2440 = vmatprep.subr.bf16.mxu0 0
        %2441 = vmatpush2.bf16.msra.mxu0 0
        %2442 = vmatprep.subr.bf16.mxu0 0
        %2443 = vmatpush2.bf16.msra.mxu0 0
        %2444 = vmatprep.mubr.bf16.mxu0 0
        %2445 = vmatmul.mubr.bf16.gmra.mxu0 %v2263
        %v2446 = vpop.f32.mrf.mxu0
        %v2447 = vadd.f32 0.0, %v2446
        %v2448 = vpop.f32.mrf.mxu0
        %v2449 = vadd.f32 0.0, %v2448
        %v2450 = vpop.f32.mrf.mxu0
        %v2451 = vpop.f32.mrf.mxu0
        %2452 = vdwg.mxu0
        %v2453 = vadd.f32 %v2075, %v2324
        %v2454 = vadd.f32 %v2076, %v2326
        %v2455 = vadd.f32 %v2077, %v2365
        %v2456 = vadd.f32 %v2078, %v2367
        %v2457 = vadd.f32 %v2079, %v2406
        %v2458 = vadd.f32 %v2080, %v2408
        %v2459 = vadd.f32 %v2081, %v2447
        %v2460 = vadd.f32 %v2082, %v2449
        %s2461 = scalar_lea.vmem [#allocation6], 28
        %v2462 = vld [vmem:[%s2461] sm:$0xf]
        %2463 = vrot.lane.b32.xlu0 %v2165, 29
        %v2464 = vpop.permute.xlu0 %2463
        %2465 = vrot.lane.b32.xlu0 %v2168, 29
        %v2466 = vpop.permute.xlu0 %2465
        %2467 = vrot.lane.b32.xlu0 %v2171, 29
        %v2468 = vpop.permute.xlu0 %2467
        %2469 = vrot.lane.b32.xlu0 %v2174, 29
        %v2470 = vpop.permute.xlu0 %2469
        %2471 = vrot.lane.b32.xlu0 %v2177, 29
        %v2472 = vpop.permute.xlu0 %2471
        %2473 = vrot.lane.b32.xlu0 %v2180, 29
        %v2474 = vpop.permute.xlu0 %2473
        %2475 = vrot.lane.b32.xlu0 %v2183, 29
        %v2476 = vpop.permute.xlu0 %2475
        %2477 = vrot.lane.b32.xlu0 %v2186, 29
        %v2478 = vpop.permute.xlu0 %2477
        %2479 = vrot.lane.b32.xlu0 %v2189, 29
        %v2480 = vpop.permute.xlu0 %2479
        %2481 = vrot.lane.b32.xlu0 %v2155, 29
        %v2482 = vpop.permute.xlu0 %2481
        %2483 = vrot.lane.b32.xlu0 %v2156, 29
        %v2484 = vpop.permute.xlu0 %2483
        %2485 = vrot.lane.b32.xlu0 %v2157, 29
        %v2486 = vpop.permute.xlu0 %2485
        %2487 = vrot.lane.b32.xlu0 %v2158, 29
        %v2488 = vpop.permute.xlu0 %2487
        %2489 = vrot.lane.b32.xlu0 %v2159, 29
        %v2490 = vpop.permute.xlu0 %2489
        %2491 = vrot.lane.b32.xlu0 %v2160, 29
        %v2492 = vpop.permute.xlu0 %2491
        %2493 = vrot.lane.b32.xlu0 %v2161, 29
        %v2494 = vpop.permute.xlu0 %2493
        %2495 = vrot.lane.b32.xlu0 %v2162, 29
        %v2496 = vpop.permute.xlu0 %2495
        %2497 = vrot.lane.b32.xlu0 %v2154, 29
        %v2498 = vpop.permute.xlu0 %2497
        %vm2499 = vcmask 236544
        %v2500 = vsel %vm2499, %v2464, %v2466
        %v2501 = vsel %vm2499, %v2466, %v2468
        %v2502 = vsel %vm2499, %v2468, %v2470
        %v2503 = vsel %vm2499, %v2470, %v2472
        %v2504 = vsel %vm2499, %v2472, %v2474
        %v2505 = vsel %vm2499, %v2474, %v2476
        %v2506 = vsel %vm2499, %v2476, %v2478
        %v2507 = vsel %vm2499, %v2478, %v2480
        %v2508 = vsel %vm2499, %v2482, %v2484
        %v2509 = vsel %vm2499, %v2484, %v2486
        %v2510 = vsel %vm2499, %v2486, %v2488
        %v2511 = vsel %vm2499, %v2488, %v2490
        %v2512 = vsel %vm2499, %v2490, %v2492
        %v2513 = vsel %vm2499, %v2492, %v2494
        %v2514 = vsel %vm2499, %v2494, %v2496
        %v2515 = vsel %vm2499, %v2496, %v2498
        %v2525 = vsel %vm481, %v2462, 0
        %v2528 = vsel %vm368, %v2508, 0
        %v2531 = vsel %vm368, %v2509, 0
        %v2534 = vsel %vm368, %v2510, 0
        %v2537 = vsel %vm368, %v2511, 0
        %v2540 = vsel %vm368, %v2512, 0
        %v2543 = vsel %vm368, %v2513, 0
        %v2546 = vsel %vm368, %v2514, 0
        %v2549 = vsel %vm368, %v2515, 0
        %2551 = vmatprep.subr.bf16.mxu0 0
        %2552 = vmatpush1.bf16.msra.mxu0 0
        %2553 = vmatprep.subr.bf16.mxu0 0
        %2554 = vmatpush1.bf16.msra.mxu0 0
        %2555 = vmatprep.subr.bf16.mxu0 0
        %2556 = vmatpush1.bf16.msra.mxu0 0
        %2557 = vmatprep.subr.bf16.mxu0 0
        %2558 = vmatpush1.bf16.msra.mxu0 0
        %2559 = vmatprep.subr.bf16.mxu0 0
        %2560 = vmatpush1.bf16.msra.mxu0 0
        %2561 = vmatprep.subr.bf16.mxu0 0
        %2562 = vmatpush1.bf16.msra.mxu0 0
        %2563 = vmatprep.subr.bf16.mxu0 %v2531
        %2564 = vmatpush1.bf16.msra.mxu0 %v2528
        %2565 = vmatprep.subr.bf16.mxu0 %v2501
        %2566 = vmatpush1.bf16.msra.mxu0 %v2500
        %2567 = vmatprep.subr.bf16.mxu0 0
        %2568 = vmatpush2.bf16.msra.mxu0 0
        %2569 = vmatprep.subr.bf16.mxu0 0
        %2570 = vmatpush2.bf16.msra.mxu0 0
        %2571 = vmatprep.subr.bf16.mxu0 0
        %2572 = vmatpush2.bf16.msra.mxu0 0
        %2573 = vmatprep.subr.bf16.mxu0 0
        %2574 = vmatpush2.bf16.msra.mxu0 0
        %2575 = vmatprep.subr.bf16.mxu0 0
        %2576 = vmatpush2.bf16.msra.mxu0 0
        %2577 = vmatprep.subr.bf16.mxu0 0
        %2578 = vmatpush2.bf16.msra.mxu0 0
        %2579 = vmatprep.subr.bf16.mxu0 0
        %2580 = vmatpush2.bf16.msra.mxu0 0
        %2581 = vmatprep.subr.bf16.mxu0 0
        %2582 = vmatpush2.bf16.msra.mxu0 0
        %2583 = vmatprep.mubr.bf16.mxu0 0
        %2584 = vmatmul.mubr.bf16.gmra.mxu0 %v2525
        %v2585 = vpop.f32.mrf.mxu0
        %v2586 = vadd.f32 0.0, %v2585
        %v2587 = vpop.f32.mrf.mxu0
        %v2588 = vadd.f32 0.0, %v2587
        %v2589 = vpop.f32.mrf.mxu0
        %v2590 = vpop.f32.mrf.mxu0
        %2591 = vdwg.mxu0
        %2592 = vmatprep.subr.bf16.mxu0 0
        %2593 = vmatpush1.bf16.msra.mxu0 0
        %2594 = vmatprep.subr.bf16.mxu0 0
        %2595 = vmatpush1.bf16.msra.mxu0 0
        %2596 = vmatprep.subr.bf16.mxu0 0
        %2597 = vmatpush1.bf16.msra.mxu0 0
        %2598 = vmatprep.subr.bf16.mxu0 0
        %2599 = vmatpush1.bf16.msra.mxu0 0
        %2600 = vmatprep.subr.bf16.mxu0 0
        %2601 = vmatpush1.bf16.msra.mxu0 0
        %2602 = vmatprep.subr.bf16.mxu0 0
        %2603 = vmatpush1.bf16.msra.mxu0 0
        %2604 = vmatprep.subr.bf16.mxu0 %v2537
        %2605 = vmatpush1.bf16.msra.mxu0 %v2534
        %2606 = vmatprep.subr.bf16.mxu0 %v2503
        %2607 = vmatpush1.bf16.msra.mxu0 %v2502
        %2608 = vmatprep.subr.bf16.mxu0 0
        %2609 = vmatpush2.bf16.msra.mxu0 0
        %2610 = vmatprep.subr.bf16.mxu0 0
        %2611 = vmatpush2.bf16.msra.mxu0 0
        %2612 = vmatprep.subr.bf16.mxu0 0
        %2613 = vmatpush2.bf16.msra.mxu0 0
        %2614 = vmatprep.subr.bf16.mxu0 0
        %2615 = vmatpush2.bf16.msra.mxu0 0
        %2616 = vmatprep.subr.bf16.mxu0 0
        %2617 = vmatpush2.bf16.msra.mxu0 0
        %2618 = vmatprep.subr.bf16.mxu0 0
        %2619 = vmatpush2.bf16.msra.mxu0 0
        %2620 = vmatprep.subr.bf16.mxu0 0
        %2621 = vmatpush2.bf16.msra.mxu0 0
        %2622 = vmatprep.subr.bf16.mxu0 0
        %2623 = vmatpush2.bf16.msra.mxu0 0
        %2624 = vmatprep.mubr.bf16.mxu0 0
        %2625 = vmatmul.mubr.bf16.gmra.mxu0 %v2525
        %v2626 = vpop.f32.mrf.mxu0
        %v2627 = vadd.f32 0.0, %v2626
        %v2628 = vpop.f32.mrf.mxu0
        %v2629 = vadd.f32 0.0, %v2628
        %v2630 = vpop.f32.mrf.mxu0
        %v2631 = vpop.f32.mrf.mxu0
        %2632 = vdwg.mxu0
        %2633 = vmatprep.subr.bf16.mxu0 0
        %2634 = vmatpush1.bf16.msra.mxu0 0
        %2635 = vmatprep.subr.bf16.mxu0 0
        %2636 = vmatpush1.bf16.msra.mxu0 0
        %2637 = vmatprep.subr.bf16.mxu0 0
        %2638 = vmatpush1.bf16.msra.mxu0 0
        %2639 = vmatprep.subr.bf16.mxu0 0
        %2640 = vmatpush1.bf16.msra.mxu0 0
        %2641 = vmatprep.subr.bf16.mxu0 0
        %2642 = vmatpush1.bf16.msra.mxu0 0
        %2643 = vmatprep.subr.bf16.mxu0 0
        %2644 = vmatpush1.bf16.msra.mxu0 0
        %2645 = vmatprep.subr.bf16.mxu0 %v2543
        %2646 = vmatpush1.bf16.msra.mxu0 %v2540
        %2647 = vmatprep.subr.bf16.mxu0 %v2505
        %2648 = vmatpush1.bf16.msra.mxu0 %v2504
        %2649 = vmatprep.subr.bf16.mxu0 0
        %2650 = vmatpush2.bf16.msra.mxu0 0
        %2651 = vmatprep.subr.bf16.mxu0 0
        %2652 = vmatpush2.bf16.msra.mxu0 0
        %2653 = vmatprep.subr.bf16.mxu0 0
        %2654 = vmatpush2.bf16.msra.mxu0 0
        %2655 = vmatprep.subr.bf16.mxu0 0
        %2656 = vmatpush2.bf16.msra.mxu0 0
        %2657 = vmatprep.subr.bf16.mxu0 0
        %2658 = vmatpush2.bf16.msra.mxu0 0
        %2659 = vmatprep.subr.bf16.mxu0 0
        %2660 = vmatpush2.bf16.msra.mxu0 0
        %2661 = vmatprep.subr.bf16.mxu0 0
        %2662 = vmatpush2.bf16.msra.mxu0 0
        %2663 = vmatprep.subr.bf16.mxu0 0
        %2664 = vmatpush2.bf16.msra.mxu0 0
        %2665 = vmatprep.mubr.bf16.mxu0 0
        %2666 = vmatmul.mubr.bf16.gmra.mxu0 %v2525
        %v2667 = vpop.f32.mrf.mxu0
        %v2668 = vadd.f32 0.0, %v2667
        %v2669 = vpop.f32.mrf.mxu0
        %v2670 = vadd.f32 0.0, %v2669
        %v2671 = vpop.f32.mrf.mxu0
        %v2672 = vpop.f32.mrf.mxu0
        %2673 = vdwg.mxu0
        %2674 = vmatprep.subr.bf16.mxu0 0
        %2675 = vmatpush1.bf16.msra.mxu0 0
        %2676 = vmatprep.subr.bf16.mxu0 0
        %2677 = vmatpush1.bf16.msra.mxu0 0
        %2678 = vmatprep.subr.bf16.mxu0 0
        %2679 = vmatpush1.bf16.msra.mxu0 0
        %2680 = vmatprep.subr.bf16.mxu0 0
        %2681 = vmatpush1.bf16.msra.mxu0 0
        %2682 = vmatprep.subr.bf16.mxu0 0
        %2683 = vmatpush1.bf16.msra.mxu0 0
        %2684 = vmatprep.subr.bf16.mxu0 0
        %2685 = vmatpush1.bf16.msra.mxu0 0
        %2686 = vmatprep.subr.bf16.mxu0 %v2549
        %2687 = vmatpush1.bf16.msra.mxu0 %v2546
        %2688 = vmatprep.subr.bf16.mxu0 %v2507
        %2689 = vmatpush1.bf16.msra.mxu0 %v2506
        %2690 = vmatprep.subr.bf16.mxu0 0
        %2691 = vmatpush2.bf16.msra.mxu0 0
        %2692 = vmatprep.subr.bf16.mxu0 0
        %2693 = vmatpush2.bf16.msra.mxu0 0
        %2694 = vmatprep.subr.bf16.mxu0 0
        %2695 = vmatpush2.bf16.msra.mxu0 0
        %2696 = vmatprep.subr.bf16.mxu0 0
        %2697 = vmatpush2.bf16.msra.mxu0 0
        %2698 = vmatprep.subr.bf16.mxu0 0
        %2699 = vmatpush2.bf16.msra.mxu0 0
        %2700 = vmatprep.subr.bf16.mxu0 0
        %2701 = vmatpush2.bf16.msra.mxu0 0
        %2702 = vmatprep.subr.bf16.mxu0 0
        %2703 = vmatpush2.bf16.msra.mxu0 0
        %2704 = vmatprep.subr.bf16.mxu0 0
        %2705 = vmatpush2.bf16.msra.mxu0 0
        %2706 = vmatprep.mubr.bf16.mxu0 0
        %2707 = vmatmul.mubr.bf16.gmra.mxu0 %v2525
        %v2708 = vpop.f32.mrf.mxu0
        %v2709 = vadd.f32 0.0, %v2708
        %v2710 = vpop.f32.mrf.mxu0
        %v2711 = vadd.f32 0.0, %v2710
        %v2712 = vpop.f32.mrf.mxu0
        %v2713 = vpop.f32.mrf.mxu0
        %2714 = vdwg.mxu0
        %v2715 = vadd.f32 %v2453, %v2586
        %v2716 = vadd.f32 %v2454, %v2588
        %v2717 = vadd.f32 %v2455, %v2627
        %v2718 = vadd.f32 %v2456, %v2629
        %v2719 = vadd.f32 %v2457, %v2668
        %v2720 = vadd.f32 %v2458, %v2670
        %v2721 = vadd.f32 %v2459, %v2709
        %v2722 = vadd.f32 %v2460, %v2711
        %s2723 = scalar_lea.vmem [#allocation6], 32
        %v2724 = vld [vmem:[%s2723] sm:$0xf]
        %2725 = vrot.lane.b32.xlu0 %v2165, 19
        %v2726 = vpop.permute.xlu0 %2725
        %2727 = vrot.lane.b32.xlu0 %v2168, 19
        %v2728 = vpop.permute.xlu0 %2727
        %2729 = vrot.lane.b32.xlu0 %v2171, 19
        %v2730 = vpop.permute.xlu0 %2729
        %2731 = vrot.lane.b32.xlu0 %v2174, 19
        %v2732 = vpop.permute.xlu0 %2731
        %2733 = vrot.lane.b32.xlu0 %v2177, 19
        %v2734 = vpop.permute.xlu0 %2733
        %2735 = vrot.lane.b32.xlu0 %v2180, 19
        %v2736 = vpop.permute.xlu0 %2735
        %2737 = vrot.lane.b32.xlu0 %v2183, 19
        %v2738 = vpop.permute.xlu0 %2737
        %2739 = vrot.lane.b32.xlu0 %v2186, 19
        %v2740 = vpop.permute.xlu0 %2739
        %2741 = vrot.lane.b32.xlu0 %v2189, 19
        %v2742 = vpop.permute.xlu0 %2741
        %2743 = vrot.lane.b32.xlu0 %v2155, 19
        %v2744 = vpop.permute.xlu0 %2743
        %2745 = vrot.lane.b32.xlu0 %v2156, 19
        %v2746 = vpop.permute.xlu0 %2745
        %2747 = vrot.lane.b32.xlu0 %v2157, 19
        %v2748 = vpop.permute.xlu0 %2747
        %2749 = vrot.lane.b32.xlu0 %v2158, 19
        %v2750 = vpop.permute.xlu0 %2749
        %2751 = vrot.lane.b32.xlu0 %v2159, 19
        %v2752 = vpop.permute.xlu0 %2751
        %2753 = vrot.lane.b32.xlu0 %v2160, 19
        %v2754 = vpop.permute.xlu0 %2753
        %2755 = vrot.lane.b32.xlu0 %v2161, 19
        %v2756 = vpop.permute.xlu0 %2755
        %2757 = vrot.lane.b32.xlu0 %v2162, 19
        %v2758 = vpop.permute.xlu0 %2757
        %2759 = vrot.lane.b32.xlu0 %v2154, 19
        %v2760 = vpop.permute.xlu0 %2759
        %vm2761 = vcmask 154624
        %v2762 = vsel %vm2761, %v2726, %v2728
        %v2763 = vsel %vm2761, %v2728, %v2730
        %v2764 = vsel %vm2761, %v2730, %v2732
        %v2765 = vsel %vm2761, %v2732, %v2734
        %v2766 = vsel %vm2761, %v2734, %v2736
        %v2767 = vsel %vm2761, %v2736, %v2738
        %v2768 = vsel %vm2761, %v2738, %v2740
        %v2769 = vsel %vm2761, %v2740, %v2742
        %v2770 = vsel %vm2761, %v2744, %v2746
        %v2771 = vsel %vm2761, %v2746, %v2748
        %v2772 = vsel %vm2761, %v2748, %v2750
        %v2773 = vsel %vm2761, %v2750, %v2752
        %v2774 = vsel %vm2761, %v2752, %v2754
        %v2775 = vsel %vm2761, %v2754, %v2756
        %v2776 = vsel %vm2761, %v2756, %v2758
        %v2777 = vsel %vm2761, %v2758, %v2760
        %v2787 = vsel %vm481, %v2724, 0
        %v2790 = vsel %vm368, %v2770, 0
        %v2793 = vsel %vm368, %v2771, 0
        %v2796 = vsel %vm368, %v2772, 0
        %v2799 = vsel %vm368, %v2773, 0
        %v2802 = vsel %vm368, %v2774, 0
        %v2805 = vsel %vm368, %v2775, 0
        %v2808 = vsel %vm368, %v2776, 0
        %v2811 = vsel %vm368, %v2777, 0
        %2813 = vmatprep.subr.bf16.mxu0 0
        %2814 = vmatpush1.bf16.msra.mxu0 0
        %2815 = vmatprep.subr.bf16.mxu0 0
        %2816 = vmatpush1.bf16.msra.mxu0 0
        %2817 = vmatprep.subr.bf16.mxu0 0
        %2818 = vmatpush1.bf16.msra.mxu0 0
        %2819 = vmatprep.subr.bf16.mxu0 0
        %2820 = vmatpush1.bf16.msra.mxu0 0
        %2821 = vmatprep.subr.bf16.mxu0 0
        %2822 = vmatpush1.bf16.msra.mxu0 0
        %2823 = vmatprep.subr.bf16.mxu0 0
        %2824 = vmatpush1.bf16.msra.mxu0 0
        %2825 = vmatprep.subr.bf16.mxu0 %v2793
        %2826 = vmatpush1.bf16.msra.mxu0 %v2790
        %2827 = vmatprep.subr.bf16.mxu0 %v2763
        %2828 = vmatpush1.bf16.msra.mxu0 %v2762
        %2829 = vmatprep.subr.bf16.mxu0 0
        %2830 = vmatpush2.bf16.msra.mxu0 0
        %2831 = vmatprep.subr.bf16.mxu0 0
        %2832 = vmatpush2.bf16.msra.mxu0 0
        %2833 = vmatprep.subr.bf16.mxu0 0
        %2834 = vmatpush2.bf16.msra.mxu0 0
        %2835 = vmatprep.subr.bf16.mxu0 0
        %2836 = vmatpush2.bf16.msra.mxu0 0
        %2837 = vmatprep.subr.bf16.mxu0 0
        %2838 = vmatpush2.bf16.msra.mxu0 0
        %2839 = vmatprep.subr.bf16.mxu0 0
        %2840 = vmatpush2.bf16.msra.mxu0 0
        %2841 = vmatprep.subr.bf16.mxu0 0
        %2842 = vmatpush2.bf16.msra.mxu0 0
        %2843 = vmatprep.subr.bf16.mxu0 0
        %2844 = vmatpush2.bf16.msra.mxu0 0
        %2845 = vmatprep.mubr.bf16.mxu0 0
        %2846 = vmatmul.mubr.bf16.gmra.mxu0 %v2787
        %v2847 = vpop.f32.mrf.mxu0
        %v2848 = vadd.f32 0.0, %v2847
        %v2849 = vpop.f32.mrf.mxu0
        %v2850 = vadd.f32 0.0, %v2849
        %v2851 = vpop.f32.mrf.mxu0
        %v2852 = vpop.f32.mrf.mxu0
        %2853 = vdwg.mxu0
        %2854 = vmatprep.subr.bf16.mxu0 0
        %2855 = vmatpush1.bf16.msra.mxu0 0
        %2856 = vmatprep.subr.bf16.mxu0 0
        %2857 = vmatpush1.bf16.msra.mxu0 0
        %2858 = vmatprep.subr.bf16.mxu0 0
        %2859 = vmatpush1.bf16.msra.mxu0 0
        %2860 = vmatprep.subr.bf16.mxu0 0
        %2861 = vmatpush1.bf16.msra.mxu0 0
        %2862 = vmatprep.subr.bf16.mxu0 0
        %2863 = vmatpush1.bf16.msra.mxu0 0
        %2864 = vmatprep.subr.bf16.mxu0 0
        %2865 = vmatpush1.bf16.msra.mxu0 0
        %2866 = vmatprep.subr.bf16.mxu0 %v2799
        %2867 = vmatpush1.bf16.msra.mxu0 %v2796
        %2868 = vmatprep.subr.bf16.mxu0 %v2765
        %2869 = vmatpush1.bf16.msra.mxu0 %v2764
        %2870 = vmatprep.subr.bf16.mxu0 0
        %2871 = vmatpush2.bf16.msra.mxu0 0
        %2872 = vmatprep.subr.bf16.mxu0 0
        %2873 = vmatpush2.bf16.msra.mxu0 0
        %2874 = vmatprep.subr.bf16.mxu0 0
        %2875 = vmatpush2.bf16.msra.mxu0 0
        %2876 = vmatprep.subr.bf16.mxu0 0
        %2877 = vmatpush2.bf16.msra.mxu0 0
        %2878 = vmatprep.subr.bf16.mxu0 0
        %2879 = vmatpush2.bf16.msra.mxu0 0
        %2880 = vmatprep.subr.bf16.mxu0 0
        %2881 = vmatpush2.bf16.msra.mxu0 0
        %2882 = vmatprep.subr.bf16.mxu0 0
        %2883 = vmatpush2.bf16.msra.mxu0 0
        %2884 = vmatprep.subr.bf16.mxu0 0
        %2885 = vmatpush2.bf16.msra.mxu0 0
        %2886 = vmatprep.mubr.bf16.mxu0 0
        %2887 = vmatmul.mubr.bf16.gmra.mxu0 %v2787
        %v2888 = vpop.f32.mrf.mxu0
        %v2889 = vadd.f32 0.0, %v2888
        %v2890 = vpop.f32.mrf.mxu0
        %v2891 = vadd.f32 0.0, %v2890
        %v2892 = vpop.f32.mrf.mxu0
        %v2893 = vpop.f32.mrf.mxu0
        %2894 = vdwg.mxu0
        %2895 = vmatprep.subr.bf16.mxu0 0
        %2896 = vmatpush1.bf16.msra.mxu0 0
        %2897 = vmatprep.subr.bf16.mxu0 0
        %2898 = vmatpush1.bf16.msra.mxu0 0
        %2899 = vmatprep.subr.bf16.mxu0 0
        %2900 = vmatpush1.bf16.msra.mxu0 0
        %2901 = vmatprep.subr.bf16.mxu0 0
        %2902 = vmatpush1.bf16.msra.mxu0 0
        %2903 = vmatprep.subr.bf16.mxu0 0
        %2904 = vmatpush1.bf16.msra.mxu0 0
        %2905 = vmatprep.subr.bf16.mxu0 0
        %2906 = vmatpush1.bf16.msra.mxu0 0
        %2907 = vmatprep.subr.bf16.mxu0 %v2805
        %2908 = vmatpush1.bf16.msra.mxu0 %v2802
        %2909 = vmatprep.subr.bf16.mxu0 %v2767
        %2910 = vmatpush1.bf16.msra.mxu0 %v2766
        %2911 = vmatprep.subr.bf16.mxu0 0
        %2912 = vmatpush2.bf16.msra.mxu0 0
        %2913 = vmatprep.subr.bf16.mxu0 0
        %2914 = vmatpush2.bf16.msra.mxu0 0
        %2915 = vmatprep.subr.bf16.mxu0 0
        %2916 = vmatpush2.bf16.msra.mxu0 0
        %2917 = vmatprep.subr.bf16.mxu0 0
        %2918 = vmatpush2.bf16.msra.mxu0 0
        %2919 = vmatprep.subr.bf16.mxu0 0
        %2920 = vmatpush2.bf16.msra.mxu0 0
        %2921 = vmatprep.subr.bf16.mxu0 0
        %2922 = vmatpush2.bf16.msra.mxu0 0
        %2923 = vmatprep.subr.bf16.mxu0 0
        %2924 = vmatpush2.bf16.msra.mxu0 0
        %2925 = vmatprep.subr.bf16.mxu0 0
        %2926 = vmatpush2.bf16.msra.mxu0 0
        %2927 = vmatprep.mubr.bf16.mxu0 0
        %2928 = vmatmul.mubr.bf16.gmra.mxu0 %v2787
        %v2929 = vpop.f32.mrf.mxu0
        %v2930 = vadd.f32 0.0, %v2929
        %v2931 = vpop.f32.mrf.mxu0
        %v2932 = vadd.f32 0.0, %v2931
        %v2933 = vpop.f32.mrf.mxu0
        %v2934 = vpop.f32.mrf.mxu0
        %2935 = vdwg.mxu0
        %2936 = vmatprep.subr.bf16.mxu0 0
        %2937 = vmatpush1.bf16.msra.mxu0 0
        %2938 = vmatprep.subr.bf16.mxu0 0
        %2939 = vmatpush1.bf16.msra.mxu0 0
        %2940 = vmatprep.subr.bf16.mxu0 0
        %2941 = vmatpush1.bf16.msra.mxu0 0
        %2942 = vmatprep.subr.bf16.mxu0 0
        %2943 = vmatpush1.bf16.msra.mxu0 0
        %2944 = vmatprep.subr.bf16.mxu0 0
        %2945 = vmatpush1.bf16.msra.mxu0 0
        %2946 = vmatprep.subr.bf16.mxu0 0
        %2947 = vmatpush1.bf16.msra.mxu0 0
        %2948 = vmatprep.subr.bf16.mxu0 %v2811
        %2949 = vmatpush1.bf16.msra.mxu0 %v2808
        %2950 = vmatprep.subr.bf16.mxu0 %v2769
        %2951 = vmatpush1.bf16.msra.mxu0 %v2768
        %2952 = vmatprep.subr.bf16.mxu0 0
        %2953 = vmatpush2.bf16.msra.mxu0 0
        %2954 = vmatprep.subr.bf16.mxu0 0
        %2955 = vmatpush2.bf16.msra.mxu0 0
        %2956 = vmatprep.subr.bf16.mxu0 0
        %2957 = vmatpush2.bf16.msra.mxu0 0
        %2958 = vmatprep.subr.bf16.mxu0 0
        %2959 = vmatpush2.bf16.msra.mxu0 0
        %2960 = vmatprep.subr.bf16.mxu0 0
        %2961 = vmatpush2.bf16.msra.mxu0 0
        %2962 = vmatprep.subr.bf16.mxu0 0
        %2963 = vmatpush2.bf16.msra.mxu0 0
        %2964 = vmatprep.subr.bf16.mxu0 0
        %2965 = vmatpush2.bf16.msra.mxu0 0
        %2966 = vmatprep.subr.bf16.mxu0 0
        %2967 = vmatpush2.bf16.msra.mxu0 0
        %2968 = vmatprep.mubr.bf16.mxu0 0
        %2969 = vmatmul.mubr.bf16.gmra.mxu0 %v2787
        %v2970 = vpop.f32.mrf.mxu0
        %v2971 = vadd.f32 0.0, %v2970
        %v2972 = vpop.f32.mrf.mxu0
        %v2973 = vadd.f32 0.0, %v2972
        %v2974 = vpop.f32.mrf.mxu0
        %v2975 = vpop.f32.mrf.mxu0
        %2976 = vdwg.mxu0
        %v2977 = vadd.f32 %v2715, %v2848
        %v2978 = vadd.f32 %v2716, %v2850
        %v2979 = vadd.f32 %v2717, %v2889
        %v2980 = vadd.f32 %v2718, %v2891
        %v2981 = vadd.f32 %v2719, %v2930
        %v2982 = vadd.f32 %v2720, %v2932
        %v2983 = vadd.f32 %v2721, %v2971
        %v2984 = vadd.f32 %v2722, %v2973
        %v2985 = vld [vmem:[%s2] sm:$0xff]
        %2987 = vset.pattern.permute.xlu0 0
        %2988 = vperm.xlu0 %2987, %v2985
        %v2989 = vpop.permute.xlu0 %2988
        %v2991 = vadd.f32 %v2977, %v2989
        %v2992 = vadd.f32 %v2978, %v2989
        %v2993 = vadd.f32 %v2979, %v2989
        %v2994 = vadd.f32 %v2980, %v2989
        %v2995 = vadd.f32 %v2981, %v2989
        %v2996 = vadd.f32 %v2982, %v2989
        %v2997 = vadd.f32 %v2983, %v2989
        %v2998 = vadd.f32 %v2984, %v2989
        %v2999 = vmax.f32 %v2991, 0.0
        %v3000 = vmax.f32 %v2992, 0.0
        %v3001 = vmax.f32 %v2993, 0.0
        %v3002 = vmax.f32 %v2994, 0.0
        %v3003 = vmax.f32 %v2995, 0.0
        %v3004 = vmax.f32 %v2996, 0.0
        %v3005 = vmax.f32 %v2997, 0.0
        %v3006 = vmax.f32 %v2998, 0.0
        %v3007 = vld [vmem:[#allocation8] sm:$0xff]
        %v3009 = vlaneseq
        %v3010 = vshrl.u32 %v3009, 7
        %v3011 = vsub.s32 0, %v3010
        %v3012 = vrot.slane %v3007, %v3011
        %v3013 = vlaneseq
        %v3014 = vshrl.u32 %v3013, 7
        %v3015 = vsub.s32 1, %v3014
        %v3016 = vrot.slane %v3007, %v3015
        %v3017 = vlaneseq
        %v3018 = vshrl.u32 %v3017, 7
        %v3019 = vsub.s32 2, %v3018
        %v3020 = vrot.slane %v3007, %v3019
        %v3021 = vlaneseq
        %v3022 = vshrl.u32 %v3021, 7
        %v3023 = vsub.s32 3, %v3022
        %v3024 = vrot.slane %v3007, %v3023
        %v3025 = vlaneseq
        %v3026 = vshrl.u32 %v3025, 7
        %v3027 = vsub.s32 4, %v3026
        %v3028 = vrot.slane %v3007, %v3027
        %v3029 = vlaneseq
        %v3030 = vshrl.u32 %v3029, 7
        %v3031 = vsub.s32 5, %v3030
        %v3032 = vrot.slane %v3007, %v3031
        %v3033 = vlaneseq
        %v3034 = vshrl.u32 %v3033, 7
        %v3035 = vsub.s32 6, %v3034
        %v3036 = vrot.slane %v3007, %v3035
        %v3037 = vlaneseq
        %v3038 = vshrl.u32 %v3037, 7
        %v3039 = vsub.s32 7, %v3038
        %v3040 = vrot.slane %v3007, %v3039
        %v3049 = vmul.f32 %v2999, %v3012
        %v3050 = vmul.f32 %v3000, %v3016
        %v3051 = vmul.f32 %v3001, %v3020
        %v3052 = vmul.f32 %v3002, %v3024
        %v3053 = vmul.f32 %v3003, %v3028
        %v3054 = vmul.f32 %v3004, %v3032
        %v3055 = vmul.f32 %v3005, %v3036
        %v3056 = vmul.f32 %v3006, %v3040
        %v3057 = vpack.c.bf16 %v3049, %v3049
        %v3058 = vpack.c.bf16 %v3050, %v3050
        %v3059 = vpack.c.bf16 %v3051, %v3051
        %v3060 = vpack.c.bf16 %v3052, %v3052
        %v3061 = vpack.c.bf16 %v3053, %v3053
        %v3062 = vpack.c.bf16 %v3054, %v3054
        %v3063 = vpack.c.bf16 %v3055, %v3055
        %v3064 = vpack.c.bf16 %v3056, %v3056
        %3065 = vst [vmem:[#allocation2] sm:$0xf] 0
        %vm3066 = vcmask 1044288
        %vm3067 = vcmask 850948
        %vm3068 = vmor %vm3067, %vm3066
        %3069 = vst.msk [vmem:[#allocation2 + $0x20] sm:$0xff] %vm3068, 0
        %v3078 = vunpack.c.l.b16 %v3057
        %v3079 = vunpack.c.l.b16 %v3058
        %v3080 = vunpack.c.l.b16 %v3059
        %v3081 = vunpack.c.l.b16 %v3060
        %v3082 = vunpack.c.l.b16 %v3061
        %v3083 = vunpack.c.l.b16 %v3062
        %v3084 = vunpack.c.l.b16 %v3063
        %v3085 = vunpack.c.l.b16 %v3064
        %v3086 = vpack.c.b16 %v3079, %v3078
        %v3087 = vpack.c.b16 %v3081, %v3080
        %v3088 = vpack.c.b16 %v3083, %v3082
        %v3089 = vpack.c.b16 %v3085, %v3084
        %3094 = vst [vmem:[#allocation2 + $0x4] sm:$0xff] %v3086
        %3095 = vst [vmem:[#allocation2 + $0xc] sm:$0xff] %v3087
        %3096 = vst [vmem:[#allocation2 + $0x14] sm:$0xff] %v3088
        %vm3097 = vmor %vm3067, %vm368
        %3098 = vst.msk [vmem:[#allocation2 + $0x1c] sm:$0xff] %vm3097, %v3089
        %v3099 = vld [vmem:[#allocation2] sm:$0xff]
        %v3100 = vld [vmem:[#allocation2 + $0x8] sm:$0xff]
        %v3101 = vld [vmem:[#allocation2 + $0x10] sm:$0xff]
        %v3102 = vld [vmem:[#allocation2 + $0x18] sm:$0xff]
        %v3107 = vunpack.c.l.b16 %v3099
        %v3108 = vunpack.c.h.b16 %v3099
        %v3109 = vunpack.c.l.b16 %v3100
        %v3110 = vunpack.c.h.b16 %v3100
        %v3111 = vunpack.c.l.b16 %v3101
        %v3112 = vunpack.c.h.b16 %v3101
        %v3113 = vunpack.c.l.b16 %v3102
        %v3114 = vunpack.c.h.b16 %v3102
        %v3115 = vpack.c.b16 %v3107, %v3107
        %v3116 = vpack.c.b16 %v3108, %v3108
        %v3117 = vpack.c.b16 %v3109, %v3109
        %v3118 = vpack.c.b16 %v3110, %v3110
        %v3119 = vpack.c.b16 %v3111, %v3111
        %v3120 = vpack.c.b16 %v3112, %v3112
        %v3121 = vpack.c.b16 %v3113, %v3113
        %v3122 = vpack.c.b16 %v3114, %v3114
        %3123 = vrot.lane.b32.xlu0 %v3115, 127
        %v3124 = vpop.permute.xlu0 %3123
        %3125 = vrot.lane.b32.xlu0 %v3116, 127
        %v3126 = vpop.permute.xlu0 %3125
        %3127 = vrot.lane.b32.xlu0 %v3117, 127
        %v3128 = vpop.permute.xlu0 %3127
        %3129 = vrot.lane.b32.xlu0 %v3118, 127
        %v3130 = vpop.permute.xlu0 %3129
        %3131 = vrot.lane.b32.xlu0 %v3119, 127
        %v3132 = vpop.permute.xlu0 %3131
        %3133 = vrot.lane.b32.xlu0 %v3120, 127
        %v3134 = vpop.permute.xlu0 %3133
        %3135 = vrot.lane.b32.xlu0 %v3121, 127
        %v3136 = vpop.permute.xlu0 %3135
        %3137 = vrot.lane.b32.xlu0 %v3122, 127
        %v3138 = vpop.permute.xlu0 %3137
        %v3139 = vsel %vm336, %v3124, %v3126
        %v3140 = vsel %vm336, %v3126, %v3128
        %v3141 = vsel %vm336, %v3128, %v3130
        %v3142 = vsel %vm336, %v3130, %v3132
        %v3143 = vsel %vm336, %v3132, %v3134
        %v3144 = vsel %vm336, %v3134, %v3136
        %v3145 = vsel %vm336, %v3136, %v3138
        %3146 = vrot.lane.b32.xlu0 %v3115, 126
        %v3147 = vpop.permute.xlu0 %3146
        %3148 = vrot.lane.b32.xlu0 %v3116, 126
        %v3149 = vpop.permute.xlu0 %3148
        %3150 = vrot.lane.b32.xlu0 %v3117, 126
        %v3151 = vpop.permute.xlu0 %3150
        %3152 = vrot.lane.b32.xlu0 %v3118, 126
        %v3153 = vpop.permute.xlu0 %3152
        %3154 = vrot.lane.b32.xlu0 %v3119, 126
        %v3155 = vpop.permute.xlu0 %3154
        %3156 = vrot.lane.b32.xlu0 %v3120, 126
        %v3157 = vpop.permute.xlu0 %3156
        %3158 = vrot.lane.b32.xlu0 %v3121, 126
        %v3159 = vpop.permute.xlu0 %3158
        %3160 = vrot.lane.b32.xlu0 %v3122, 126
        %v3161 = vpop.permute.xlu0 %3160
        %v3162 = vsel %vm360, %v3147, %v3149
        %v3163 = vsel %vm360, %v3149, %v3151
        %v3164 = vsel %vm360, %v3151, %v3153
        %v3165 = vsel %vm360, %v3153, %v3155
        %v3166 = vsel %vm360, %v3155, %v3157
        %v3167 = vsel %vm360, %v3157, %v3159
        %v3168 = vsel %vm360, %v3159, %v3161
        %v3171 = vsel %vm368, %v3115, %v3139
        %v3174 = vsel %vm368, %v3116, %v3140
        %v3177 = vsel %vm368, %v3117, %v3141
        %v3180 = vsel %vm368, %v3118, %v3142
        %v3183 = vsel %vm368, %v3119, %v3143
        %v3186 = vsel %vm368, %v3120, %v3144
        %v3189 = vsel %vm368, %v3121, %v3145
        %v3192 = vsel %vm368, %v3122, %v3138
        %v3193 = vld [vmem:[%s3] sm:$0x3]
        %v3194 = vld [vmem:[#allocation2 + $0x20] sm:$0xf]
        %v3196 = vunpack.c.l.b16 %v3194
        %v3197 = vpack.c.b16 %v3196, %v3196
        %3198 = vrot.lane.b32.xlu0 %v3197, 127
        %v3199 = vpop.permute.xlu0 %3198
        %v3200 = vsel %vm336, %v3138, %v3199
        %3201 = vrot.lane.b32.xlu0 %v3197, 126
        %v3202 = vpop.permute.xlu0 %3201
        %v3203 = vsel %vm360, %v3161, %v3202
        %v3205 = vsel %vm368, %v3122, %v3200
        %v3208 = vsel %vm368, %v3197, %v3199
        %s3209 = scalar_lea.vmem %s3, 2
        %v3210 = vld [vmem:[%s3209] sm:$0x3]
        %3220 = vrot.lane.b32.xlu0 %v3171, 101
        %v3221 = vpop.permute.xlu0 %3220
        %3222 = vrot.lane.b32.xlu0 %v3174, 101
        %v3223 = vpop.permute.xlu0 %3222
        %3224 = vrot.lane.b32.xlu0 %v3177, 101
        %v3225 = vpop.permute.xlu0 %3224
        %3226 = vrot.lane.b32.xlu0 %v3180, 101
        %v3227 = vpop.permute.xlu0 %3226
        %3228 = vrot.lane.b32.xlu0 %v3183, 101
        %v3229 = vpop.permute.xlu0 %3228
        %3230 = vrot.lane.b32.xlu0 %v3186, 101
        %v3231 = vpop.permute.xlu0 %3230
        %3232 = vrot.lane.b32.xlu0 %v3189, 101
        %v3233 = vpop.permute.xlu0 %3232
        %3234 = vrot.lane.b32.xlu0 %v3205, 101
        %v3235 = vpop.permute.xlu0 %3234
        %3236 = vrot.lane.b32.xlu0 %v3208, 101
        %v3237 = vpop.permute.xlu0 %3236
        %3238 = vrot.lane.b32.xlu0 %v3162, 101
        %v3239 = vpop.permute.xlu0 %3238
        %3240 = vrot.lane.b32.xlu0 %v3163, 101
        %v3241 = vpop.permute.xlu0 %3240
        %3242 = vrot.lane.b32.xlu0 %v3164, 101
        %v3243 = vpop.permute.xlu0 %3242
        %3244 = vrot.lane.b32.xlu0 %v3165, 101
        %v3245 = vpop.permute.xlu0 %3244
        %3246 = vrot.lane.b32.xlu0 %v3166, 101
        %v3247 = vpop.permute.xlu0 %3246
        %3248 = vrot.lane.b32.xlu0 %v3167, 101
        %v3249 = vpop.permute.xlu0 %3248
        %3250 = vrot.lane.b32.xlu0 %v3168, 101
        %v3251 = vpop.permute.xlu0 %3250
        %3252 = vrot.lane.b32.xlu0 %v3203, 101
        %v3253 = vpop.permute.xlu0 %3252
        %3254 = vrot.lane.b32.xlu0 %v3202, 101
        %v3255 = vpop.permute.xlu0 %3254
        %v3256 = vsel %vm456, %v3221, %v3223
        %v3257 = vsel %vm456, %v3223, %v3225
        %v3258 = vsel %vm456, %v3225, %v3227
        %v3259 = vsel %vm456, %v3227, %v3229
        %v3260 = vsel %vm456, %v3229, %v3231
        %v3261 = vsel %vm456, %v3231, %v3233
        %v3262 = vsel %vm456, %v3233, %v3235
        %v3263 = vsel %vm456, %v3235, %v3237
        %v3264 = vsel %vm456, %v3239, %v3241
        %v3265 = vsel %vm456, %v3241, %v3243
        %v3266 = vsel %vm456, %v3243, %v3245
        %v3267 = vsel %vm456, %v3245, %v3247
        %v3268 = vsel %vm456, %v3247, %v3249
        %v3269 = vsel %vm456, %v3249, %v3251
        %v3270 = vsel %vm456, %v3251, %v3253
        %v3271 = vsel %vm456, %v3253, %v3255
        %v3281 = vsel %vm481, %v3210, 0
        %v3284 = vsel %vm368, %v3264, 0
        %v3287 = vsel %vm368, %v3265, 0
        %v3290 = vsel %vm368, %v3266, 0
        %v3293 = vsel %vm368, %v3267, 0
        %v3296 = vsel %vm368, %v3268, 0
        %v3299 = vsel %vm368, %v3269, 0
        %v3302 = vsel %vm368, %v3270, 0
        %v3305 = vsel %vm368, %v3271, 0
        %3307 = vmatprep.subr.bf16.mxu0 0
        %3308 = vmatpush1.bf16.msra.mxu0 0
        %3309 = vmatprep.subr.bf16.mxu0 0
        %3310 = vmatpush1.bf16.msra.mxu0 0
        %3311 = vmatprep.subr.bf16.mxu0 0
        %3312 = vmatpush1.bf16.msra.mxu0 0
        %3313 = vmatprep.subr.bf16.mxu0 0
        %3314 = vmatpush1.bf16.msra.mxu0 0
        %3315 = vmatprep.subr.bf16.mxu0 0
        %3316 = vmatpush1.bf16.msra.mxu0 0
        %3317 = vmatprep.subr.bf16.mxu0 0
        %3318 = vmatpush1.bf16.msra.mxu0 0
        %3319 = vmatprep.subr.bf16.mxu0 %v3287
        %3320 = vmatpush1.bf16.msra.mxu0 %v3284
        %3321 = vmatprep.subr.bf16.mxu0 %v3257
        %3322 = vmatpush1.bf16.msra.mxu0 %v3256
        %3323 = vmatprep.subr.bf16.mxu0 0
        %3324 = vmatpush2.bf16.msra.mxu0 0
        %3325 = vmatprep.subr.bf16.mxu0 0
        %3326 = vmatpush2.bf16.msra.mxu0 0
        %3327 = vmatprep.subr.bf16.mxu0 0
        %3328 = vmatpush2.bf16.msra.mxu0 0
        %3329 = vmatprep.subr.bf16.mxu0 0
        %3330 = vmatpush2.bf16.msra.mxu0 0
        %3331 = vmatprep.subr.bf16.mxu0 0
        %3332 = vmatpush2.bf16.msra.mxu0 0
        %3333 = vmatprep.subr.bf16.mxu0 0
        %3334 = vmatpush2.bf16.msra.mxu0 0
        %3335 = vmatprep.subr.bf16.mxu0 0
        %3336 = vmatpush2.bf16.msra.mxu0 0
        %3337 = vmatprep.subr.bf16.mxu0 0
        %3338 = vmatpush2.bf16.msra.mxu0 0
        %3339 = vmatprep.mubr.bf16.mxu0 0
        %3340 = vmatmul.mubr.bf16.gmra.mxu0 %v3281
        %v3341 = vpop.f32.mrf.mxu0
        %v3342 = vadd.f32 0.0, %v3341
        %v3343 = vpop.f32.mrf.mxu0
        %v3344 = vadd.f32 0.0, %v3343
        %v3345 = vpop.f32.mrf.mxu0
        %v3346 = vpop.f32.mrf.mxu0
        %3347 = vdwg.mxu0
        %3348 = vmatprep.subr.bf16.mxu0 0
        %3349 = vmatpush1.bf16.msra.mxu0 0
        %3350 = vmatprep.subr.bf16.mxu0 0
        %3351 = vmatpush1.bf16.msra.mxu0 0
        %3352 = vmatprep.subr.bf16.mxu0 0
        %3353 = vmatpush1.bf16.msra.mxu0 0
        %3354 = vmatprep.subr.bf16.mxu0 0
        %3355 = vmatpush1.bf16.msra.mxu0 0
        %3356 = vmatprep.subr.bf16.mxu0 0
        %3357 = vmatpush1.bf16.msra.mxu0 0
        %3358 = vmatprep.subr.bf16.mxu0 0
        %3359 = vmatpush1.bf16.msra.mxu0 0
        %3360 = vmatprep.subr.bf16.mxu0 %v3293
        %3361 = vmatpush1.bf16.msra.mxu0 %v3290
        %3362 = vmatprep.subr.bf16.mxu0 %v3259
        %3363 = vmatpush1.bf16.msra.mxu0 %v3258
        %3364 = vmatprep.subr.bf16.mxu0 0
        %3365 = vmatpush2.bf16.msra.mxu0 0
        %3366 = vmatprep.subr.bf16.mxu0 0
        %3367 = vmatpush2.bf16.msra.mxu0 0
        %3368 = vmatprep.subr.bf16.mxu0 0
        %3369 = vmatpush2.bf16.msra.mxu0 0
        %3370 = vmatprep.subr.bf16.mxu0 0
        %3371 = vmatpush2.bf16.msra.mxu0 0
        %3372 = vmatprep.subr.bf16.mxu0 0
        %3373 = vmatpush2.bf16.msra.mxu0 0
        %3374 = vmatprep.subr.bf16.mxu0 0
        %3375 = vmatpush2.bf16.msra.mxu0 0
        %3376 = vmatprep.subr.bf16.mxu0 0
        %3377 = vmatpush2.bf16.msra.mxu0 0
        %3378 = vmatprep.subr.bf16.mxu0 0
        %3379 = vmatpush2.bf16.msra.mxu0 0
        %3380 = vmatprep.mubr.bf16.mxu0 0
        %3381 = vmatmul.mubr.bf16.gmra.mxu0 %v3281
        %v3382 = vpop.f32.mrf.mxu0
        %v3383 = vadd.f32 0.0, %v3382
        %v3384 = vpop.f32.mrf.mxu0
        %v3385 = vadd.f32 0.0, %v3384
        %v3386 = vpop.f32.mrf.mxu0
        %v3387 = vpop.f32.mrf.mxu0
        %3388 = vdwg.mxu0
        %3389 = vmatprep.subr.bf16.mxu0 0
        %3390 = vmatpush1.bf16.msra.mxu0 0
        %3391 = vmatprep.subr.bf16.mxu0 0
        %3392 = vmatpush1.bf16.msra.mxu0 0
        %3393 = vmatprep.subr.bf16.mxu0 0
        %3394 = vmatpush1.bf16.msra.mxu0 0
        %3395 = vmatprep.subr.bf16.mxu0 0
        %3396 = vmatpush1.bf16.msra.mxu0 0
        %3397 = vmatprep.subr.bf16.mxu0 0
        %3398 = vmatpush1.bf16.msra.mxu0 0
        %3399 = vmatprep.subr.bf16.mxu0 0
        %3400 = vmatpush1.bf16.msra.mxu0 0
        %3401 = vmatprep.subr.bf16.mxu0 %v3299
        %3402 = vmatpush1.bf16.msra.mxu0 %v3296
        %3403 = vmatprep.subr.bf16.mxu0 %v3261
        %3404 = vmatpush1.bf16.msra.mxu0 %v3260
        %3405 = vmatprep.subr.bf16.mxu0 0
        %3406 = vmatpush2.bf16.msra.mxu0 0
        %3407 = vmatprep.subr.bf16.mxu0 0
        %3408 = vmatpush2.bf16.msra.mxu0 0
        %3409 = vmatprep.subr.bf16.mxu0 0
        %3410 = vmatpush2.bf16.msra.mxu0 0
        %3411 = vmatprep.subr.bf16.mxu0 0
        %3412 = vmatpush2.bf16.msra.mxu0 0
        %3413 = vmatprep.subr.bf16.mxu0 0
        %3414 = vmatpush2.bf16.msra.mxu0 0
        %3415 = vmatprep.subr.bf16.mxu0 0
        %3416 = vmatpush2.bf16.msra.mxu0 0
        %3417 = vmatprep.subr.bf16.mxu0 0
        %3418 = vmatpush2.bf16.msra.mxu0 0
        %3419 = vmatprep.subr.bf16.mxu0 0
        %3420 = vmatpush2.bf16.msra.mxu0 0
        %3421 = vmatprep.mubr.bf16.mxu0 0
        %3422 = vmatmul.mubr.bf16.gmra.mxu0 %v3281
        %v3423 = vpop.f32.mrf.mxu0
        %v3424 = vadd.f32 0.0, %v3423
        %v3425 = vpop.f32.mrf.mxu0
        %v3426 = vadd.f32 0.0, %v3425
        %v3427 = vpop.f32.mrf.mxu0
        %v3428 = vpop.f32.mrf.mxu0
        %3429 = vdwg.mxu0
        %3430 = vmatprep.subr.bf16.mxu0 0
        %3431 = vmatpush1.bf16.msra.mxu0 0
        %3432 = vmatprep.subr.bf16.mxu0 0
        %3433 = vmatpush1.bf16.msra.mxu0 0
        %3434 = vmatprep.subr.bf16.mxu0 0
        %3435 = vmatpush1.bf16.msra.mxu0 0
        %3436 = vmatprep.subr.bf16.mxu0 0
        %3437 = vmatpush1.bf16.msra.mxu0 0
        %3438 = vmatprep.subr.bf16.mxu0 0
        %3439 = vmatpush1.bf16.msra.mxu0 0
        %3440 = vmatprep.subr.bf16.mxu0 0
        %3441 = vmatpush1.bf16.msra.mxu0 0
        %3442 = vmatprep.subr.bf16.mxu0 %v3305
        %3443 = vmatpush1.bf16.msra.mxu0 %v3302
        %3444 = vmatprep.subr.bf16.mxu0 %v3263
        %3445 = vmatpush1.bf16.msra.mxu0 %v3262
        %3446 = vmatprep.subr.bf16.mxu0 0
        %3447 = vmatpush2.bf16.msra.mxu0 0
        %3448 = vmatprep.subr.bf16.mxu0 0
        %3449 = vmatpush2.bf16.msra.mxu0 0
        %3450 = vmatprep.subr.bf16.mxu0 0
        %3451 = vmatpush2.bf16.msra.mxu0 0
        %3452 = vmatprep.subr.bf16.mxu0 0
        %3453 = vmatpush2.bf16.msra.mxu0 0
        %3454 = vmatprep.subr.bf16.mxu0 0
        %3455 = vmatpush2.bf16.msra.mxu0 0
        %3456 = vmatprep.subr.bf16.mxu0 0
        %3457 = vmatpush2.bf16.msra.mxu0 0
        %3458 = vmatprep.subr.bf16.mxu0 0
        %3459 = vmatpush2.bf16.msra.mxu0 0
        %3460 = vmatprep.subr.bf16.mxu0 0
        %3461 = vmatpush2.bf16.msra.mxu0 0
        %3462 = vmatprep.mubr.bf16.mxu0 0
        %3463 = vmatmul.mubr.bf16.gmra.mxu0 %v3281
        %v3464 = vpop.f32.mrf.mxu0
        %v3465 = vadd.f32 0.0, %v3464
        %v3466 = vpop.f32.mrf.mxu0
        %v3467 = vadd.f32 0.0, %v3466
        %v3468 = vpop.f32.mrf.mxu0
        %v3469 = vpop.f32.mrf.mxu0
        %3470 = vdwg.mxu0
        %3472 = vrot.lane.b32.xlu0 %v3171, 111
        %v3473 = vpop.permute.xlu0 %3472
        %3474 = vrot.lane.b32.xlu0 %v3174, 111
        %v3475 = vpop.permute.xlu0 %3474
        %3476 = vrot.lane.b32.xlu0 %v3177, 111
        %v3477 = vpop.permute.xlu0 %3476
        %3478 = vrot.lane.b32.xlu0 %v3180, 111
        %v3479 = vpop.permute.xlu0 %3478
        %3480 = vrot.lane.b32.xlu0 %v3183, 111
        %v3481 = vpop.permute.xlu0 %3480
        %3482 = vrot.lane.b32.xlu0 %v3186, 111
        %v3483 = vpop.permute.xlu0 %3482
        %3484 = vrot.lane.b32.xlu0 %v3189, 111
        %v3485 = vpop.permute.xlu0 %3484
        %3486 = vrot.lane.b32.xlu0 %v3192, 111
        %v3487 = vpop.permute.xlu0 %3486
        %3488 = vrot.lane.b32.xlu0 %v3162, 111
        %v3489 = vpop.permute.xlu0 %3488
        %3490 = vrot.lane.b32.xlu0 %v3163, 111
        %v3491 = vpop.permute.xlu0 %3490
        %3492 = vrot.lane.b32.xlu0 %v3164, 111
        %v3493 = vpop.permute.xlu0 %3492
        %3494 = vrot.lane.b32.xlu0 %v3165, 111
        %v3495 = vpop.permute.xlu0 %3494
        %3496 = vrot.lane.b32.xlu0 %v3166, 111
        %v3497 = vpop.permute.xlu0 %3496
        %3498 = vrot.lane.b32.xlu0 %v3167, 111
        %v3499 = vpop.permute.xlu0 %3498
        %3500 = vrot.lane.b32.xlu0 %v3168, 111
        %v3501 = vpop.permute.xlu0 %3500
        %3502 = vrot.lane.b32.xlu0 %v3161, 111
        %v3503 = vpop.permute.xlu0 %3502
        %v3504 = vsel %vm706, %v3473, %v3475
        %v3505 = vsel %vm706, %v3475, %v3477
        %v3506 = vsel %vm706, %v3477, %v3479
        %v3507 = vsel %vm706, %v3479, %v3481
        %v3508 = vsel %vm706, %v3481, %v3483
        %v3509 = vsel %vm706, %v3483, %v3485
        %v3510 = vsel %vm706, %v3485, %v3487
        %v3511 = vsel %vm706, %v3489, %v3491
        %v3512 = vsel %vm706, %v3491, %v3493
        %v3513 = vsel %vm706, %v3493, %v3495
        %v3514 = vsel %vm706, %v3495, %v3497
        %v3515 = vsel %vm706, %v3497, %v3499
        %v3516 = vsel %vm706, %v3499, %v3501
        %v3517 = vsel %vm706, %v3501, %v3503
        %v3527 = vsel %vm481, %v3193, 0
        %v3530 = vsel %vm368, %v3511, 0
        %v3533 = vsel %vm368, %v3512, 0
        %v3536 = vsel %vm368, %v3513, 0
        %v3539 = vsel %vm368, %v3514, 0
        %v3542 = vsel %vm368, %v3515, 0
        %v3545 = vsel %vm368, %v3516, 0
        %v3548 = vsel %vm368, %v3517, 0
        %v3551 = vsel %vm368, %v3503, 0
        %3553 = vmatprep.subr.bf16.mxu0 0
        %3554 = vmatpush1.bf16.msra.mxu0 0
        %3555 = vmatprep.subr.bf16.mxu0 0
        %3556 = vmatpush1.bf16.msra.mxu0 0
        %3557 = vmatprep.subr.bf16.mxu0 0
        %3558 = vmatpush1.bf16.msra.mxu0 0
        %3559 = vmatprep.subr.bf16.mxu0 0
        %3560 = vmatpush1.bf16.msra.mxu0 0
        %3561 = vmatprep.subr.bf16.mxu0 0
        %3562 = vmatpush1.bf16.msra.mxu0 0
        %3563 = vmatprep.subr.bf16.mxu0 0
        %3564 = vmatpush1.bf16.msra.mxu0 0
        %3565 = vmatprep.subr.bf16.mxu0 %v3533
        %3566 = vmatpush1.bf16.msra.mxu0 %v3530
        %3567 = vmatprep.subr.bf16.mxu0 %v3505
        %3568 = vmatpush1.bf16.msra.mxu0 %v3504
        %3569 = vmatprep.subr.bf16.mxu0 0
        %3570 = vmatpush2.bf16.msra.mxu0 0
        %3571 = vmatprep.subr.bf16.mxu0 0
        %3572 = vmatpush2.bf16.msra.mxu0 0
        %3573 = vmatprep.subr.bf16.mxu0 0
        %3574 = vmatpush2.bf16.msra.mxu0 0
        %3575 = vmatprep.subr.bf16.mxu0 0
        %3576 = vmatpush2.bf16.msra.mxu0 0
        %3577 = vmatprep.subr.bf16.mxu0 0
        %3578 = vmatpush2.bf16.msra.mxu0 0
        %3579 = vmatprep.subr.bf16.mxu0 0
        %3580 = vmatpush2.bf16.msra.mxu0 0
        %3581 = vmatprep.subr.bf16.mxu0 0
        %3582 = vmatpush2.bf16.msra.mxu0 0
        %3583 = vmatprep.subr.bf16.mxu0 0
        %3584 = vmatpush2.bf16.msra.mxu0 0
        %3585 = vmatprep.mubr.bf16.mxu0 0
        %3586 = vmatmul.mubr.bf16.gmra.mxu0 %v3527
        %v3587 = vpop.f32.mrf.mxu0
        %v3588 = vadd.f32 %v3342, %v3587
        %v3589 = vpop.f32.mrf.mxu0
        %v3590 = vadd.f32 %v3344, %v3589
        %v3591 = vpop.f32.mrf.mxu0
        %v3592 = vpop.f32.mrf.mxu0
        %3593 = vdwg.mxu0
        %3594 = vmatprep.subr.bf16.mxu0 0
        %3595 = vmatpush1.bf16.msra.mxu0 0
        %3596 = vmatprep.subr.bf16.mxu0 0
        %3597 = vmatpush1.bf16.msra.mxu0 0
        %3598 = vmatprep.subr.bf16.mxu0 0
        %3599 = vmatpush1.bf16.msra.mxu0 0
        %3600 = vmatprep.subr.bf16.mxu0 0
        %3601 = vmatpush1.bf16.msra.mxu0 0
        %3602 = vmatprep.subr.bf16.mxu0 0
        %3603 = vmatpush1.bf16.msra.mxu0 0
        %3604 = vmatprep.subr.bf16.mxu0 0
        %3605 = vmatpush1.bf16.msra.mxu0 0
        %3606 = vmatprep.subr.bf16.mxu0 %v3539
        %3607 = vmatpush1.bf16.msra.mxu0 %v3536
        %3608 = vmatprep.subr.bf16.mxu0 %v3507
        %3609 = vmatpush1.bf16.msra.mxu0 %v3506
        %3610 = vmatprep.subr.bf16.mxu0 0
        %3611 = vmatpush2.bf16.msra.mxu0 0
        %3612 = vmatprep.subr.bf16.mxu0 0
        %3613 = vmatpush2.bf16.msra.mxu0 0
        %3614 = vmatprep.subr.bf16.mxu0 0
        %3615 = vmatpush2.bf16.msra.mxu0 0
        %3616 = vmatprep.subr.bf16.mxu0 0
        %3617 = vmatpush2.bf16.msra.mxu0 0
        %3618 = vmatprep.subr.bf16.mxu0 0
        %3619 = vmatpush2.bf16.msra.mxu0 0
        %3620 = vmatprep.subr.bf16.mxu0 0
        %3621 = vmatpush2.bf16.msra.mxu0 0
        %3622 = vmatprep.subr.bf16.mxu0 0
        %3623 = vmatpush2.bf16.msra.mxu0 0
        %3624 = vmatprep.subr.bf16.mxu0 0
        %3625 = vmatpush2.bf16.msra.mxu0 0
        %3626 = vmatprep.mubr.bf16.mxu0 0
        %3627 = vmatmul.mubr.bf16.gmra.mxu0 %v3527
        %v3628 = vpop.f32.mrf.mxu0
        %v3629 = vadd.f32 %v3383, %v3628
        %v3630 = vpop.f32.mrf.mxu0
        %v3631 = vadd.f32 %v3385, %v3630
        %v3632 = vpop.f32.mrf.mxu0
        %v3633 = vpop.f32.mrf.mxu0
        %3634 = vdwg.mxu0
        %3635 = vmatprep.subr.bf16.mxu0 0
        %3636 = vmatpush1.bf16.msra.mxu0 0
        %3637 = vmatprep.subr.bf16.mxu0 0
        %3638 = vmatpush1.bf16.msra.mxu0 0
        %3639 = vmatprep.subr.bf16.mxu0 0
        %3640 = vmatpush1.bf16.msra.mxu0 0
        %3641 = vmatprep.subr.bf16.mxu0 0
        %3642 = vmatpush1.bf16.msra.mxu0 0
        %3643 = vmatprep.subr.bf16.mxu0 0
        %3644 = vmatpush1.bf16.msra.mxu0 0
        %3645 = vmatprep.subr.bf16.mxu0 0
        %3646 = vmatpush1.bf16.msra.mxu0 0
        %3647 = vmatprep.subr.bf16.mxu0 %v3545
        %3648 = vmatpush1.bf16.msra.mxu0 %v3542
        %3649 = vmatprep.subr.bf16.mxu0 %v3509
        %3650 = vmatpush1.bf16.msra.mxu0 %v3508
        %3651 = vmatprep.subr.bf16.mxu0 0
        %3652 = vmatpush2.bf16.msra.mxu0 0
        %3653 = vmatprep.subr.bf16.mxu0 0
        %3654 = vmatpush2.bf16.msra.mxu0 0
        %3655 = vmatprep.subr.bf16.mxu0 0
        %3656 = vmatpush2.bf16.msra.mxu0 0
        %3657 = vmatprep.subr.bf16.mxu0 0
        %3658 = vmatpush2.bf16.msra.mxu0 0
        %3659 = vmatprep.subr.bf16.mxu0 0
        %3660 = vmatpush2.bf16.msra.mxu0 0
        %3661 = vmatprep.subr.bf16.mxu0 0
        %3662 = vmatpush2.bf16.msra.mxu0 0
        %3663 = vmatprep.subr.bf16.mxu0 0
        %3664 = vmatpush2.bf16.msra.mxu0 0
        %3665 = vmatprep.subr.bf16.mxu0 0
        %3666 = vmatpush2.bf16.msra.mxu0 0
        %3667 = vmatprep.mubr.bf16.mxu0 0
        %3668 = vmatmul.mubr.bf16.gmra.mxu0 %v3527
        %v3669 = vpop.f32.mrf.mxu0
        %v3670 = vadd.f32 %v3424, %v3669
        %v3671 = vpop.f32.mrf.mxu0
        %v3672 = vadd.f32 %v3426, %v3671
        %v3673 = vpop.f32.mrf.mxu0
        %v3674 = vpop.f32.mrf.mxu0
        %3675 = vdwg.mxu0
        %3676 = vmatprep.subr.bf16.mxu0 0
        %3677 = vmatpush1.bf16.msra.mxu0 0
        %3678 = vmatprep.subr.bf16.mxu0 0
        %3679 = vmatpush1.bf16.msra.mxu0 0
        %3680 = vmatprep.subr.bf16.mxu0 0
        %3681 = vmatpush1.bf16.msra.mxu0 0
        %3682 = vmatprep.subr.bf16.mxu0 0
        %3683 = vmatpush1.bf16.msra.mxu0 0
        %3684 = vmatprep.subr.bf16.mxu0 0
        %3685 = vmatpush1.bf16.msra.mxu0 0
        %3686 = vmatprep.subr.bf16.mxu0 0
        %3687 = vmatpush1.bf16.msra.mxu0 0
        %3688 = vmatprep.subr.bf16.mxu0 %v3551
        %3689 = vmatpush1.bf16.msra.mxu0 %v3548
        %3690 = vmatprep.subr.bf16.mxu0 %v3487
        %3691 = vmatpush1.bf16.msra.mxu0 %v3510
        %3692 = vmatprep.subr.bf16.mxu0 0
        %3693 = vmatpush2.bf16.msra.mxu0 0
        %3694 = vmatprep.subr.bf16.mxu0 0
        %3695 = vmatpush2.bf16.msra.mxu0 0
        %3696 = vmatprep.subr.bf16.mxu0 0
        %3697 = vmatpush2.bf16.msra.mxu0 0
        %3698 = vmatprep.subr.bf16.mxu0 0
        %3699 = vmatpush2.bf16.msra.mxu0 0
        %3700 = vmatprep.subr.bf16.mxu0 0
        %3701 = vmatpush2.bf16.msra.mxu0 0
        %3702 = vmatprep.subr.bf16.mxu0 0
        %3703 = vmatpush2.bf16.msra.mxu0 0
        %3704 = vmatprep.subr.bf16.mxu0 0
        %3705 = vmatpush2.bf16.msra.mxu0 0
        %3706 = vmatprep.subr.bf16.mxu0 0
        %3707 = vmatpush2.bf16.msra.mxu0 0
        %3708 = vmatprep.mubr.bf16.mxu0 0
        %3709 = vmatmul.mubr.bf16.gmra.mxu0 %v3527
        %v3710 = vpop.f32.mrf.mxu0
        %v3711 = vadd.f32 %v3465, %v3710
        %v3712 = vpop.f32.mrf.mxu0
        %v3713 = vadd.f32 %v3467, %v3712
        %v3714 = vpop.f32.mrf.mxu0
        %v3715 = vpop.f32.mrf.mxu0
        %3716 = vdwg.mxu0
        %s3717 = scalar_lea.vmem %s3, 4
        %v3718 = vld [vmem:[%s3717] sm:$0x3]
        %3719 = vrot.lane.b32.xlu0 %v3171, 91
        %v3720 = vpop.permute.xlu0 %3719
        %3721 = vrot.lane.b32.xlu0 %v3174, 91
        %v3722 = vpop.permute.xlu0 %3721
        %3723 = vrot.lane.b32.xlu0 %v3177, 91
        %v3724 = vpop.permute.xlu0 %3723
        %3725 = vrot.lane.b32.xlu0 %v3180, 91
        %v3726 = vpop.permute.xlu0 %3725
        %3727 = vrot.lane.b32.xlu0 %v3183, 91
        %v3728 = vpop.permute.xlu0 %3727
        %3729 = vrot.lane.b32.xlu0 %v3186, 91
        %v3730 = vpop.permute.xlu0 %3729
        %3731 = vrot.lane.b32.xlu0 %v3189, 91
        %v3732 = vpop.permute.xlu0 %3731
        %3733 = vrot.lane.b32.xlu0 %v3205, 91
        %v3734 = vpop.permute.xlu0 %3733
        %3735 = vrot.lane.b32.xlu0 %v3208, 91
        %v3736 = vpop.permute.xlu0 %3735
        %3737 = vrot.lane.b32.xlu0 %v3162, 91
        %v3738 = vpop.permute.xlu0 %3737
        %3739 = vrot.lane.b32.xlu0 %v3163, 91
        %v3740 = vpop.permute.xlu0 %3739
        %3741 = vrot.lane.b32.xlu0 %v3164, 91
        %v3742 = vpop.permute.xlu0 %3741
        %3743 = vrot.lane.b32.xlu0 %v3165, 91
        %v3744 = vpop.permute.xlu0 %3743
        %3745 = vrot.lane.b32.xlu0 %v3166, 91
        %v3746 = vpop.permute.xlu0 %3745
        %3747 = vrot.lane.b32.xlu0 %v3167, 91
        %v3748 = vpop.permute.xlu0 %3747
        %3749 = vrot.lane.b32.xlu0 %v3168, 91
        %v3750 = vpop.permute.xlu0 %3749
        %3751 = vrot.lane.b32.xlu0 %v3203, 91
        %v3752 = vpop.permute.xlu0 %3751
        %3753 = vrot.lane.b32.xlu0 %v3202, 91
        %v3754 = vpop.permute.xlu0 %3753
        %v3755 = vsel %vm958, %v3720, %v3722
        %v3756 = vsel %vm958, %v3722, %v3724
        %v3757 = vsel %vm958, %v3724, %v3726
        %v3758 = vsel %vm958, %v3726, %v3728
        %v3759 = vsel %vm958, %v3728, %v3730
        %v3760 = vsel %vm958, %v3730, %v3732
        %v3761 = vsel %vm958, %v3732, %v3734
        %v3762 = vsel %vm958, %v3734, %v3736
        %v3763 = vsel %vm958, %v3738, %v3740
        %v3764 = vsel %vm958, %v3740, %v3742
        %v3765 = vsel %vm958, %v3742, %v3744
        %v3766 = vsel %vm958, %v3744, %v3746
        %v3767 = vsel %vm958, %v3746, %v3748
        %v3768 = vsel %vm958, %v3748, %v3750
        %v3769 = vsel %vm958, %v3750, %v3752
        %v3770 = vsel %vm958, %v3752, %v3754
        %v3780 = vsel %vm481, %v3718, 0
        %v3783 = vsel %vm368, %v3763, 0
        %v3786 = vsel %vm368, %v3764, 0
        %v3789 = vsel %vm368, %v3765, 0
        %v3792 = vsel %vm368, %v3766, 0
        %v3795 = vsel %vm368, %v3767, 0
        %v3798 = vsel %vm368, %v3768, 0
        %v3801 = vsel %vm368, %v3769, 0
        %v3804 = vsel %vm368, %v3770, 0
        %3806 = vmatprep.subr.bf16.mxu0 0
        %3807 = vmatpush1.bf16.msra.mxu0 0
        %3808 = vmatprep.subr.bf16.mxu0 0
        %3809 = vmatpush1.bf16.msra.mxu0 0
        %3810 = vmatprep.subr.bf16.mxu0 0
        %3811 = vmatpush1.bf16.msra.mxu0 0
        %3812 = vmatprep.subr.bf16.mxu0 0
        %3813 = vmatpush1.bf16.msra.mxu0 0
        %3814 = vmatprep.subr.bf16.mxu0 0
        %3815 = vmatpush1.bf16.msra.mxu0 0
        %3816 = vmatprep.subr.bf16.mxu0 0
        %3817 = vmatpush1.bf16.msra.mxu0 0
        %3818 = vmatprep.subr.bf16.mxu0 %v3786
        %3819 = vmatpush1.bf16.msra.mxu0 %v3783
        %3820 = vmatprep.subr.bf16.mxu0 %v3756
        %3821 = vmatpush1.bf16.msra.mxu0 %v3755
        %3822 = vmatprep.subr.bf16.mxu0 0
        %3823 = vmatpush2.bf16.msra.mxu0 0
        %3824 = vmatprep.subr.bf16.mxu0 0
        %3825 = vmatpush2.bf16.msra.mxu0 0
        %3826 = vmatprep.subr.bf16.mxu0 0
        %3827 = vmatpush2.bf16.msra.mxu0 0
        %3828 = vmatprep.subr.bf16.mxu0 0
        %3829 = vmatpush2.bf16.msra.mxu0 0
        %3830 = vmatprep.subr.bf16.mxu0 0
        %3831 = vmatpush2.bf16.msra.mxu0 0
        %3832 = vmatprep.subr.bf16.mxu0 0
        %3833 = vmatpush2.bf16.msra.mxu0 0
        %3834 = vmatprep.subr.bf16.mxu0 0
        %3835 = vmatpush2.bf16.msra.mxu0 0
        %3836 = vmatprep.subr.bf16.mxu0 0
        %3837 = vmatpush2.bf16.msra.mxu0 0
        %3838 = vmatprep.mubr.bf16.mxu0 0
        %3839 = vmatmul.mubr.bf16.gmra.mxu0 %v3780
        %v3840 = vpop.f32.mrf.mxu0
        %v3841 = vadd.f32 0.0, %v3840
        %v3842 = vpop.f32.mrf.mxu0
        %v3843 = vadd.f32 0.0, %v3842
        %v3844 = vpop.f32.mrf.mxu0
        %v3845 = vpop.f32.mrf.mxu0
        %3846 = vdwg.mxu0
        %3847 = vmatprep.subr.bf16.mxu0 0
        %3848 = vmatpush1.bf16.msra.mxu0 0
        %3849 = vmatprep.subr.bf16.mxu0 0
        %3850 = vmatpush1.bf16.msra.mxu0 0
        %3851 = vmatprep.subr.bf16.mxu0 0
        %3852 = vmatpush1.bf16.msra.mxu0 0
        %3853 = vmatprep.subr.bf16.mxu0 0
        %3854 = vmatpush1.bf16.msra.mxu0 0
        %3855 = vmatprep.subr.bf16.mxu0 0
        %3856 = vmatpush1.bf16.msra.mxu0 0
        %3857 = vmatprep.subr.bf16.mxu0 0
        %3858 = vmatpush1.bf16.msra.mxu0 0
        %3859 = vmatprep.subr.bf16.mxu0 %v3792
        %3860 = vmatpush1.bf16.msra.mxu0 %v3789
        %3861 = vmatprep.subr.bf16.mxu0 %v3758
        %3862 = vmatpush1.bf16.msra.mxu0 %v3757
        %3863 = vmatprep.subr.bf16.mxu0 0
        %3864 = vmatpush2.bf16.msra.mxu0 0
        %3865 = vmatprep.subr.bf16.mxu0 0
        %3866 = vmatpush2.bf16.msra.mxu0 0
        %3867 = vmatprep.subr.bf16.mxu0 0
        %3868 = vmatpush2.bf16.msra.mxu0 0
        %3869 = vmatprep.subr.bf16.mxu0 0
        %3870 = vmatpush2.bf16.msra.mxu0 0
        %3871 = vmatprep.subr.bf16.mxu0 0
        %3872 = vmatpush2.bf16.msra.mxu0 0
        %3873 = vmatprep.subr.bf16.mxu0 0
        %3874 = vmatpush2.bf16.msra.mxu0 0
        %3875 = vmatprep.subr.bf16.mxu0 0
        %3876 = vmatpush2.bf16.msra.mxu0 0
        %3877 = vmatprep.subr.bf16.mxu0 0
        %3878 = vmatpush2.bf16.msra.mxu0 0
        %3879 = vmatprep.mubr.bf16.mxu0 0
        %3880 = vmatmul.mubr.bf16.gmra.mxu0 %v3780
        %v3881 = vpop.f32.mrf.mxu0
        %v3882 = vadd.f32 0.0, %v3881
        %v3883 = vpop.f32.mrf.mxu0
        %v3884 = vadd.f32 0.0, %v3883
        %v3885 = vpop.f32.mrf.mxu0
        %v3886 = vpop.f32.mrf.mxu0
        %3887 = vdwg.mxu0
        %3888 = vmatprep.subr.bf16.mxu0 0
        %3889 = vmatpush1.bf16.msra.mxu0 0
        %3890 = vmatprep.subr.bf16.mxu0 0
        %3891 = vmatpush1.bf16.msra.mxu0 0
        %3892 = vmatprep.subr.bf16.mxu0 0
        %3893 = vmatpush1.bf16.msra.mxu0 0
        %3894 = vmatprep.subr.bf16.mxu0 0
        %3895 = vmatpush1.bf16.msra.mxu0 0
        %3896 = vmatprep.subr.bf16.mxu0 0
        %3897 = vmatpush1.bf16.msra.mxu0 0
        %3898 = vmatprep.subr.bf16.mxu0 0
        %3899 = vmatpush1.bf16.msra.mxu0 0
        %3900 = vmatprep.subr.bf16.mxu0 %v3798
        %3901 = vmatpush1.bf16.msra.mxu0 %v3795
        %3902 = vmatprep.subr.bf16.mxu0 %v3760
        %3903 = vmatpush1.bf16.msra.mxu0 %v3759
        %3904 = vmatprep.subr.bf16.mxu0 0
        %3905 = vmatpush2.bf16.msra.mxu0 0
        %3906 = vmatprep.subr.bf16.mxu0 0
        %3907 = vmatpush2.bf16.msra.mxu0 0
        %3908 = vmatprep.subr.bf16.mxu0 0
        %3909 = vmatpush2.bf16.msra.mxu0 0
        %3910 = vmatprep.subr.bf16.mxu0 0
        %3911 = vmatpush2.bf16.msra.mxu0 0
        %3912 = vmatprep.subr.bf16.mxu0 0
        %3913 = vmatpush2.bf16.msra.mxu0 0
        %3914 = vmatprep.subr.bf16.mxu0 0
        %3915 = vmatpush2.bf16.msra.mxu0 0
        %3916 = vmatprep.subr.bf16.mxu0 0
        %3917 = vmatpush2.bf16.msra.mxu0 0
        %3918 = vmatprep.subr.bf16.mxu0 0
        %3919 = vmatpush2.bf16.msra.mxu0 0
        %3920 = vmatprep.mubr.bf16.mxu0 0
        %3921 = vmatmul.mubr.bf16.gmra.mxu0 %v3780
        %v3922 = vpop.f32.mrf.mxu0
        %v3923 = vadd.f32 0.0, %v3922
        %v3924 = vpop.f32.mrf.mxu0
        %v3925 = vadd.f32 0.0, %v3924
        %v3926 = vpop.f32.mrf.mxu0
        %v3927 = vpop.f32.mrf.mxu0
        %3928 = vdwg.mxu0
        %3929 = vmatprep.subr.bf16.mxu0 0
        %3930 = vmatpush1.bf16.msra.mxu0 0
        %3931 = vmatprep.subr.bf16.mxu0 0
        %3932 = vmatpush1.bf16.msra.mxu0 0
        %3933 = vmatprep.subr.bf16.mxu0 0
        %3934 = vmatpush1.bf16.msra.mxu0 0
        %3935 = vmatprep.subr.bf16.mxu0 0
        %3936 = vmatpush1.bf16.msra.mxu0 0
        %3937 = vmatprep.subr.bf16.mxu0 0
        %3938 = vmatpush1.bf16.msra.mxu0 0
        %3939 = vmatprep.subr.bf16.mxu0 0
        %3940 = vmatpush1.bf16.msra.mxu0 0
        %3941 = vmatprep.subr.bf16.mxu0 %v3804
        %3942 = vmatpush1.bf16.msra.mxu0 %v3801
        %3943 = vmatprep.subr.bf16.mxu0 %v3762
        %3944 = vmatpush1.bf16.msra.mxu0 %v3761
        %3945 = vmatprep.subr.bf16.mxu0 0
        %3946 = vmatpush2.bf16.msra.mxu0 0
        %3947 = vmatprep.subr.bf16.mxu0 0
        %3948 = vmatpush2.bf16.msra.mxu0 0
        %3949 = vmatprep.subr.bf16.mxu0 0
        %3950 = vmatpush2.bf16.msra.mxu0 0
        %3951 = vmatprep.subr.bf16.mxu0 0
        %3952 = vmatpush2.bf16.msra.mxu0 0
        %3953 = vmatprep.subr.bf16.mxu0 0
        %3954 = vmatpush2.bf16.msra.mxu0 0
        %3955 = vmatprep.subr.bf16.mxu0 0
        %3956 = vmatpush2.bf16.msra.mxu0 0
        %3957 = vmatprep.subr.bf16.mxu0 0
        %3958 = vmatpush2.bf16.msra.mxu0 0
        %3959 = vmatprep.subr.bf16.mxu0 0
        %3960 = vmatpush2.bf16.msra.mxu0 0
        %3961 = vmatprep.mubr.bf16.mxu0 0
        %3962 = vmatmul.mubr.bf16.gmra.mxu0 %v3780
        %v3963 = vpop.f32.mrf.mxu0
        %v3964 = vadd.f32 0.0, %v3963
        %v3965 = vpop.f32.mrf.mxu0
        %v3966 = vadd.f32 0.0, %v3965
        %v3967 = vpop.f32.mrf.mxu0
        %v3968 = vpop.f32.mrf.mxu0
        %3969 = vdwg.mxu0
        %v3970 = vadd.f32 %v3588, %v3841
        %v3971 = vadd.f32 %v3590, %v3843
        %v3972 = vadd.f32 %v3629, %v3882
        %v3973 = vadd.f32 %v3631, %v3884
        %v3974 = vadd.f32 %v3670, %v3923
        %v3975 = vadd.f32 %v3672, %v3925
        %v3976 = vadd.f32 %v3711, %v3964
        %v3977 = vadd.f32 %v3713, %v3966
        %s3978 = scalar_lea.vmem %s3, 6
        %v3979 = vld [vmem:[%s3978] sm:$0x3]
        %3980 = vrot.lane.b32.xlu0 %v3171, 11
        %v3981 = vpop.permute.xlu0 %3980
        %3982 = vrot.lane.b32.xlu0 %v3174, 11
        %v3983 = vpop.permute.xlu0 %3982
        %3984 = vrot.lane.b32.xlu0 %v3177, 11
        %v3985 = vpop.permute.xlu0 %3984
        %3986 = vrot.lane.b32.xlu0 %v3180, 11
        %v3987 = vpop.permute.xlu0 %3986
        %3988 = vrot.lane.b32.xlu0 %v3183, 11
        %v3989 = vpop.permute.xlu0 %3988
        %3990 = vrot.lane.b32.xlu0 %v3186, 11
        %v3991 = vpop.permute.xlu0 %3990
        %3992 = vrot.lane.b32.xlu0 %v3189, 11
        %v3993 = vpop.permute.xlu0 %3992
        %3994 = vrot.lane.b32.xlu0 %v3205, 11
        %v3995 = vpop.permute.xlu0 %3994
        %3996 = vrot.lane.b32.xlu0 %v3208, 11
        %v3997 = vpop.permute.xlu0 %3996
        %3998 = vrot.lane.b32.xlu0 %v3162, 11
        %v3999 = vpop.permute.xlu0 %3998
        %4000 = vrot.lane.b32.xlu0 %v3163, 11
        %v4001 = vpop.permute.xlu0 %4000
        %4002 = vrot.lane.b32.xlu0 %v3164, 11
        %v4003 = vpop.permute.xlu0 %4002
        %4004 = vrot.lane.b32.xlu0 %v3165, 11
        %v4005 = vpop.permute.xlu0 %4004
        %4006 = vrot.lane.b32.xlu0 %v3166, 11
        %v4007 = vpop.permute.xlu0 %4006
        %4008 = vrot.lane.b32.xlu0 %v3167, 11
        %v4009 = vpop.permute.xlu0 %4008
        %4010 = vrot.lane.b32.xlu0 %v3168, 11
        %v4011 = vpop.permute.xlu0 %4010
        %4012 = vrot.lane.b32.xlu0 %v3203, 11
        %v4013 = vpop.permute.xlu0 %4012
        %4014 = vrot.lane.b32.xlu0 %v3202, 11
        %v4015 = vpop.permute.xlu0 %4014
        %v4016 = vsel %vm1220, %v3981, %v3983
        %v4017 = vsel %vm1220, %v3983, %v3985
        %v4018 = vsel %vm1220, %v3985, %v3987
        %v4019 = vsel %vm1220, %v3987, %v3989
        %v4020 = vsel %vm1220, %v3989, %v3991
        %v4021 = vsel %vm1220, %v3991, %v3993
        %v4022 = vsel %vm1220, %v3993, %v3995
        %v4023 = vsel %vm1220, %v3995, %v3997
        %v4024 = vsel %vm1220, %v3999, %v4001
        %v4025 = vsel %vm1220, %v4001, %v4003
        %v4026 = vsel %vm1220, %v4003, %v4005
        %v4027 = vsel %vm1220, %v4005, %v4007
        %v4028 = vsel %vm1220, %v4007, %v4009
        %v4029 = vsel %vm1220, %v4009, %v4011
        %v4030 = vsel %vm1220, %v4011, %v4013
        %v4031 = vsel %vm1220, %v4013, %v4015
        %v4041 = vsel %vm481, %v3979, 0
        %v4044 = vsel %vm368, %v4024, 0
        %v4047 = vsel %vm368, %v4025, 0
        %v4050 = vsel %vm368, %v4026, 0
        %v4053 = vsel %vm368, %v4027, 0
        %v4056 = vsel %vm368, %v4028, 0
        %v4059 = vsel %vm368, %v4029, 0
        %v4062 = vsel %vm368, %v4030, 0
        %v4065 = vsel %vm368, %v4031, 0
        %4067 = vmatprep.subr.bf16.mxu0 0
        %4068 = vmatpush1.bf16.msra.mxu0 0
        %4069 = vmatprep.subr.bf16.mxu0 0
        %4070 = vmatpush1.bf16.msra.mxu0 0
        %4071 = vmatprep.subr.bf16.mxu0 0
        %4072 = vmatpush1.bf16.msra.mxu0 0
        %4073 = vmatprep.subr.bf16.mxu0 0
        %4074 = vmatpush1.bf16.msra.mxu0 0
        %4075 = vmatprep.subr.bf16.mxu0 0
        %4076 = vmatpush1.bf16.msra.mxu0 0
        %4077 = vmatprep.subr.bf16.mxu0 0
        %4078 = vmatpush1.bf16.msra.mxu0 0
        %4079 = vmatprep.subr.bf16.mxu0 %v4047
        %4080 = vmatpush1.bf16.msra.mxu0 %v4044
        %4081 = vmatprep.subr.bf16.mxu0 %v4017
        %4082 = vmatpush1.bf16.msra.mxu0 %v4016
        %4083 = vmatprep.subr.bf16.mxu0 0
        %4084 = vmatpush2.bf16.msra.mxu0 0
        %4085 = vmatprep.subr.bf16.mxu0 0
        %4086 = vmatpush2.bf16.msra.mxu0 0
        %4087 = vmatprep.subr.bf16.mxu0 0
        %4088 = vmatpush2.bf16.msra.mxu0 0
        %4089 = vmatprep.subr.bf16.mxu0 0
        %4090 = vmatpush2.bf16.msra.mxu0 0
        %4091 = vmatprep.subr.bf16.mxu0 0
        %4092 = vmatpush2.bf16.msra.mxu0 0
        %4093 = vmatprep.subr.bf16.mxu0 0
        %4094 = vmatpush2.bf16.msra.mxu0 0
        %4095 = vmatprep.subr.bf16.mxu0 0
        %4096 = vmatpush2.bf16.msra.mxu0 0
        %4097 = vmatprep.subr.bf16.mxu0 0
        %4098 = vmatpush2.bf16.msra.mxu0 0
        %4099 = vmatprep.mubr.bf16.mxu0 0
        %4100 = vmatmul.mubr.bf16.gmra.mxu0 %v4041
        %v4101 = vpop.f32.mrf.mxu0
        %v4102 = vadd.f32 0.0, %v4101
        %v4103 = vpop.f32.mrf.mxu0
        %v4104 = vadd.f32 0.0, %v4103
        %v4105 = vpop.f32.mrf.mxu0
        %v4106 = vpop.f32.mrf.mxu0
        %4107 = vdwg.mxu0
        %4108 = vmatprep.subr.bf16.mxu0 0
        %4109 = vmatpush1.bf16.msra.mxu0 0
        %4110 = vmatprep.subr.bf16.mxu0 0
        %4111 = vmatpush1.bf16.msra.mxu0 0
        %4112 = vmatprep.subr.bf16.mxu0 0
        %4113 = vmatpush1.bf16.msra.mxu0 0
        %4114 = vmatprep.subr.bf16.mxu0 0
        %4115 = vmatpush1.bf16.msra.mxu0 0
        %4116 = vmatprep.subr.bf16.mxu0 0
        %4117 = vmatpush1.bf16.msra.mxu0 0
        %4118 = vmatprep.subr.bf16.mxu0 0
        %4119 = vmatpush1.bf16.msra.mxu0 0
        %4120 = vmatprep.subr.bf16.mxu0 %v4053
        %4121 = vmatpush1.bf16.msra.mxu0 %v4050
        %4122 = vmatprep.subr.bf16.mxu0 %v4019
        %4123 = vmatpush1.bf16.msra.mxu0 %v4018
        %4124 = vmatprep.subr.bf16.mxu0 0
        %4125 = vmatpush2.bf16.msra.mxu0 0
        %4126 = vmatprep.subr.bf16.mxu0 0
        %4127 = vmatpush2.bf16.msra.mxu0 0
        %4128 = vmatprep.subr.bf16.mxu0 0
        %4129 = vmatpush2.bf16.msra.mxu0 0
        %4130 = vmatprep.subr.bf16.mxu0 0
        %4131 = vmatpush2.bf16.msra.mxu0 0
        %4132 = vmatprep.subr.bf16.mxu0 0
        %4133 = vmatpush2.bf16.msra.mxu0 0
        %4134 = vmatprep.subr.bf16.mxu0 0
        %4135 = vmatpush2.bf16.msra.mxu0 0
        %4136 = vmatprep.subr.bf16.mxu0 0
        %4137 = vmatpush2.bf16.msra.mxu0 0
        %4138 = vmatprep.subr.bf16.mxu0 0
        %4139 = vmatpush2.bf16.msra.mxu0 0
        %4140 = vmatprep.mubr.bf16.mxu0 0
        %4141 = vmatmul.mubr.bf16.gmra.mxu0 %v4041
        %v4142 = vpop.f32.mrf.mxu0
        %v4143 = vadd.f32 0.0, %v4142
        %v4144 = vpop.f32.mrf.mxu0
        %v4145 = vadd.f32 0.0, %v4144
        %v4146 = vpop.f32.mrf.mxu0
        %v4147 = vpop.f32.mrf.mxu0
        %4148 = vdwg.mxu0
        %4149 = vmatprep.subr.bf16.mxu0 0
        %4150 = vmatpush1.bf16.msra.mxu0 0
        %4151 = vmatprep.subr.bf16.mxu0 0
        %4152 = vmatpush1.bf16.msra.mxu0 0
        %4153 = vmatprep.subr.bf16.mxu0 0
        %4154 = vmatpush1.bf16.msra.mxu0 0
        %4155 = vmatprep.subr.bf16.mxu0 0
        %4156 = vmatpush1.bf16.msra.mxu0 0
        %4157 = vmatprep.subr.bf16.mxu0 0
        %4158 = vmatpush1.bf16.msra.mxu0 0
        %4159 = vmatprep.subr.bf16.mxu0 0
        %4160 = vmatpush1.bf16.msra.mxu0 0
        %4161 = vmatprep.subr.bf16.mxu0 %v4059
        %4162 = vmatpush1.bf16.msra.mxu0 %v4056
        %4163 = vmatprep.subr.bf16.mxu0 %v4021
        %4164 = vmatpush1.bf16.msra.mxu0 %v4020
        %4165 = vmatprep.subr.bf16.mxu0 0
        %4166 = vmatpush2.bf16.msra.mxu0 0
        %4167 = vmatprep.subr.bf16.mxu0 0
        %4168 = vmatpush2.bf16.msra.mxu0 0
        %4169 = vmatprep.subr.bf16.mxu0 0
        %4170 = vmatpush2.bf16.msra.mxu0 0
        %4171 = vmatprep.subr.bf16.mxu0 0
        %4172 = vmatpush2.bf16.msra.mxu0 0
        %4173 = vmatprep.subr.bf16.mxu0 0
        %4174 = vmatpush2.bf16.msra.mxu0 0
        %4175 = vmatprep.subr.bf16.mxu0 0
        %4176 = vmatpush2.bf16.msra.mxu0 0
        %4177 = vmatprep.subr.bf16.mxu0 0
        %4178 = vmatpush2.bf16.msra.mxu0 0
        %4179 = vmatprep.subr.bf16.mxu0 0
        %4180 = vmatpush2.bf16.msra.mxu0 0
        %4181 = vmatprep.mubr.bf16.mxu0 0
        %4182 = vmatmul.mubr.bf16.gmra.mxu0 %v4041
        %v4183 = vpop.f32.mrf.mxu0
        %v4184 = vadd.f32 0.0, %v4183
        %v4185 = vpop.f32.mrf.mxu0
        %v4186 = vadd.f32 0.0, %v4185
        %v4187 = vpop.f32.mrf.mxu0
        %v4188 = vpop.f32.mrf.mxu0
        %4189 = vdwg.mxu0
        %4190 = vmatprep.subr.bf16.mxu0 0
        %4191 = vmatpush1.bf16.msra.mxu0 0
        %4192 = vmatprep.subr.bf16.mxu0 0
        %4193 = vmatpush1.bf16.msra.mxu0 0
        %4194 = vmatprep.subr.bf16.mxu0 0
        %4195 = vmatpush1.bf16.msra.mxu0 0
        %4196 = vmatprep.subr.bf16.mxu0 0
        %4197 = vmatpush1.bf16.msra.mxu0 0
        %4198 = vmatprep.subr.bf16.mxu0 0
        %4199 = vmatpush1.bf16.msra.mxu0 0
        %4200 = vmatprep.subr.bf16.mxu0 0
        %4201 = vmatpush1.bf16.msra.mxu0 0
        %4202 = vmatprep.subr.bf16.mxu0 %v4065
        %4203 = vmatpush1.bf16.msra.mxu0 %v4062
        %4204 = vmatprep.subr.bf16.mxu0 %v4023
        %4205 = vmatpush1.bf16.msra.mxu0 %v4022
        %4206 = vmatprep.subr.bf16.mxu0 0
        %4207 = vmatpush2.bf16.msra.mxu0 0
        %4208 = vmatprep.subr.bf16.mxu0 0
        %4209 = vmatpush2.bf16.msra.mxu0 0
        %4210 = vmatprep.subr.bf16.mxu0 0
        %4211 = vmatpush2.bf16.msra.mxu0 0
        %4212 = vmatprep.subr.bf16.mxu0 0
        %4213 = vmatpush2.bf16.msra.mxu0 0
        %4214 = vmatprep.subr.bf16.mxu0 0
        %4215 = vmatpush2.bf16.msra.mxu0 0
        %4216 = vmatprep.subr.bf16.mxu0 0
        %4217 = vmatpush2.bf16.msra.mxu0 0
        %4218 = vmatprep.subr.bf16.mxu0 0
        %4219 = vmatpush2.bf16.msra.mxu0 0
        %4220 = vmatprep.subr.bf16.mxu0 0
        %4221 = vmatpush2.bf16.msra.mxu0 0
        %4222 = vmatprep.mubr.bf16.mxu0 0
        %4223 = vmatmul.mubr.bf16.gmra.mxu0 %v4041
        %v4224 = vpop.f32.mrf.mxu0
        %v4225 = vadd.f32 0.0, %v4224
        %v4226 = vpop.f32.mrf.mxu0
        %v4227 = vadd.f32 0.0, %v4226
        %v4228 = vpop.f32.mrf.mxu0
        %v4229 = vpop.f32.mrf.mxu0
        %4230 = vdwg.mxu0
        %v4231 = vadd.f32 %v3970, %v4102
        %v4232 = vadd.f32 %v3971, %v4104
        %v4233 = vadd.f32 %v3972, %v4143
        %v4234 = vadd.f32 %v3973, %v4145
        %v4235 = vadd.f32 %v3974, %v4184
        %v4236 = vadd.f32 %v3975, %v4186
        %v4237 = vadd.f32 %v3976, %v4225
        %v4238 = vadd.f32 %v3977, %v4227
        %v4239 = vld [vmem:[#allocation2 + $0x4] sm:$0xff]
        %v4240 = vld [vmem:[#allocation2 + $0xc] sm:$0xff]
        %v4241 = vld [vmem:[#allocation2 + $0x14] sm:$0xff]
        %v4242 = vld [vmem:[#allocation2 + $0x1c] sm:$0xff]
        %v4247 = vunpack.c.l.b16 %v4239
        %v4248 = vunpack.c.h.b16 %v4239
        %v4249 = vunpack.c.l.b16 %v4240
        %v4250 = vunpack.c.h.b16 %v4240
        %v4251 = vunpack.c.l.b16 %v4241
        %v4252 = vunpack.c.h.b16 %v4241
        %v4253 = vunpack.c.l.b16 %v4242
        %v4254 = vunpack.c.h.b16 %v4242
        %v4255 = vpack.c.b16 %v4247, %v4247
        %v4256 = vpack.c.b16 %v4248, %v4248
        %v4257 = vpack.c.b16 %v4249, %v4249
        %v4258 = vpack.c.b16 %v4250, %v4250
        %v4259 = vpack.c.b16 %v4251, %v4251
        %v4260 = vpack.c.b16 %v4252, %v4252
        %v4261 = vpack.c.b16 %v4253, %v4253
        %v4262 = vpack.c.b16 %v4254, %v4254
        %4263 = vrot.lane.b32.xlu0 %v4255, 127
        %v4264 = vpop.permute.xlu0 %4263
        %4265 = vrot.lane.b32.xlu0 %v4256, 127
        %v4266 = vpop.permute.xlu0 %4265
        %4267 = vrot.lane.b32.xlu0 %v4257, 127
        %v4268 = vpop.permute.xlu0 %4267
        %4269 = vrot.lane.b32.xlu0 %v4258, 127
        %v4270 = vpop.permute.xlu0 %4269
        %4271 = vrot.lane.b32.xlu0 %v4259, 127
        %v4272 = vpop.permute.xlu0 %4271
        %4273 = vrot.lane.b32.xlu0 %v4260, 127
        %v4274 = vpop.permute.xlu0 %4273
        %4275 = vrot.lane.b32.xlu0 %v4261, 127
        %v4276 = vpop.permute.xlu0 %4275
        %4277 = vrot.lane.b32.xlu0 %v4262, 127
        %v4278 = vpop.permute.xlu0 %4277
        %v4279 = vsel %vm336, %v4264, %v4266
        %v4280 = vsel %vm336, %v4266, %v4268
        %v4281 = vsel %vm336, %v4268, %v4270
        %v4282 = vsel %vm336, %v4270, %v4272
        %v4283 = vsel %vm336, %v4272, %v4274
        %v4284 = vsel %vm336, %v4274, %v4276
        %v4285 = vsel %vm336, %v4276, %v4278
        %4286 = vrot.lane.b32.xlu0 %v4255, 126
        %v4287 = vpop.permute.xlu0 %4286
        %4288 = vrot.lane.b32.xlu0 %v4256, 126
        %v4289 = vpop.permute.xlu0 %4288
        %4290 = vrot.lane.b32.xlu0 %v4257, 126
        %v4291 = vpop.permute.xlu0 %4290
        %4292 = vrot.lane.b32.xlu0 %v4258, 126
        %v4293 = vpop.permute.xlu0 %4292
        %4294 = vrot.lane.b32.xlu0 %v4259, 126
        %v4295 = vpop.permute.xlu0 %4294
        %4296 = vrot.lane.b32.xlu0 %v4260, 126
        %v4297 = vpop.permute.xlu0 %4296
        %4298 = vrot.lane.b32.xlu0 %v4261, 126
        %v4299 = vpop.permute.xlu0 %4298
        %4300 = vrot.lane.b32.xlu0 %v4262, 126
        %v4301 = vpop.permute.xlu0 %4300
        %v4302 = vsel %vm360, %v4287, %v4289
        %v4303 = vsel %vm360, %v4289, %v4291
        %v4304 = vsel %vm360, %v4291, %v4293
        %v4305 = vsel %vm360, %v4293, %v4295
        %v4306 = vsel %vm360, %v4295, %v4297
        %v4307 = vsel %vm360, %v4297, %v4299
        %v4308 = vsel %vm360, %v4299, %v4301
        %v4310 = vsel %vm368, %v3115, %v4264
        %v4312 = vsel %vm368, %v3116, %v4279
        %v4314 = vsel %vm368, %v3117, %v4280
        %v4316 = vsel %vm368, %v3118, %v4281
        %v4318 = vsel %vm368, %v3119, %v4282
        %v4320 = vsel %vm368, %v3120, %v4283
        %v4322 = vsel %vm368, %v3121, %v4284
        %v4324 = vsel %vm368, %v3122, %v4285
        %v4326 = vsel %vm368, %v3197, %v4278
        %s4327 = scalar_lea.vmem %s3, 8
        %v4328 = vld [vmem:[%s4327] sm:$0x3]
        %4338 = vrot.lane.b32.xlu0 %v4310, 1
        %v4339 = vpop.permute.xlu0 %4338
        %4340 = vrot.lane.b32.xlu0 %v4312, 1
        %v4341 = vpop.permute.xlu0 %4340
        %4342 = vrot.lane.b32.xlu0 %v4314, 1
        %v4343 = vpop.permute.xlu0 %4342
        %4344 = vrot.lane.b32.xlu0 %v4316, 1
        %v4345 = vpop.permute.xlu0 %4344
        %4346 = vrot.lane.b32.xlu0 %v4318, 1
        %v4347 = vpop.permute.xlu0 %4346
        %4348 = vrot.lane.b32.xlu0 %v4320, 1
        %v4349 = vpop.permute.xlu0 %4348
        %4350 = vrot.lane.b32.xlu0 %v4322, 1
        %v4351 = vpop.permute.xlu0 %4350
        %4352 = vrot.lane.b32.xlu0 %v4324, 1
        %v4353 = vpop.permute.xlu0 %4352
        %4354 = vrot.lane.b32.xlu0 %v4326, 1
        %v4355 = vpop.permute.xlu0 %4354
        %4356 = vrot.lane.b32.xlu0 %v4287, 1
        %v4357 = vpop.permute.xlu0 %4356
        %4358 = vrot.lane.b32.xlu0 %v4302, 1
        %v4359 = vpop.permute.xlu0 %4358
        %4360 = vrot.lane.b32.xlu0 %v4303, 1
        %v4361 = vpop.permute.xlu0 %4360
        %4362 = vrot.lane.b32.xlu0 %v4304, 1
        %v4363 = vpop.permute.xlu0 %4362
        %4364 = vrot.lane.b32.xlu0 %v4305, 1
        %v4365 = vpop.permute.xlu0 %4364
        %4366 = vrot.lane.b32.xlu0 %v4306, 1
        %v4367 = vpop.permute.xlu0 %4366
        %4368 = vrot.lane.b32.xlu0 %v4307, 1
        %v4369 = vpop.permute.xlu0 %4368
        %4370 = vrot.lane.b32.xlu0 %v4308, 1
        %v4371 = vpop.permute.xlu0 %4370
        %4372 = vrot.lane.b32.xlu0 %v4301, 1
        %v4373 = vpop.permute.xlu0 %4372
        %v4374 = vsel %vm1579, %v4339, %v4341
        %v4375 = vsel %vm1579, %v4341, %v4343
        %v4376 = vsel %vm1579, %v4343, %v4345
        %v4377 = vsel %vm1579, %v4345, %v4347
        %v4378 = vsel %vm1579, %v4347, %v4349
        %v4379 = vsel %vm1579, %v4349, %v4351
        %v4380 = vsel %vm1579, %v4351, %v4353
        %v4381 = vsel %vm1579, %v4353, %v4355
        %v4382 = vsel %vm1579, %v4357, %v4359
        %v4383 = vsel %vm1579, %v4359, %v4361
        %v4384 = vsel %vm1579, %v4361, %v4363
        %v4385 = vsel %vm1579, %v4363, %v4365
        %v4386 = vsel %vm1579, %v4365, %v4367
        %v4387 = vsel %vm1579, %v4367, %v4369
        %v4388 = vsel %vm1579, %v4369, %v4371
        %v4389 = vsel %vm1579, %v4371, %v4373
        %v4399 = vsel %vm481, %v4328, 0
        %v4402 = vsel %vm368, %v4382, 0
        %v4405 = vsel %vm368, %v4383, 0
        %v4408 = vsel %vm368, %v4384, 0
        %v4411 = vsel %vm368, %v4385, 0
        %v4414 = vsel %vm368, %v4386, 0
        %v4417 = vsel %vm368, %v4387, 0
        %v4420 = vsel %vm368, %v4388, 0
        %v4423 = vsel %vm368, %v4389, 0
        %4425 = vmatprep.subr.bf16.mxu0 0
        %4426 = vmatpush1.bf16.msra.mxu0 0
        %4427 = vmatprep.subr.bf16.mxu0 0
        %4428 = vmatpush1.bf16.msra.mxu0 0
        %4429 = vmatprep.subr.bf16.mxu0 0
        %4430 = vmatpush1.bf16.msra.mxu0 0
        %4431 = vmatprep.subr.bf16.mxu0 0
        %4432 = vmatpush1.bf16.msra.mxu0 0
        %4433 = vmatprep.subr.bf16.mxu0 0
        %4434 = vmatpush1.bf16.msra.mxu0 0
        %4435 = vmatprep.subr.bf16.mxu0 0
        %4436 = vmatpush1.bf16.msra.mxu0 0
        %4437 = vmatprep.subr.bf16.mxu0 %v4405
        %4438 = vmatpush1.bf16.msra.mxu0 %v4402
        %4439 = vmatprep.subr.bf16.mxu0 %v4375
        %4440 = vmatpush1.bf16.msra.mxu0 %v4374
        %4441 = vmatprep.subr.bf16.mxu0 0
        %4442 = vmatpush2.bf16.msra.mxu0 0
        %4443 = vmatprep.subr.bf16.mxu0 0
        %4444 = vmatpush2.bf16.msra.mxu0 0
        %4445 = vmatprep.subr.bf16.mxu0 0
        %4446 = vmatpush2.bf16.msra.mxu0 0
        %4447 = vmatprep.subr.bf16.mxu0 0
        %4448 = vmatpush2.bf16.msra.mxu0 0
        %4449 = vmatprep.subr.bf16.mxu0 0
        %4450 = vmatpush2.bf16.msra.mxu0 0
        %4451 = vmatprep.subr.bf16.mxu0 0
        %4452 = vmatpush2.bf16.msra.mxu0 0
        %4453 = vmatprep.subr.bf16.mxu0 0
        %4454 = vmatpush2.bf16.msra.mxu0 0
        %4455 = vmatprep.subr.bf16.mxu0 0
        %4456 = vmatpush2.bf16.msra.mxu0 0
        %4457 = vmatprep.mubr.bf16.mxu0 0
        %4458 = vmatmul.mubr.bf16.gmra.mxu0 %v4399
        %v4459 = vpop.f32.mrf.mxu0
        %v4460 = vadd.f32 0.0, %v4459
        %v4461 = vpop.f32.mrf.mxu0
        %v4462 = vadd.f32 0.0, %v4461
        %v4463 = vpop.f32.mrf.mxu0
        %v4464 = vpop.f32.mrf.mxu0
        %4465 = vdwg.mxu0
        %4466 = vmatprep.subr.bf16.mxu0 0
        %4467 = vmatpush1.bf16.msra.mxu0 0
        %4468 = vmatprep.subr.bf16.mxu0 0
        %4469 = vmatpush1.bf16.msra.mxu0 0
        %4470 = vmatprep.subr.bf16.mxu0 0
        %4471 = vmatpush1.bf16.msra.mxu0 0
        %4472 = vmatprep.subr.bf16.mxu0 0
        %4473 = vmatpush1.bf16.msra.mxu0 0
        %4474 = vmatprep.subr.bf16.mxu0 0
        %4475 = vmatpush1.bf16.msra.mxu0 0
        %4476 = vmatprep.subr.bf16.mxu0 0
        %4477 = vmatpush1.bf16.msra.mxu0 0
        %4478 = vmatprep.subr.bf16.mxu0 %v4411
        %4479 = vmatpush1.bf16.msra.mxu0 %v4408
        %4480 = vmatprep.subr.bf16.mxu0 %v4377
        %4481 = vmatpush1.bf16.msra.mxu0 %v4376
        %4482 = vmatprep.subr.bf16.mxu0 0
        %4483 = vmatpush2.bf16.msra.mxu0 0
        %4484 = vmatprep.subr.bf16.mxu0 0
        %4485 = vmatpush2.bf16.msra.mxu0 0
        %4486 = vmatprep.subr.bf16.mxu0 0
        %4487 = vmatpush2.bf16.msra.mxu0 0
        %4488 = vmatprep.subr.bf16.mxu0 0
        %4489 = vmatpush2.bf16.msra.mxu0 0
        %4490 = vmatprep.subr.bf16.mxu0 0
        %4491 = vmatpush2.bf16.msra.mxu0 0
        %4492 = vmatprep.subr.bf16.mxu0 0
        %4493 = vmatpush2.bf16.msra.mxu0 0
        %4494 = vmatprep.subr.bf16.mxu0 0
        %4495 = vmatpush2.bf16.msra.mxu0 0
        %4496 = vmatprep.subr.bf16.mxu0 0
        %4497 = vmatpush2.bf16.msra.mxu0 0
        %4498 = vmatprep.mubr.bf16.mxu0 0
        %4499 = vmatmul.mubr.bf16.gmra.mxu0 %v4399
        %v4500 = vpop.f32.mrf.mxu0
        %v4501 = vadd.f32 0.0, %v4500
        %v4502 = vpop.f32.mrf.mxu0
        %v4503 = vadd.f32 0.0, %v4502
        %v4504 = vpop.f32.mrf.mxu0
        %v4505 = vpop.f32.mrf.mxu0
        %4506 = vdwg.mxu0
        %4507 = vmatprep.subr.bf16.mxu0 0
        %4508 = vmatpush1.bf16.msra.mxu0 0
        %4509 = vmatprep.subr.bf16.mxu0 0
        %4510 = vmatpush1.bf16.msra.mxu0 0
        %4511 = vmatprep.subr.bf16.mxu0 0
        %4512 = vmatpush1.bf16.msra.mxu0 0
        %4513 = vmatprep.subr.bf16.mxu0 0
        %4514 = vmatpush1.bf16.msra.mxu0 0
        %4515 = vmatprep.subr.bf16.mxu0 0
        %4516 = vmatpush1.bf16.msra.mxu0 0
        %4517 = vmatprep.subr.bf16.mxu0 0
        %4518 = vmatpush1.bf16.msra.mxu0 0
        %4519 = vmatprep.subr.bf16.mxu0 %v4417
        %4520 = vmatpush1.bf16.msra.mxu0 %v4414
        %4521 = vmatprep.subr.bf16.mxu0 %v4379
        %4522 = vmatpush1.bf16.msra.mxu0 %v4378
        %4523 = vmatprep.subr.bf16.mxu0 0
        %4524 = vmatpush2.bf16.msra.mxu0 0
        %4525 = vmatprep.subr.bf16.mxu0 0
        %4526 = vmatpush2.bf16.msra.mxu0 0
        %4527 = vmatprep.subr.bf16.mxu0 0
        %4528 = vmatpush2.bf16.msra.mxu0 0
        %4529 = vmatprep.subr.bf16.mxu0 0
        %4530 = vmatpush2.bf16.msra.mxu0 0
        %4531 = vmatprep.subr.bf16.mxu0 0
        %4532 = vmatpush2.bf16.msra.mxu0 0
        %4533 = vmatprep.subr.bf16.mxu0 0
        %4534 = vmatpush2.bf16.msra.mxu0 0
        %4535 = vmatprep.subr.bf16.mxu0 0
        %4536 = vmatpush2.bf16.msra.mxu0 0
        %4537 = vmatprep.subr.bf16.mxu0 0
        %4538 = vmatpush2.bf16.msra.mxu0 0
        %4539 = vmatprep.mubr.bf16.mxu0 0
        %4540 = vmatmul.mubr.bf16.gmra.mxu0 %v4399
        %v4541 = vpop.f32.mrf.mxu0
        %v4542 = vadd.f32 0.0, %v4541
        %v4543 = vpop.f32.mrf.mxu0
        %v4544 = vadd.f32 0.0, %v4543
        %v4545 = vpop.f32.mrf.mxu0
        %v4546 = vpop.f32.mrf.mxu0
        %4547 = vdwg.mxu0
        %4548 = vmatprep.subr.bf16.mxu0 0
        %4549 = vmatpush1.bf16.msra.mxu0 0
        %4550 = vmatprep.subr.bf16.mxu0 0
        %4551 = vmatpush1.bf16.msra.mxu0 0
        %4552 = vmatprep.subr.bf16.mxu0 0
        %4553 = vmatpush1.bf16.msra.mxu0 0
        %4554 = vmatprep.subr.bf16.mxu0 0
        %4555 = vmatpush1.bf16.msra.mxu0 0
        %4556 = vmatprep.subr.bf16.mxu0 0
        %4557 = vmatpush1.bf16.msra.mxu0 0
        %4558 = vmatprep.subr.bf16.mxu0 0
        %4559 = vmatpush1.bf16.msra.mxu0 0
        %4560 = vmatprep.subr.bf16.mxu0 %v4423
        %4561 = vmatpush1.bf16.msra.mxu0 %v4420
        %4562 = vmatprep.subr.bf16.mxu0 %v4381
        %4563 = vmatpush1.bf16.msra.mxu0 %v4380
        %4564 = vmatprep.subr.bf16.mxu0 0
        %4565 = vmatpush2.bf16.msra.mxu0 0
        %4566 = vmatprep.subr.bf16.mxu0 0
        %4567 = vmatpush2.bf16.msra.mxu0 0
        %4568 = vmatprep.subr.bf16.mxu0 0
        %4569 = vmatpush2.bf16.msra.mxu0 0
        %4570 = vmatprep.subr.bf16.mxu0 0
        %4571 = vmatpush2.bf16.msra.mxu0 0
        %4572 = vmatprep.subr.bf16.mxu0 0
        %4573 = vmatpush2.bf16.msra.mxu0 0
        %4574 = vmatprep.subr.bf16.mxu0 0
        %4575 = vmatpush2.bf16.msra.mxu0 0
        %4576 = vmatprep.subr.bf16.mxu0 0
        %4577 = vmatpush2.bf16.msra.mxu0 0
        %4578 = vmatprep.subr.bf16.mxu0 0
        %4579 = vmatpush2.bf16.msra.mxu0 0
        %4580 = vmatprep.mubr.bf16.mxu0 0
        %4581 = vmatmul.mubr.bf16.gmra.mxu0 %v4399
        %v4582 = vpop.f32.mrf.mxu0
        %v4583 = vadd.f32 0.0, %v4582
        %v4584 = vpop.f32.mrf.mxu0
        %v4585 = vadd.f32 0.0, %v4584
        %v4586 = vpop.f32.mrf.mxu0
        %v4587 = vpop.f32.mrf.mxu0
        %4588 = vdwg.mxu0
        %v4589 = vadd.f32 %v4231, %v4460
        %v4590 = vadd.f32 %v4232, %v4462
        %v4591 = vadd.f32 %v4233, %v4501
        %v4592 = vadd.f32 %v4234, %v4503
        %v4593 = vadd.f32 %v4235, %v4542
        %v4594 = vadd.f32 %v4236, %v4544
        %v4595 = vadd.f32 %v4237, %v4583
        %v4596 = vadd.f32 %v4238, %v4585
        %v4598 = vsel %vm368, %v4255, %v4279
        %v4600 = vsel %vm368, %v4256, %v4280
        %v4602 = vsel %vm368, %v4257, %v4281
        %v4604 = vsel %vm368, %v4258, %v4282
        %v4606 = vsel %vm368, %v4259, %v4283
        %v4608 = vsel %vm368, %v4260, %v4284
        %v4610 = vsel %vm368, %v4261, %v4285
        %v4612 = vsel %vm368, %v4262, %v4278
        %s4613 = scalar_lea.vmem %s3, 10
        %v4614 = vld [vmem:[%s4613] sm:$0x3]
        %4623 = vrot.lane.b32.xlu0 %v4598, 119
        %v4624 = vpop.permute.xlu0 %4623
        %4625 = vrot.lane.b32.xlu0 %v4600, 119
        %v4626 = vpop.permute.xlu0 %4625
        %4627 = vrot.lane.b32.xlu0 %v4602, 119
        %v4628 = vpop.permute.xlu0 %4627
        %4629 = vrot.lane.b32.xlu0 %v4604, 119
        %v4630 = vpop.permute.xlu0 %4629
        %4631 = vrot.lane.b32.xlu0 %v4606, 119
        %v4632 = vpop.permute.xlu0 %4631
        %4633 = vrot.lane.b32.xlu0 %v4608, 119
        %v4634 = vpop.permute.xlu0 %4633
        %4635 = vrot.lane.b32.xlu0 %v4610, 119
        %v4636 = vpop.permute.xlu0 %4635
        %4637 = vrot.lane.b32.xlu0 %v4612, 119
        %v4638 = vpop.permute.xlu0 %4637
        %4639 = vrot.lane.b32.xlu0 %v4302, 119
        %v4640 = vpop.permute.xlu0 %4639
        %4641 = vrot.lane.b32.xlu0 %v4303, 119
        %v4642 = vpop.permute.xlu0 %4641
        %4643 = vrot.lane.b32.xlu0 %v4304, 119
        %v4644 = vpop.permute.xlu0 %4643
        %4645 = vrot.lane.b32.xlu0 %v4305, 119
        %v4646 = vpop.permute.xlu0 %4645
        %4647 = vrot.lane.b32.xlu0 %v4306, 119
        %v4648 = vpop.permute.xlu0 %4647
        %4649 = vrot.lane.b32.xlu0 %v4307, 119
        %v4650 = vpop.permute.xlu0 %4649
        %4651 = vrot.lane.b32.xlu0 %v4308, 119
        %v4652 = vpop.permute.xlu0 %4651
        %4653 = vrot.lane.b32.xlu0 %v4301, 119
        %v4654 = vpop.permute.xlu0 %4653
        %v4655 = vsel %vm1861, %v4624, %v4626
        %v4656 = vsel %vm1861, %v4626, %v4628
        %v4657 = vsel %vm1861, %v4628, %v4630
        %v4658 = vsel %vm1861, %v4630, %v4632
        %v4659 = vsel %vm1861, %v4632, %v4634
        %v4660 = vsel %vm1861, %v4634, %v4636
        %v4661 = vsel %vm1861, %v4636, %v4638
        %v4662 = vsel %vm1861, %v4640, %v4642
        %v4663 = vsel %vm1861, %v4642, %v4644
        %v4664 = vsel %vm1861, %v4644, %v4646
        %v4665 = vsel %vm1861, %v4646, %v4648
        %v4666 = vsel %vm1861, %v4648, %v4650
        %v4667 = vsel %vm1861, %v4650, %v4652
        %v4668 = vsel %vm1861, %v4652, %v4654
        %v4678 = vsel %vm481, %v4614, 0
        %v4681 = vsel %vm368, %v4662, 0
        %v4684 = vsel %vm368, %v4663, 0
        %v4687 = vsel %vm368, %v4664, 0
        %v4690 = vsel %vm368, %v4665, 0
        %v4693 = vsel %vm368, %v4666, 0
        %v4696 = vsel %vm368, %v4667, 0
        %v4699 = vsel %vm368, %v4668, 0
        %v4702 = vsel %vm368, %v4654, 0
        %4704 = vmatprep.subr.bf16.mxu0 0
        %4705 = vmatpush1.bf16.msra.mxu0 0
        %4706 = vmatprep.subr.bf16.mxu0 0
        %4707 = vmatpush1.bf16.msra.mxu0 0
        %4708 = vmatprep.subr.bf16.mxu0 0
        %4709 = vmatpush1.bf16.msra.mxu0 0
        %4710 = vmatprep.subr.bf16.mxu0 0
        %4711 = vmatpush1.bf16.msra.mxu0 0
        %4712 = vmatprep.subr.bf16.mxu0 0
        %4713 = vmatpush1.bf16.msra.mxu0 0
        %4714 = vmatprep.subr.bf16.mxu0 0
        %4715 = vmatpush1.bf16.msra.mxu0 0
        %4716 = vmatprep.subr.bf16.mxu0 %v4684
        %4717 = vmatpush1.bf16.msra.mxu0 %v4681
        %4718 = vmatprep.subr.bf16.mxu0 %v4656
        %4719 = vmatpush1.bf16.msra.mxu0 %v4655
        %4720 = vmatprep.subr.bf16.mxu0 0
        %4721 = vmatpush2.bf16.msra.mxu0 0
        %4722 = vmatprep.subr.bf16.mxu0 0
        %4723 = vmatpush2.bf16.msra.mxu0 0
        %4724 = vmatprep.subr.bf16.mxu0 0
        %4725 = vmatpush2.bf16.msra.mxu0 0
        %4726 = vmatprep.subr.bf16.mxu0 0
        %4727 = vmatpush2.bf16.msra.mxu0 0
        %4728 = vmatprep.subr.bf16.mxu0 0
        %4729 = vmatpush2.bf16.msra.mxu0 0
        %4730 = vmatprep.subr.bf16.mxu0 0
        %4731 = vmatpush2.bf16.msra.mxu0 0
        %4732 = vmatprep.subr.bf16.mxu0 0
        %4733 = vmatpush2.bf16.msra.mxu0 0
        %4734 = vmatprep.subr.bf16.mxu0 0
        %4735 = vmatpush2.bf16.msra.mxu0 0
        %4736 = vmatprep.mubr.bf16.mxu0 0
        %4737 = vmatmul.mubr.bf16.gmra.mxu0 %v4678
        %v4738 = vpop.f32.mrf.mxu0
        %v4739 = vadd.f32 0.0, %v4738
        %v4740 = vpop.f32.mrf.mxu0
        %v4741 = vadd.f32 0.0, %v4740
        %v4742 = vpop.f32.mrf.mxu0
        %v4743 = vpop.f32.mrf.mxu0
        %4744 = vdwg.mxu0
        %4745 = vmatprep.subr.bf16.mxu0 0
        %4746 = vmatpush1.bf16.msra.mxu0 0
        %4747 = vmatprep.subr.bf16.mxu0 0
        %4748 = vmatpush1.bf16.msra.mxu0 0
        %4749 = vmatprep.subr.bf16.mxu0 0
        %4750 = vmatpush1.bf16.msra.mxu0 0
        %4751 = vmatprep.subr.bf16.mxu0 0
        %4752 = vmatpush1.bf16.msra.mxu0 0
        %4753 = vmatprep.subr.bf16.mxu0 0
        %4754 = vmatpush1.bf16.msra.mxu0 0
        %4755 = vmatprep.subr.bf16.mxu0 0
        %4756 = vmatpush1.bf16.msra.mxu0 0
        %4757 = vmatprep.subr.bf16.mxu0 %v4690
        %4758 = vmatpush1.bf16.msra.mxu0 %v4687
        %4759 = vmatprep.subr.bf16.mxu0 %v4658
        %4760 = vmatpush1.bf16.msra.mxu0 %v4657
        %4761 = vmatprep.subr.bf16.mxu0 0
        %4762 = vmatpush2.bf16.msra.mxu0 0
        %4763 = vmatprep.subr.bf16.mxu0 0
        %4764 = vmatpush2.bf16.msra.mxu0 0
        %4765 = vmatprep.subr.bf16.mxu0 0
        %4766 = vmatpush2.bf16.msra.mxu0 0
        %4767 = vmatprep.subr.bf16.mxu0 0
        %4768 = vmatpush2.bf16.msra.mxu0 0
        %4769 = vmatprep.subr.bf16.mxu0 0
        %4770 = vmatpush2.bf16.msra.mxu0 0
        %4771 = vmatprep.subr.bf16.mxu0 0
        %4772 = vmatpush2.bf16.msra.mxu0 0
        %4773 = vmatprep.subr.bf16.mxu0 0
        %4774 = vmatpush2.bf16.msra.mxu0 0
        %4775 = vmatprep.subr.bf16.mxu0 0
        %4776 = vmatpush2.bf16.msra.mxu0 0
        %4777 = vmatprep.mubr.bf16.mxu0 0
        %4778 = vmatmul.mubr.bf16.gmra.mxu0 %v4678
        %v4779 = vpop.f32.mrf.mxu0
        %v4780 = vadd.f32 0.0, %v4779
        %v4781 = vpop.f32.mrf.mxu0
        %v4782 = vadd.f32 0.0, %v4781
        %v4783 = vpop.f32.mrf.mxu0
        %v4784 = vpop.f32.mrf.mxu0
        %4785 = vdwg.mxu0
        %4786 = vmatprep.subr.bf16.mxu0 0
        %4787 = vmatpush1.bf16.msra.mxu0 0
        %4788 = vmatprep.subr.bf16.mxu0 0
        %4789 = vmatpush1.bf16.msra.mxu0 0
        %4790 = vmatprep.subr.bf16.mxu0 0
        %4791 = vmatpush1.bf16.msra.mxu0 0
        %4792 = vmatprep.subr.bf16.mxu0 0
        %4793 = vmatpush1.bf16.msra.mxu0 0
        %4794 = vmatprep.subr.bf16.mxu0 0
        %4795 = vmatpush1.bf16.msra.mxu0 0
        %4796 = vmatprep.subr.bf16.mxu0 0
        %4797 = vmatpush1.bf16.msra.mxu0 0
        %4798 = vmatprep.subr.bf16.mxu0 %v4696
        %4799 = vmatpush1.bf16.msra.mxu0 %v4693
        %4800 = vmatprep.subr.bf16.mxu0 %v4660
        %4801 = vmatpush1.bf16.msra.mxu0 %v4659
        %4802 = vmatprep.subr.bf16.mxu0 0
        %4803 = vmatpush2.bf16.msra.mxu0 0
        %4804 = vmatprep.subr.bf16.mxu0 0
        %4805 = vmatpush2.bf16.msra.mxu0 0
        %4806 = vmatprep.subr.bf16.mxu0 0
        %4807 = vmatpush2.bf16.msra.mxu0 0
        %4808 = vmatprep.subr.bf16.mxu0 0
        %4809 = vmatpush2.bf16.msra.mxu0 0
        %4810 = vmatprep.subr.bf16.mxu0 0
        %4811 = vmatpush2.bf16.msra.mxu0 0
        %4812 = vmatprep.subr.bf16.mxu0 0
        %4813 = vmatpush2.bf16.msra.mxu0 0
        %4814 = vmatprep.subr.bf16.mxu0 0
        %4815 = vmatpush2.bf16.msra.mxu0 0
        %4816 = vmatprep.subr.bf16.mxu0 0
        %4817 = vmatpush2.bf16.msra.mxu0 0
        %4818 = vmatprep.mubr.bf16.mxu0 0
        %4819 = vmatmul.mubr.bf16.gmra.mxu0 %v4678
        %v4820 = vpop.f32.mrf.mxu0
        %v4821 = vadd.f32 0.0, %v4820
        %v4822 = vpop.f32.mrf.mxu0
        %v4823 = vadd.f32 0.0, %v4822
        %v4824 = vpop.f32.mrf.mxu0
        %v4825 = vpop.f32.mrf.mxu0
        %4826 = vdwg.mxu0
        %4827 = vmatprep.subr.bf16.mxu0 0
        %4828 = vmatpush1.bf16.msra.mxu0 0
        %4829 = vmatprep.subr.bf16.mxu0 0
        %4830 = vmatpush1.bf16.msra.mxu0 0
        %4831 = vmatprep.subr.bf16.mxu0 0
        %4832 = vmatpush1.bf16.msra.mxu0 0
        %4833 = vmatprep.subr.bf16.mxu0 0
        %4834 = vmatpush1.bf16.msra.mxu0 0
        %4835 = vmatprep.subr.bf16.mxu0 0
        %4836 = vmatpush1.bf16.msra.mxu0 0
        %4837 = vmatprep.subr.bf16.mxu0 0
        %4838 = vmatpush1.bf16.msra.mxu0 0
        %4839 = vmatprep.subr.bf16.mxu0 %v4702
        %4840 = vmatpush1.bf16.msra.mxu0 %v4699
        %4841 = vmatprep.subr.bf16.mxu0 %v4638
        %4842 = vmatpush1.bf16.msra.mxu0 %v4661
        %4843 = vmatprep.subr.bf16.mxu0 0
        %4844 = vmatpush2.bf16.msra.mxu0 0
        %4845 = vmatprep.subr.bf16.mxu0 0
        %4846 = vmatpush2.bf16.msra.mxu0 0
        %4847 = vmatprep.subr.bf16.mxu0 0
        %4848 = vmatpush2.bf16.msra.mxu0 0
        %4849 = vmatprep.subr.bf16.mxu0 0
        %4850 = vmatpush2.bf16.msra.mxu0 0
        %4851 = vmatprep.subr.bf16.mxu0 0
        %4852 = vmatpush2.bf16.msra.mxu0 0
        %4853 = vmatprep.subr.bf16.mxu0 0
        %4854 = vmatpush2.bf16.msra.mxu0 0
        %4855 = vmatprep.subr.bf16.mxu0 0
        %4856 = vmatpush2.bf16.msra.mxu0 0
        %4857 = vmatprep.subr.bf16.mxu0 0
        %4858 = vmatpush2.bf16.msra.mxu0 0
        %4859 = vmatprep.mubr.bf16.mxu0 0
        %4860 = vmatmul.mubr.bf16.gmra.mxu0 %v4678
        %v4861 = vpop.f32.mrf.mxu0
        %v4862 = vadd.f32 0.0, %v4861
        %v4863 = vpop.f32.mrf.mxu0
        %v4864 = vadd.f32 0.0, %v4863
        %v4865 = vpop.f32.mrf.mxu0
        %v4866 = vpop.f32.mrf.mxu0
        %4867 = vdwg.mxu0
        %v4868 = vadd.f32 %v4589, %v4739
        %v4869 = vadd.f32 %v4590, %v4741
        %v4870 = vadd.f32 %v4591, %v4780
        %v4871 = vadd.f32 %v4592, %v4782
        %v4872 = vadd.f32 %v4593, %v4821
        %v4873 = vadd.f32 %v4594, %v4823
        %v4874 = vadd.f32 %v4595, %v4862
        %v4875 = vadd.f32 %v4596, %v4864
        %v4876 = vld [vmem:[#allocation2 + $0x4] sm:$0xff]
        %v4877 = vld [vmem:[#allocation2 + $0xc] sm:$0xff]
        %v4878 = vld [vmem:[#allocation2 + $0x14] sm:$0xff]
        %v4879 = vld [vmem:[#allocation2 + $0x1c] sm:$0xff]
        %v4880 = vld [vmem:[#allocation2 + $0x24] sm:$0xf]
        %v4886 = vunpack.c.l.b16 %v4876
        %v4887 = vunpack.c.h.b16 %v4876
        %v4888 = vunpack.c.l.b16 %v4877
        %v4889 = vunpack.c.h.b16 %v4877
        %v4890 = vunpack.c.l.b16 %v4878
        %v4891 = vunpack.c.h.b16 %v4878
        %v4892 = vunpack.c.l.b16 %v4879
        %v4893 = vunpack.c.h.b16 %v4879
        %v4894 = vunpack.c.l.b16 %v4880
        %v4895 = vpack.c.b16 %v4886, %v4886
        %v4896 = vpack.c.b16 %v4887, %v4887
        %v4897 = vpack.c.b16 %v4888, %v4888
        %v4898 = vpack.c.b16 %v4889, %v4889
        %v4899 = vpack.c.b16 %v4890, %v4890
        %v4900 = vpack.c.b16 %v4891, %v4891
        %v4901 = vpack.c.b16 %v4892, %v4892
        %v4902 = vpack.c.b16 %v4893, %v4893
        %v4903 = vpack.c.b16 %v4894, %v4894
        %4904 = vrot.lane.b32.xlu0 %v4895, 127
        %v4905 = vpop.permute.xlu0 %4904
        %4906 = vrot.lane.b32.xlu0 %v4896, 127
        %v4907 = vpop.permute.xlu0 %4906
        %4908 = vrot.lane.b32.xlu0 %v4897, 127
        %v4909 = vpop.permute.xlu0 %4908
        %4910 = vrot.lane.b32.xlu0 %v4898, 127
        %v4911 = vpop.permute.xlu0 %4910
        %4912 = vrot.lane.b32.xlu0 %v4899, 127
        %v4913 = vpop.permute.xlu0 %4912
        %4914 = vrot.lane.b32.xlu0 %v4900, 127
        %v4915 = vpop.permute.xlu0 %4914
        %4916 = vrot.lane.b32.xlu0 %v4901, 127
        %v4917 = vpop.permute.xlu0 %4916
        %4918 = vrot.lane.b32.xlu0 %v4902, 127
        %v4919 = vpop.permute.xlu0 %4918
        %4920 = vrot.lane.b32.xlu0 %v4903, 127
        %v4921 = vpop.permute.xlu0 %4920
        %v4922 = vsel %vm336, %v4905, %v4907
        %v4923 = vsel %vm336, %v4907, %v4909
        %v4924 = vsel %vm336, %v4909, %v4911
        %v4925 = vsel %vm336, %v4911, %v4913
        %v4926 = vsel %vm336, %v4913, %v4915
        %v4927 = vsel %vm336, %v4915, %v4917
        %v4928 = vsel %vm336, %v4917, %v4919
        %v4929 = vsel %vm336, %v4919, %v4921
        %4930 = vrot.lane.b32.xlu0 %v4895, 126
        %v4931 = vpop.permute.xlu0 %4930
        %4932 = vrot.lane.b32.xlu0 %v4896, 126
        %v4933 = vpop.permute.xlu0 %4932
        %4934 = vrot.lane.b32.xlu0 %v4897, 126
        %v4935 = vpop.permute.xlu0 %4934
        %4936 = vrot.lane.b32.xlu0 %v4898, 126
        %v4937 = vpop.permute.xlu0 %4936
        %4938 = vrot.lane.b32.xlu0 %v4899, 126
        %v4939 = vpop.permute.xlu0 %4938
        %4940 = vrot.lane.b32.xlu0 %v4900, 126
        %v4941 = vpop.permute.xlu0 %4940
        %4942 = vrot.lane.b32.xlu0 %v4901, 126
        %v4943 = vpop.permute.xlu0 %4942
        %4944 = vrot.lane.b32.xlu0 %v4902, 126
        %v4945 = vpop.permute.xlu0 %4944
        %4946 = vrot.lane.b32.xlu0 %v4903, 126
        %v4947 = vpop.permute.xlu0 %4946
        %v4948 = vsel %vm360, %v4931, %v4933
        %v4949 = vsel %vm360, %v4933, %v4935
        %v4950 = vsel %vm360, %v4935, %v4937
        %v4951 = vsel %vm360, %v4937, %v4939
        %v4952 = vsel %vm360, %v4939, %v4941
        %v4953 = vsel %vm360, %v4941, %v4943
        %v4954 = vsel %vm360, %v4943, %v4945
        %v4955 = vsel %vm360, %v4945, %v4947
        %v4958 = vsel %vm368, %v4895, %v4922
        %v4961 = vsel %vm368, %v4896, %v4923
        %v4964 = vsel %vm368, %v4897, %v4924
        %v4967 = vsel %vm368, %v4898, %v4925
        %v4970 = vsel %vm368, %v4899, %v4926
        %v4973 = vsel %vm368, %v4900, %v4927
        %v4976 = vsel %vm368, %v4901, %v4928
        %v4979 = vsel %vm368, %v4902, %v4929
        %v4982 = vsel %vm368, %v4903, %v4921
        %s4983 = scalar_lea.vmem %s3, 12
        %v4984 = vld [vmem:[%s4983] sm:$0x3]
        %4994 = vrot.lane.b32.xlu0 %v4958, 39
        %v4995 = vpop.permute.xlu0 %4994
        %4996 = vrot.lane.b32.xlu0 %v4961, 39
        %v4997 = vpop.permute.xlu0 %4996
        %4998 = vrot.lane.b32.xlu0 %v4964, 39
        %v4999 = vpop.permute.xlu0 %4998
        %5000 = vrot.lane.b32.xlu0 %v4967, 39
        %v5001 = vpop.permute.xlu0 %5000
        %5002 = vrot.lane.b32.xlu0 %v4970, 39
        %v5003 = vpop.permute.xlu0 %5002
        %5004 = vrot.lane.b32.xlu0 %v4973, 39
        %v5005 = vpop.permute.xlu0 %5004
        %5006 = vrot.lane.b32.xlu0 %v4976, 39
        %v5007 = vpop.permute.xlu0 %5006
        %5008 = vrot.lane.b32.xlu0 %v4979, 39
        %v5009 = vpop.permute.xlu0 %5008
        %5010 = vrot.lane.b32.xlu0 %v4982, 39
        %v5011 = vpop.permute.xlu0 %5010
        %5012 = vrot.lane.b32.xlu0 %v4948, 39
        %v5013 = vpop.permute.xlu0 %5012
        %5014 = vrot.lane.b32.xlu0 %v4949, 39
        %v5015 = vpop.permute.xlu0 %5014
        %5016 = vrot.lane.b32.xlu0 %v4950, 39
        %v5017 = vpop.permute.xlu0 %5016
        %5018 = vrot.lane.b32.xlu0 %v4951, 39
        %v5019 = vpop.permute.xlu0 %5018
        %5020 = vrot.lane.b32.xlu0 %v4952, 39
        %v5021 = vpop.permute.xlu0 %5020
        %5022 = vrot.lane.b32.xlu0 %v4953, 39
        %v5023 = vpop.permute.xlu0 %5022
        %5024 = vrot.lane.b32.xlu0 %v4954, 39
        %v5025 = vpop.permute.xlu0 %5024
        %5026 = vrot.lane.b32.xlu0 %v4955, 39
        %v5027 = vpop.permute.xlu0 %5026
        %5028 = vrot.lane.b32.xlu0 %v4947, 39
        %v5029 = vpop.permute.xlu0 %5028
        %v5030 = vsel %vm2237, %v4995, %v4997
        %v5031 = vsel %vm2237, %v4997, %v4999
        %v5032 = vsel %vm2237, %v4999, %v5001
        %v5033 = vsel %vm2237, %v5001, %v5003
        %v5034 = vsel %vm2237, %v5003, %v5005
        %v5035 = vsel %vm2237, %v5005, %v5007
        %v5036 = vsel %vm2237, %v5007, %v5009
        %v5037 = vsel %vm2237, %v5009, %v5011
        %v5038 = vsel %vm2237, %v5013, %v5015
        %v5039 = vsel %vm2237, %v5015, %v5017
        %v5040 = vsel %vm2237, %v5017, %v5019
        %v5041 = vsel %vm2237, %v5019, %v5021
        %v5042 = vsel %vm2237, %v5021, %v5023
        %v5043 = vsel %vm2237, %v5023, %v5025
        %v5044 = vsel %vm2237, %v5025, %v5027
        %v5045 = vsel %vm2237, %v5027, %v5029
        %v5055 = vsel %vm481, %v4984, 0
        %v5058 = vsel %vm368, %v5038, 0
        %v5061 = vsel %vm368, %v5039, 0
        %v5064 = vsel %vm368, %v5040, 0
        %v5067 = vsel %vm368, %v5041, 0
        %v5070 = vsel %vm368, %v5042, 0
        %v5073 = vsel %vm368, %v5043, 0
        %v5076 = vsel %vm368, %v5044, 0
        %v5079 = vsel %vm368, %v5045, 0
        %5081 = vmatprep.subr.bf16.mxu0 0
        %5082 = vmatpush1.bf16.msra.mxu0 0
        %5083 = vmatprep.subr.bf16.mxu0 0
        %5084 = vmatpush1.bf16.msra.mxu0 0
        %5085 = vmatprep.subr.bf16.mxu0 0
        %5086 = vmatpush1.bf16.msra.mxu0 0
        %5087 = vmatprep.subr.bf16.mxu0 0
        %5088 = vmatpush1.bf16.msra.mxu0 0
        %5089 = vmatprep.subr.bf16.mxu0 0
        %5090 = vmatpush1.bf16.msra.mxu0 0
        %5091 = vmatprep.subr.bf16.mxu0 0
        %5092 = vmatpush1.bf16.msra.mxu0 0
        %5093 = vmatprep.subr.bf16.mxu0 %v5061
        %5094 = vmatpush1.bf16.msra.mxu0 %v5058
        %5095 = vmatprep.subr.bf16.mxu0 %v5031
        %5096 = vmatpush1.bf16.msra.mxu0 %v5030
        %5097 = vmatprep.subr.bf16.mxu0 0
        %5098 = vmatpush2.bf16.msra.mxu0 0
        %5099 = vmatprep.subr.bf16.mxu0 0
        %5100 = vmatpush2.bf16.msra.mxu0 0
        %5101 = vmatprep.subr.bf16.mxu0 0
        %5102 = vmatpush2.bf16.msra.mxu0 0
        %5103 = vmatprep.subr.bf16.mxu0 0
        %5104 = vmatpush2.bf16.msra.mxu0 0
        %5105 = vmatprep.subr.bf16.mxu0 0
        %5106 = vmatpush2.bf16.msra.mxu0 0
        %5107 = vmatprep.subr.bf16.mxu0 0
        %5108 = vmatpush2.bf16.msra.mxu0 0
        %5109 = vmatprep.subr.bf16.mxu0 0
        %5110 = vmatpush2.bf16.msra.mxu0 0
        %5111 = vmatprep.subr.bf16.mxu0 0
        %5112 = vmatpush2.bf16.msra.mxu0 0
        %5113 = vmatprep.mubr.bf16.mxu0 0
        %5114 = vmatmul.mubr.bf16.gmra.mxu0 %v5055
        %v5115 = vpop.f32.mrf.mxu0
        %v5116 = vadd.f32 0.0, %v5115
        %v5117 = vpop.f32.mrf.mxu0
        %v5118 = vadd.f32 0.0, %v5117
        %v5119 = vpop.f32.mrf.mxu0
        %v5120 = vpop.f32.mrf.mxu0
        %5121 = vdwg.mxu0
        %5122 = vmatprep.subr.bf16.mxu0 0
        %5123 = vmatpush1.bf16.msra.mxu0 0
        %5124 = vmatprep.subr.bf16.mxu0 0
        %5125 = vmatpush1.bf16.msra.mxu0 0
        %5126 = vmatprep.subr.bf16.mxu0 0
        %5127 = vmatpush1.bf16.msra.mxu0 0
        %5128 = vmatprep.subr.bf16.mxu0 0
        %5129 = vmatpush1.bf16.msra.mxu0 0
        %5130 = vmatprep.subr.bf16.mxu0 0
        %5131 = vmatpush1.bf16.msra.mxu0 0
        %5132 = vmatprep.subr.bf16.mxu0 0
        %5133 = vmatpush1.bf16.msra.mxu0 0
        %5134 = vmatprep.subr.bf16.mxu0 %v5067
        %5135 = vmatpush1.bf16.msra.mxu0 %v5064
        %5136 = vmatprep.subr.bf16.mxu0 %v5033
        %5137 = vmatpush1.bf16.msra.mxu0 %v5032
        %5138 = vmatprep.subr.bf16.mxu0 0
        %5139 = vmatpush2.bf16.msra.mxu0 0
        %5140 = vmatprep.subr.bf16.mxu0 0
        %5141 = vmatpush2.bf16.msra.mxu0 0
        %5142 = vmatprep.subr.bf16.mxu0 0
        %5143 = vmatpush2.bf16.msra.mxu0 0
        %5144 = vmatprep.subr.bf16.mxu0 0
        %5145 = vmatpush2.bf16.msra.mxu0 0
        %5146 = vmatprep.subr.bf16.mxu0 0
        %5147 = vmatpush2.bf16.msra.mxu0 0
        %5148 = vmatprep.subr.bf16.mxu0 0
        %5149 = vmatpush2.bf16.msra.mxu0 0
        %5150 = vmatprep.subr.bf16.mxu0 0
        %5151 = vmatpush2.bf16.msra.mxu0 0
        %5152 = vmatprep.subr.bf16.mxu0 0
        %5153 = vmatpush2.bf16.msra.mxu0 0
        %5154 = vmatprep.mubr.bf16.mxu0 0
        %5155 = vmatmul.mubr.bf16.gmra.mxu0 %v5055
        %v5156 = vpop.f32.mrf.mxu0
        %v5157 = vadd.f32 0.0, %v5156
        %v5158 = vpop.f32.mrf.mxu0
        %v5159 = vadd.f32 0.0, %v5158
        %v5160 = vpop.f32.mrf.mxu0
        %v5161 = vpop.f32.mrf.mxu0
        %5162 = vdwg.mxu0
        %5163 = vmatprep.subr.bf16.mxu0 0
        %5164 = vmatpush1.bf16.msra.mxu0 0
        %5165 = vmatprep.subr.bf16.mxu0 0
        %5166 = vmatpush1.bf16.msra.mxu0 0
        %5167 = vmatprep.subr.bf16.mxu0 0
        %5168 = vmatpush1.bf16.msra.mxu0 0
        %5169 = vmatprep.subr.bf16.mxu0 0
        %5170 = vmatpush1.bf16.msra.mxu0 0
        %5171 = vmatprep.subr.bf16.mxu0 0
        %5172 = vmatpush1.bf16.msra.mxu0 0
        %5173 = vmatprep.subr.bf16.mxu0 0
        %5174 = vmatpush1.bf16.msra.mxu0 0
        %5175 = vmatprep.subr.bf16.mxu0 %v5073
        %5176 = vmatpush1.bf16.msra.mxu0 %v5070
        %5177 = vmatprep.subr.bf16.mxu0 %v5035
        %5178 = vmatpush1.bf16.msra.mxu0 %v5034
        %5179 = vmatprep.subr.bf16.mxu0 0
        %5180 = vmatpush2.bf16.msra.mxu0 0
        %5181 = vmatprep.subr.bf16.mxu0 0
        %5182 = vmatpush2.bf16.msra.mxu0 0
        %5183 = vmatprep.subr.bf16.mxu0 0
        %5184 = vmatpush2.bf16.msra.mxu0 0
        %5185 = vmatprep.subr.bf16.mxu0 0
        %5186 = vmatpush2.bf16.msra.mxu0 0
        %5187 = vmatprep.subr.bf16.mxu0 0
        %5188 = vmatpush2.bf16.msra.mxu0 0
        %5189 = vmatprep.subr.bf16.mxu0 0
        %5190 = vmatpush2.bf16.msra.mxu0 0
        %5191 = vmatprep.subr.bf16.mxu0 0
        %5192 = vmatpush2.bf16.msra.mxu0 0
        %5193 = vmatprep.subr.bf16.mxu0 0
        %5194 = vmatpush2.bf16.msra.mxu0 0
        %5195 = vmatprep.mubr.bf16.mxu0 0
        %5196 = vmatmul.mubr.bf16.gmra.mxu0 %v5055
        %v5197 = vpop.f32.mrf.mxu0
        %v5198 = vadd.f32 0.0, %v5197
        %v5199 = vpop.f32.mrf.mxu0
        %v5200 = vadd.f32 0.0, %v5199
        %v5201 = vpop.f32.mrf.mxu0
        %v5202 = vpop.f32.mrf.mxu0
        %5203 = vdwg.mxu0
        %5204 = vmatprep.subr.bf16.mxu0 0
        %5205 = vmatpush1.bf16.msra.mxu0 0
        %5206 = vmatprep.subr.bf16.mxu0 0
        %5207 = vmatpush1.bf16.msra.mxu0 0
        %5208 = vmatprep.subr.bf16.mxu0 0
        %5209 = vmatpush1.bf16.msra.mxu0 0
        %5210 = vmatprep.subr.bf16.mxu0 0
        %5211 = vmatpush1.bf16.msra.mxu0 0
        %5212 = vmatprep.subr.bf16.mxu0 0
        %5213 = vmatpush1.bf16.msra.mxu0 0
        %5214 = vmatprep.subr.bf16.mxu0 0
        %5215 = vmatpush1.bf16.msra.mxu0 0
        %5216 = vmatprep.subr.bf16.mxu0 %v5079
        %5217 = vmatpush1.bf16.msra.mxu0 %v5076
        %5218 = vmatprep.subr.bf16.mxu0 %v5037
        %5219 = vmatpush1.bf16.msra.mxu0 %v5036
        %5220 = vmatprep.subr.bf16.mxu0 0
        %5221 = vmatpush2.bf16.msra.mxu0 0
        %5222 = vmatprep.subr.bf16.mxu0 0
        %5223 = vmatpush2.bf16.msra.mxu0 0
        %5224 = vmatprep.subr.bf16.mxu0 0
        %5225 = vmatpush2.bf16.msra.mxu0 0
        %5226 = vmatprep.subr.bf16.mxu0 0
        %5227 = vmatpush2.bf16.msra.mxu0 0
        %5228 = vmatprep.subr.bf16.mxu0 0
        %5229 = vmatpush2.bf16.msra.mxu0 0
        %5230 = vmatprep.subr.bf16.mxu0 0
        %5231 = vmatpush2.bf16.msra.mxu0 0
        %5232 = vmatprep.subr.bf16.mxu0 0
        %5233 = vmatpush2.bf16.msra.mxu0 0
        %5234 = vmatprep.subr.bf16.mxu0 0
        %5235 = vmatpush2.bf16.msra.mxu0 0
        %5236 = vmatprep.mubr.bf16.mxu0 0
        %5237 = vmatmul.mubr.bf16.gmra.mxu0 %v5055
        %v5238 = vpop.f32.mrf.mxu0
        %v5239 = vadd.f32 0.0, %v5238
        %v5240 = vpop.f32.mrf.mxu0
        %v5241 = vadd.f32 0.0, %v5240
        %v5242 = vpop.f32.mrf.mxu0
        %v5243 = vpop.f32.mrf.mxu0
        %5244 = vdwg.mxu0
        %v5245 = vadd.f32 %v4868, %v5116
        %v5246 = vadd.f32 %v4869, %v5118
        %v5247 = vadd.f32 %v4870, %v5157
        %v5248 = vadd.f32 %v4871, %v5159
        %v5249 = vadd.f32 %v4872, %v5198
        %v5250 = vadd.f32 %v4873, %v5200
        %v5251 = vadd.f32 %v4874, %v5239
        %v5252 = vadd.f32 %v4875, %v5241
        %s5253 = scalar_lea.vmem %s3, 14
        %v5254 = vld [vmem:[%s5253] sm:$0x3]
        %5255 = vrot.lane.b32.xlu0 %v4958, 29
        %v5256 = vpop.permute.xlu0 %5255
        %5257 = vrot.lane.b32.xlu0 %v4961, 29
        %v5258 = vpop.permute.xlu0 %5257
        %5259 = vrot.lane.b32.xlu0 %v4964, 29
        %v5260 = vpop.permute.xlu0 %5259
        %5261 = vrot.lane.b32.xlu0 %v4967, 29
        %v5262 = vpop.permute.xlu0 %5261
        %5263 = vrot.lane.b32.xlu0 %v4970, 29
        %v5264 = vpop.permute.xlu0 %5263
        %5265 = vrot.lane.b32.xlu0 %v4973, 29
        %v5266 = vpop.permute.xlu0 %5265
        %5267 = vrot.lane.b32.xlu0 %v4976, 29
        %v5268 = vpop.permute.xlu0 %5267
        %5269 = vrot.lane.b32.xlu0 %v4979, 29
        %v5270 = vpop.permute.xlu0 %5269
        %5271 = vrot.lane.b32.xlu0 %v4982, 29
        %v5272 = vpop.permute.xlu0 %5271
        %5273 = vrot.lane.b32.xlu0 %v4948, 29
        %v5274 = vpop.permute.xlu0 %5273
        %5275 = vrot.lane.b32.xlu0 %v4949, 29
        %v5276 = vpop.permute.xlu0 %5275
        %5277 = vrot.lane.b32.xlu0 %v4950, 29
        %v5278 = vpop.permute.xlu0 %5277
        %5279 = vrot.lane.b32.xlu0 %v4951, 29
        %v5280 = vpop.permute.xlu0 %5279
        %5281 = vrot.lane.b32.xlu0 %v4952, 29
        %v5282 = vpop.permute.xlu0 %5281
        %5283 = vrot.lane.b32.xlu0 %v4953, 29
        %v5284 = vpop.permute.xlu0 %5283
        %5285 = vrot.lane.b32.xlu0 %v4954, 29
        %v5286 = vpop.permute.xlu0 %5285
        %5287 = vrot.lane.b32.xlu0 %v4955, 29
        %v5288 = vpop.permute.xlu0 %5287
        %5289 = vrot.lane.b32.xlu0 %v4947, 29
        %v5290 = vpop.permute.xlu0 %5289
        %v5291 = vsel %vm2499, %v5256, %v5258
        %v5292 = vsel %vm2499, %v5258, %v5260
        %v5293 = vsel %vm2499, %v5260, %v5262
        %v5294 = vsel %vm2499, %v5262, %v5264
        %v5295 = vsel %vm2499, %v5264, %v5266
        %v5296 = vsel %vm2499, %v5266, %v5268
        %v5297 = vsel %vm2499, %v5268, %v5270
        %v5298 = vsel %vm2499, %v5270, %v5272
        %v5299 = vsel %vm2499, %v5274, %v5276
        %v5300 = vsel %vm2499, %v5276, %v5278
        %v5301 = vsel %vm2499, %v5278, %v5280
        %v5302 = vsel %vm2499, %v5280, %v5282
        %v5303 = vsel %vm2499, %v5282, %v5284
        %v5304 = vsel %vm2499, %v5284, %v5286
        %v5305 = vsel %vm2499, %v5286, %v5288
        %v5306 = vsel %vm2499, %v5288, %v5290
        %v5316 = vsel %vm481, %v5254, 0
        %v5319 = vsel %vm368, %v5299, 0
        %v5322 = vsel %vm368, %v5300, 0
        %v5325 = vsel %vm368, %v5301, 0
        %v5328 = vsel %vm368, %v5302, 0
        %v5331 = vsel %vm368, %v5303, 0
        %v5334 = vsel %vm368, %v5304, 0
        %v5337 = vsel %vm368, %v5305, 0
        %v5340 = vsel %vm368, %v5306, 0
        %5342 = vmatprep.subr.bf16.mxu0 0
        %5343 = vmatpush1.bf16.msra.mxu0 0
        %5344 = vmatprep.subr.bf16.mxu0 0
        %5345 = vmatpush1.bf16.msra.mxu0 0
        %5346 = vmatprep.subr.bf16.mxu0 0
        %5347 = vmatpush1.bf16.msra.mxu0 0
        %5348 = vmatprep.subr.bf16.mxu0 0
        %5349 = vmatpush1.bf16.msra.mxu0 0
        %5350 = vmatprep.subr.bf16.mxu0 0
        %5351 = vmatpush1.bf16.msra.mxu0 0
        %5352 = vmatprep.subr.bf16.mxu0 0
        %5353 = vmatpush1.bf16.msra.mxu0 0
        %5354 = vmatprep.subr.bf16.mxu0 %v5322
        %5355 = vmatpush1.bf16.msra.mxu0 %v5319
        %5356 = vmatprep.subr.bf16.mxu0 %v5292
        %5357 = vmatpush1.bf16.msra.mxu0 %v5291
        %5358 = vmatprep.subr.bf16.mxu0 0
        %5359 = vmatpush2.bf16.msra.mxu0 0
        %5360 = vmatprep.subr.bf16.mxu0 0
        %5361 = vmatpush2.bf16.msra.mxu0 0
        %5362 = vmatprep.subr.bf16.mxu0 0
        %5363 = vmatpush2.bf16.msra.mxu0 0
        %5364 = vmatprep.subr.bf16.mxu0 0
        %5365 = vmatpush2.bf16.msra.mxu0 0
        %5366 = vmatprep.subr.bf16.mxu0 0
        %5367 = vmatpush2.bf16.msra.mxu0 0
        %5368 = vmatprep.subr.bf16.mxu0 0
        %5369 = vmatpush2.bf16.msra.mxu0 0
        %5370 = vmatprep.subr.bf16.mxu0 0
        %5371 = vmatpush2.bf16.msra.mxu0 0
        %5372 = vmatprep.subr.bf16.mxu0 0
        %5373 = vmatpush2.bf16.msra.mxu0 0
        %5374 = vmatprep.mubr.bf16.mxu0 0
        %5375 = vmatmul.mubr.bf16.gmra.mxu0 %v5316
        %v5376 = vpop.f32.mrf.mxu0
        %v5377 = vadd.f32 0.0, %v5376
        %v5378 = vpop.f32.mrf.mxu0
        %v5379 = vadd.f32 0.0, %v5378
        %v5380 = vpop.f32.mrf.mxu0
        %v5381 = vpop.f32.mrf.mxu0
        %5382 = vdwg.mxu0
        %5383 = vmatprep.subr.bf16.mxu0 0
        %5384 = vmatpush1.bf16.msra.mxu0 0
        %5385 = vmatprep.subr.bf16.mxu0 0
        %5386 = vmatpush1.bf16.msra.mxu0 0
        %5387 = vmatprep.subr.bf16.mxu0 0
        %5388 = vmatpush1.bf16.msra.mxu0 0
        %5389 = vmatprep.subr.bf16.mxu0 0
        %5390 = vmatpush1.bf16.msra.mxu0 0
        %5391 = vmatprep.subr.bf16.mxu0 0
        %5392 = vmatpush1.bf16.msra.mxu0 0
        %5393 = vmatprep.subr.bf16.mxu0 0
        %5394 = vmatpush1.bf16.msra.mxu0 0
        %5395 = vmatprep.subr.bf16.mxu0 %v5328
        %5396 = vmatpush1.bf16.msra.mxu0 %v5325
        %5397 = vmatprep.subr.bf16.mxu0 %v5294
        %5398 = vmatpush1.bf16.msra.mxu0 %v5293
        %5399 = vmatprep.subr.bf16.mxu0 0
        %5400 = vmatpush2.bf16.msra.mxu0 0
        %5401 = vmatprep.subr.bf16.mxu0 0
        %5402 = vmatpush2.bf16.msra.mxu0 0
        %5403 = vmatprep.subr.bf16.mxu0 0
        %5404 = vmatpush2.bf16.msra.mxu0 0
        %5405 = vmatprep.subr.bf16.mxu0 0
        %5406 = vmatpush2.bf16.msra.mxu0 0
        %5407 = vmatprep.subr.bf16.mxu0 0
        %5408 = vmatpush2.bf16.msra.mxu0 0
        %5409 = vmatprep.subr.bf16.mxu0 0
        %5410 = vmatpush2.bf16.msra.mxu0 0
        %5411 = vmatprep.subr.bf16.mxu0 0
        %5412 = vmatpush2.bf16.msra.mxu0 0
        %5413 = vmatprep.subr.bf16.mxu0 0
        %5414 = vmatpush2.bf16.msra.mxu0 0
        %5415 = vmatprep.mubr.bf16.mxu0 0
        %5416 = vmatmul.mubr.bf16.gmra.mxu0 %v5316
        %v5417 = vpop.f32.mrf.mxu0
        %v5418 = vadd.f32 0.0, %v5417
        %v5419 = vpop.f32.mrf.mxu0
        %v5420 = vadd.f32 0.0, %v5419
        %v5421 = vpop.f32.mrf.mxu0
        %v5422 = vpop.f32.mrf.mxu0
        %5423 = vdwg.mxu0
        %5424 = vmatprep.subr.bf16.mxu0 0
        %5425 = vmatpush1.bf16.msra.mxu0 0
        %5426 = vmatprep.subr.bf16.mxu0 0
        %5427 = vmatpush1.bf16.msra.mxu0 0
        %5428 = vmatprep.subr.bf16.mxu0 0
        %5429 = vmatpush1.bf16.msra.mxu0 0
        %5430 = vmatprep.subr.bf16.mxu0 0
        %5431 = vmatpush1.bf16.msra.mxu0 0
        %5432 = vmatprep.subr.bf16.mxu0 0
        %5433 = vmatpush1.bf16.msra.mxu0 0
        %5434 = vmatprep.subr.bf16.mxu0 0
        %5435 = vmatpush1.bf16.msra.mxu0 0
        %5436 = vmatprep.subr.bf16.mxu0 %v5334
        %5437 = vmatpush1.bf16.msra.mxu0 %v5331
        %5438 = vmatprep.subr.bf16.mxu0 %v5296
        %5439 = vmatpush1.bf16.msra.mxu0 %v5295
        %5440 = vmatprep.subr.bf16.mxu0 0
        %5441 = vmatpush2.bf16.msra.mxu0 0
        %5442 = vmatprep.subr.bf16.mxu0 0
        %5443 = vmatpush2.bf16.msra.mxu0 0
        %5444 = vmatprep.subr.bf16.mxu0 0
        %5445 = vmatpush2.bf16.msra.mxu0 0
        %5446 = vmatprep.subr.bf16.mxu0 0
        %5447 = vmatpush2.bf16.msra.mxu0 0
        %5448 = vmatprep.subr.bf16.mxu0 0
        %5449 = vmatpush2.bf16.msra.mxu0 0
        %5450 = vmatprep.subr.bf16.mxu0 0
        %5451 = vmatpush2.bf16.msra.mxu0 0
        %5452 = vmatprep.subr.bf16.mxu0 0
        %5453 = vmatpush2.bf16.msra.mxu0 0
        %5454 = vmatprep.subr.bf16.mxu0 0
        %5455 = vmatpush2.bf16.msra.mxu0 0
        %5456 = vmatprep.mubr.bf16.mxu0 0
        %5457 = vmatmul.mubr.bf16.gmra.mxu0 %v5316
        %v5458 = vpop.f32.mrf.mxu0
        %v5459 = vadd.f32 0.0, %v5458
        %v5460 = vpop.f32.mrf.mxu0
        %v5461 = vadd.f32 0.0, %v5460
        %v5462 = vpop.f32.mrf.mxu0
        %v5463 = vpop.f32.mrf.mxu0
        %5464 = vdwg.mxu0
        %5465 = vmatprep.subr.bf16.mxu0 0
        %5466 = vmatpush1.bf16.msra.mxu0 0
        %5467 = vmatprep.subr.bf16.mxu0 0
        %5468 = vmatpush1.bf16.msra.mxu0 0
        %5469 = vmatprep.subr.bf16.mxu0 0
        %5470 = vmatpush1.bf16.msra.mxu0 0
        %5471 = vmatprep.subr.bf16.mxu0 0
        %5472 = vmatpush1.bf16.msra.mxu0 0
        %5473 = vmatprep.subr.bf16.mxu0 0
        %5474 = vmatpush1.bf16.msra.mxu0 0
        %5475 = vmatprep.subr.bf16.mxu0 0
        %5476 = vmatpush1.bf16.msra.mxu0 0
        %5477 = vmatprep.subr.bf16.mxu0 %v5340
        %5478 = vmatpush1.bf16.msra.mxu0 %v5337
        %5479 = vmatprep.subr.bf16.mxu0 %v5298
        %5480 = vmatpush1.bf16.msra.mxu0 %v5297
        %5481 = vmatprep.subr.bf16.mxu0 0
        %5482 = vmatpush2.bf16.msra.mxu0 0
        %5483 = vmatprep.subr.bf16.mxu0 0
        %5484 = vmatpush2.bf16.msra.mxu0 0
        %5485 = vmatprep.subr.bf16.mxu0 0
        %5486 = vmatpush2.bf16.msra.mxu0 0
        %5487 = vmatprep.subr.bf16.mxu0 0
        %5488 = vmatpush2.bf16.msra.mxu0 0
        %5489 = vmatprep.subr.bf16.mxu0 0
        %5490 = vmatpush2.bf16.msra.mxu0 0
        %5491 = vmatprep.subr.bf16.mxu0 0
        %5492 = vmatpush2.bf16.msra.mxu0 0
        %5493 = vmatprep.subr.bf16.mxu0 0
        %5494 = vmatpush2.bf16.msra.mxu0 0
        %5495 = vmatprep.subr.bf16.mxu0 0
        %5496 = vmatpush2.bf16.msra.mxu0 0
        %5497 = vmatprep.mubr.bf16.mxu0 0
        %5498 = vmatmul.mubr.bf16.gmra.mxu0 %v5316
        %v5499 = vpop.f32.mrf.mxu0
        %v5500 = vadd.f32 0.0, %v5499
        %v5501 = vpop.f32.mrf.mxu0
        %v5502 = vadd.f32 0.0, %v5501
        %v5503 = vpop.f32.mrf.mxu0
        %v5504 = vpop.f32.mrf.mxu0
        %5505 = vdwg.mxu0
        %v5506 = vadd.f32 %v5245, %v5377
        %v5507 = vadd.f32 %v5246, %v5379
        %v5508 = vadd.f32 %v5247, %v5418
        %v5509 = vadd.f32 %v5248, %v5420
        %v5510 = vadd.f32 %v5249, %v5459
        %v5511 = vadd.f32 %v5250, %v5461
        %v5512 = vadd.f32 %v5251, %v5500
        %v5513 = vadd.f32 %v5252, %v5502
        %s5514 = scalar_lea.vmem %s3, 16
        %v5515 = vld [vmem:[%s5514] sm:$0x3]
        %5516 = vrot.lane.b32.xlu0 %v4958, 19
        %v5517 = vpop.permute.xlu0 %5516
        %5518 = vrot.lane.b32.xlu0 %v4961, 19
        %v5519 = vpop.permute.xlu0 %5518
        %5520 = vrot.lane.b32.xlu0 %v4964, 19
        %v5521 = vpop.permute.xlu0 %5520
        %5522 = vrot.lane.b32.xlu0 %v4967, 19
        %v5523 = vpop.permute.xlu0 %5522
        %5524 = vrot.lane.b32.xlu0 %v4970, 19
        %v5525 = vpop.permute.xlu0 %5524
        %5526 = vrot.lane.b32.xlu0 %v4973, 19
        %v5527 = vpop.permute.xlu0 %5526
        %5528 = vrot.lane.b32.xlu0 %v4976, 19
        %v5529 = vpop.permute.xlu0 %5528
        %5530 = vrot.lane.b32.xlu0 %v4979, 19
        %v5531 = vpop.permute.xlu0 %5530
        %5532 = vrot.lane.b32.xlu0 %v4982, 19
        %v5533 = vpop.permute.xlu0 %5532
        %5534 = vrot.lane.b32.xlu0 %v4948, 19
        %v5535 = vpop.permute.xlu0 %5534
        %5536 = vrot.lane.b32.xlu0 %v4949, 19
        %v5537 = vpop.permute.xlu0 %5536
        %5538 = vrot.lane.b32.xlu0 %v4950, 19
        %v5539 = vpop.permute.xlu0 %5538
        %5540 = vrot.lane.b32.xlu0 %v4951, 19
        %v5541 = vpop.permute.xlu0 %5540
        %5542 = vrot.lane.b32.xlu0 %v4952, 19
        %v5543 = vpop.permute.xlu0 %5542
        %5544 = vrot.lane.b32.xlu0 %v4953, 19
        %v5545 = vpop.permute.xlu0 %5544
        %5546 = vrot.lane.b32.xlu0 %v4954, 19
        %v5547 = vpop.permute.xlu0 %5546
        %5548 = vrot.lane.b32.xlu0 %v4955, 19
        %v5549 = vpop.permute.xlu0 %5548
        %5550 = vrot.lane.b32.xlu0 %v4947, 19
        %v5551 = vpop.permute.xlu0 %5550
        %v5552 = vsel %vm2761, %v5517, %v5519
        %v5553 = vsel %vm2761, %v5519, %v5521
        %v5554 = vsel %vm2761, %v5521, %v5523
        %v5555 = vsel %vm2761, %v5523, %v5525
        %v5556 = vsel %vm2761, %v5525, %v5527
        %v5557 = vsel %vm2761, %v5527, %v5529
        %v5558 = vsel %vm2761, %v5529, %v5531
        %v5559 = vsel %vm2761, %v5531, %v5533
        %v5560 = vsel %vm2761, %v5535, %v5537
        %v5561 = vsel %vm2761, %v5537, %v5539
        %v5562 = vsel %vm2761, %v5539, %v5541
        %v5563 = vsel %vm2761, %v5541, %v5543
        %v5564 = vsel %vm2761, %v5543, %v5545
        %v5565 = vsel %vm2761, %v5545, %v5547
        %v5566 = vsel %vm2761, %v5547, %v5549
        %v5567 = vsel %vm2761, %v5549, %v5551
        %v5577 = vsel %vm481, %v5515, 0
        %v5580 = vsel %vm368, %v5560, 0
        %v5583 = vsel %vm368, %v5561, 0
        %v5586 = vsel %vm368, %v5562, 0
        %v5589 = vsel %vm368, %v5563, 0
        %v5592 = vsel %vm368, %v5564, 0
        %v5595 = vsel %vm368, %v5565, 0
        %v5598 = vsel %vm368, %v5566, 0
        %v5601 = vsel %vm368, %v5567, 0
        %5603 = vmatprep.subr.bf16.mxu0 0
        %5604 = vmatpush1.bf16.msra.mxu0 0
        %5605 = vmatprep.subr.bf16.mxu0 0
        %5606 = vmatpush1.bf16.msra.mxu0 0
        %5607 = vmatprep.subr.bf16.mxu0 0
        %5608 = vmatpush1.bf16.msra.mxu0 0
        %5609 = vmatprep.subr.bf16.mxu0 0
        %5610 = vmatpush1.bf16.msra.mxu0 0
        %5611 = vmatprep.subr.bf16.mxu0 0
        %5612 = vmatpush1.bf16.msra.mxu0 0
        %5613 = vmatprep.subr.bf16.mxu0 0
        %5614 = vmatpush1.bf16.msra.mxu0 0
        %5615 = vmatprep.subr.bf16.mxu0 %v5583
        %5616 = vmatpush1.bf16.msra.mxu0 %v5580
        %5617 = vmatprep.subr.bf16.mxu0 %v5553
        %5618 = vmatpush1.bf16.msra.mxu0 %v5552
        %5619 = vmatprep.subr.bf16.mxu0 0
        %5620 = vmatpush2.bf16.msra.mxu0 0
        %5621 = vmatprep.subr.bf16.mxu0 0
        %5622 = vmatpush2.bf16.msra.mxu0 0
        %5623 = vmatprep.subr.bf16.mxu0 0
        %5624 = vmatpush2.bf16.msra.mxu0 0
        %5625 = vmatprep.subr.bf16.mxu0 0
        %5626 = vmatpush2.bf16.msra.mxu0 0
        %5627 = vmatprep.subr.bf16.mxu0 0
        %5628 = vmatpush2.bf16.msra.mxu0 0
        %5629 = vmatprep.subr.bf16.mxu0 0
        %5630 = vmatpush2.bf16.msra.mxu0 0
        %5631 = vmatprep.subr.bf16.mxu0 0
        %5632 = vmatpush2.bf16.msra.mxu0 0
        %5633 = vmatprep.subr.bf16.mxu0 0
        %5634 = vmatpush2.bf16.msra.mxu0 0
        %5635 = vmatprep.mubr.bf16.mxu0 0
        %5636 = vmatmul.mubr.bf16.gmra.mxu0 %v5577
        %v5637 = vpop.f32.mrf.mxu0
        %v5638 = vadd.f32 0.0, %v5637
        %v5639 = vpop.f32.mrf.mxu0
        %v5640 = vadd.f32 0.0, %v5639
        %v5641 = vpop.f32.mrf.mxu0
        %v5642 = vpop.f32.mrf.mxu0
        %5643 = vdwg.mxu0
        %5644 = vmatprep.subr.bf16.mxu0 0
        %5645 = vmatpush1.bf16.msra.mxu0 0
        %5646 = vmatprep.subr.bf16.mxu0 0
        %5647 = vmatpush1.bf16.msra.mxu0 0
        %5648 = vmatprep.subr.bf16.mxu0 0
        %5649 = vmatpush1.bf16.msra.mxu0 0
        %5650 = vmatprep.subr.bf16.mxu0 0
        %5651 = vmatpush1.bf16.msra.mxu0 0
        %5652 = vmatprep.subr.bf16.mxu0 0
        %5653 = vmatpush1.bf16.msra.mxu0 0
        %5654 = vmatprep.subr.bf16.mxu0 0
        %5655 = vmatpush1.bf16.msra.mxu0 0
        %5656 = vmatprep.subr.bf16.mxu0 %v5589
        %5657 = vmatpush1.bf16.msra.mxu0 %v5586
        %5658 = vmatprep.subr.bf16.mxu0 %v5555
        %5659 = vmatpush1.bf16.msra.mxu0 %v5554
        %5660 = vmatprep.subr.bf16.mxu0 0
        %5661 = vmatpush2.bf16.msra.mxu0 0
        %5662 = vmatprep.subr.bf16.mxu0 0
        %5663 = vmatpush2.bf16.msra.mxu0 0
        %5664 = vmatprep.subr.bf16.mxu0 0
        %5665 = vmatpush2.bf16.msra.mxu0 0
        %5666 = vmatprep.subr.bf16.mxu0 0
        %5667 = vmatpush2.bf16.msra.mxu0 0
        %5668 = vmatprep.subr.bf16.mxu0 0
        %5669 = vmatpush2.bf16.msra.mxu0 0
        %5670 = vmatprep.subr.bf16.mxu0 0
        %5671 = vmatpush2.bf16.msra.mxu0 0
        %5672 = vmatprep.subr.bf16.mxu0 0
        %5673 = vmatpush2.bf16.msra.mxu0 0
        %5674 = vmatprep.subr.bf16.mxu0 0
        %5675 = vmatpush2.bf16.msra.mxu0 0
        %5676 = vmatprep.mubr.bf16.mxu0 0
        %5677 = vmatmul.mubr.bf16.gmra.mxu0 %v5577
        %v5678 = vpop.f32.mrf.mxu0
        %v5679 = vadd.f32 0.0, %v5678
        %v5680 = vpop.f32.mrf.mxu0
        %v5681 = vadd.f32 0.0, %v5680
        %v5682 = vpop.f32.mrf.mxu0
        %v5683 = vpop.f32.mrf.mxu0
        %5684 = vdwg.mxu0
        %5685 = vmatprep.subr.bf16.mxu0 0
        %5686 = vmatpush1.bf16.msra.mxu0 0
        %5687 = vmatprep.subr.bf16.mxu0 0
        %5688 = vmatpush1.bf16.msra.mxu0 0
        %5689 = vmatprep.subr.bf16.mxu0 0
        %5690 = vmatpush1.bf16.msra.mxu0 0
        %5691 = vmatprep.subr.bf16.mxu0 0
        %5692 = vmatpush1.bf16.msra.mxu0 0
        %5693 = vmatprep.subr.bf16.mxu0 0
        %5694 = vmatpush1.bf16.msra.mxu0 0
        %5695 = vmatprep.subr.bf16.mxu0 0
        %5696 = vmatpush1.bf16.msra.mxu0 0
        %5697 = vmatprep.subr.bf16.mxu0 %v5595
        %5698 = vmatpush1.bf16.msra.mxu0 %v5592
        %5699 = vmatprep.subr.bf16.mxu0 %v5557
        %5700 = vmatpush1.bf16.msra.mxu0 %v5556
        %5701 = vmatprep.subr.bf16.mxu0 0
        %5702 = vmatpush2.bf16.msra.mxu0 0
        %5703 = vmatprep.subr.bf16.mxu0 0
        %5704 = vmatpush2.bf16.msra.mxu0 0
        %5705 = vmatprep.subr.bf16.mxu0 0
        %5706 = vmatpush2.bf16.msra.mxu0 0
        %5707 = vmatprep.subr.bf16.mxu0 0
        %5708 = vmatpush2.bf16.msra.mxu0 0
        %5709 = vmatprep.subr.bf16.mxu0 0
        %5710 = vmatpush2.bf16.msra.mxu0 0
        %5711 = vmatprep.subr.bf16.mxu0 0
        %5712 = vmatpush2.bf16.msra.mxu0 0
        %5713 = vmatprep.subr.bf16.mxu0 0
        %5714 = vmatpush2.bf16.msra.mxu0 0
        %5715 = vmatprep.subr.bf16.mxu0 0
        %5716 = vmatpush2.bf16.msra.mxu0 0
        %5717 = vmatprep.mubr.bf16.mxu0 0
        %5718 = vmatmul.mubr.bf16.gmra.mxu0 %v5577
        %v5719 = vpop.f32.mrf.mxu0
        %v5720 = vadd.f32 0.0, %v5719
        %v5721 = vpop.f32.mrf.mxu0
        %v5722 = vadd.f32 0.0, %v5721
        %v5723 = vpop.f32.mrf.mxu0
        %v5724 = vpop.f32.mrf.mxu0
        %5725 = vdwg.mxu0
        %5726 = vmatprep.subr.bf16.mxu0 0
        %5727 = vmatpush1.bf16.msra.mxu0 0
        %5728 = vmatprep.subr.bf16.mxu0 0
        %5729 = vmatpush1.bf16.msra.mxu0 0
        %5730 = vmatprep.subr.bf16.mxu0 0
        %5731 = vmatpush1.bf16.msra.mxu0 0
        %5732 = vmatprep.subr.bf16.mxu0 0
        %5733 = vmatpush1.bf16.msra.mxu0 0
        %5734 = vmatprep.subr.bf16.mxu0 0
        %5735 = vmatpush1.bf16.msra.mxu0 0
        %5736 = vmatprep.subr.bf16.mxu0 0
        %5737 = vmatpush1.bf16.msra.mxu0 0
        %5738 = vmatprep.subr.bf16.mxu0 %v5601
        %5739 = vmatpush1.bf16.msra.mxu0 %v5598
        %5740 = vmatprep.subr.bf16.mxu0 %v5559
        %5741 = vmatpush1.bf16.msra.mxu0 %v5558
        %5742 = vmatprep.subr.bf16.mxu0 0
        %5743 = vmatpush2.bf16.msra.mxu0 0
        %5744 = vmatprep.subr.bf16.mxu0 0
        %5745 = vmatpush2.bf16.msra.mxu0 0
        %5746 = vmatprep.subr.bf16.mxu0 0
        %5747 = vmatpush2.bf16.msra.mxu0 0
        %5748 = vmatprep.subr.bf16.mxu0 0
        %5749 = vmatpush2.bf16.msra.mxu0 0
        %5750 = vmatprep.subr.bf16.mxu0 0
        %5751 = vmatpush2.bf16.msra.mxu0 0
        %5752 = vmatprep.subr.bf16.mxu0 0
        %5753 = vmatpush2.bf16.msra.mxu0 0
        %5754 = vmatprep.subr.bf16.mxu0 0
        %5755 = vmatpush2.bf16.msra.mxu0 0
        %5756 = vmatprep.subr.bf16.mxu0 0
        %5757 = vmatpush2.bf16.msra.mxu0 0
        %5758 = vmatprep.mubr.bf16.mxu0 0
        %5759 = vmatmul.mubr.bf16.gmra.mxu0 %v5577
        %v5760 = vpop.f32.mrf.mxu0
        %v5761 = vadd.f32 0.0, %v5760
        %v5762 = vpop.f32.mrf.mxu0
        %v5763 = vadd.f32 0.0, %v5762
        %v5764 = vpop.f32.mrf.mxu0
        %v5765 = vpop.f32.mrf.mxu0
        %5766 = vdwg.mxu0
        %v5767 = vadd.f32 %v5506, %v5638
        %v5768 = vadd.f32 %v5507, %v5640
        %v5769 = vadd.f32 %v5508, %v5679
        %v5770 = vadd.f32 %v5509, %v5681
        %v5771 = vadd.f32 %v5510, %v5720
        %v5772 = vadd.f32 %v5511, %v5722
        %v5773 = vadd.f32 %v5512, %v5761
        %v5774 = vadd.f32 %v5513, %v5763
        %v5775 = vld [vmem:[%s4] sm:$0xf]
        %5777 = vset.pattern.permute.xlu0 0
        %5778 = vperm.xlu0 %5777, %v5775
        %v5779 = vpop.permute.xlu0 %5778
        %v5781 = vadd.f32 %v5767, %v5779
        %v5782 = vadd.f32 %v5768, %v5779
        %v5783 = vadd.f32 %v5769, %v5779
        %v5784 = vadd.f32 %v5770, %v5779
        %v5785 = vadd.f32 %v5771, %v5779
        %v5786 = vadd.f32 %v5772, %v5779
        %v5787 = vadd.f32 %v5773, %v5779
        %v5788 = vadd.f32 %v5774, %v5779
        %v5789 = vmax.f32 %v5781, 0.0
        %v5790 = vmax.f32 %v5782, 0.0
        %v5791 = vmax.f32 %v5783, 0.0
        %v5792 = vmax.f32 %v5784, 0.0
        %v5793 = vmax.f32 %v5785, 0.0
        %v5794 = vmax.f32 %v5786, 0.0
        %v5795 = vmax.f32 %v5787, 0.0
        %v5796 = vmax.f32 %v5788, 0.0
        %v5805 = vcombine.low %v5789, %v5790
        %v5806 = vcombine.low %v5791, %v5792
        %v5807 = vcombine.low %v5793, %v5794
        %v5808 = vcombine.low %v5795, %v5796
        %5813 = vst [vmem:[%s294] sm:$0xff] %v5805
        %5814 = vst [vmem:[%s294 + $0x8] sm:$0xff] %v5806
        %5815 = vst [vmem:[%s294 + $0x10] sm:$0xff] %v5807
        %5816 = vst.msk [vmem:[%s294 + $0x18] sm:$0xff] %vm3097, %v5808
        %s5817 = sand.u32 %s163, 1
        %s5818 = scalar_lea.sflag [#allocation5], %s5817
        %s5819 = sand.u32 %s163, 1
        %s5820 = smul.addr %s5819, 32
        %s5821 = scalar_lea.vmem [#allocation9], %s5820
        // Predicated region
        $region57: #{tpu_custom_call.1} parent=43 // pred_check
          %p5822 = pneg %p173
        $region58: #{tpu_custom_call.1} parent=43 // pred_check_branch
          %5824 = sbr.rel (%p5822) target = $region60
        $region59: #{tpu_custom_call.1} parent=43 // pred_region
          %s5826 = ssub.s32 512, 512
          %5827 = vsyncadd %s5818, %s5826
          %s5828 = smul.addr %s24, 8
          %s5829 = smul.addr %s5828, 64
          %s5830 = scalar_lea.hbm %s6, %s5829
          %s5832 = sshll.u32 %s5821, 4
          %s5833 = int_to_ptr.vmem [resolvable:$true] %s5832
          %5835 = dma.vmem_to_hbm [thread:$0]  %s5833, 512, %s5830, %s5818
        $region60: #{tpu_custom_call.1} parent=43 // pred_fallthru
          _
      $region44: #{tpu_custom_call.1} parent=5 // pred_fallthru
        _
      %p5836 = scmp.le.s32.totalorder 2, %s19
      // Predicated region
      $region61: #{tpu_custom_call.1} parent=5 // pred_check
        %p5837 = pneg %p5836
      $region62: #{tpu_custom_call.1} parent=5 // pred_check_branch
        %5839 = sbr.rel (%p5837) target = $region64
      $region63: #{tpu_custom_call.1} parent=5 // pred_region
        %s5840 = ssub.s32 %s19, 2
        // Predicated region
        $region65: #{tpu_custom_call.1} parent=63 // pred_check
          %p5841 = pneg %p179
        $region66: #{tpu_custom_call.1} parent=63 // pred_check_branch
          %5843 = sbr.rel (%p5841) target = $region68
        $region67: #{tpu_custom_call.1} parent=63 // pred_region
          %s5844 = sand.u32 %s164, 1
          %s5845 = scalar_lea.sflag [#allocation5], %s5844
          %s5846 = sand.u32 %s164, 1
          %s5847 = smul.addr %s5846, 32
          %s5848 = scalar_lea.vmem [#allocation9], %s5847
          %5849 = dma.done %s5845, 512
        $region68: #{tpu_custom_call.1} parent=63 // pred_fallthru
          _
      $region64: #{tpu_custom_call.1} parent=5 // pred_fallthru
        _
    $region6: #{tpu_custom_call.1} parent=1 // loop_footer
      %s23 = sadd.s32 1, %s19
    $region7: #{tpu_custom_call.1} parent=1 // loop_footer_branch
      %18 = sbr.rel target = $region3
    $region8: #{tpu_custom_call.1} parent=1 // loop_exit
      _
    %5850 = vsyncpa [#allocation4], 1
    %s5851 = scalar_lea.sflag [#allocation4], 1
    %5852 = vsyncpa %s5851, 1
    %5853 = vsyncpa [#allocation7], 1
    %5854 = vsyncpa [#allocation5], 1
    %s5855 = scalar_lea.sflag [#allocation5], 1
    %5856 = vsyncpa %s5855, 1

</llo_original>
